<compile_context>
chip_gen: v7x
topology: tpu7x:2x2x1
jax: 0.10.0
libtpu: 0.0.40
codegen_flags: <defaults>
</compile_context>

<pallas_src>
import jax
import jax.numpy as jnp
from jax.experimental import pallas as pl
from jax.experimental.pallas import tpu as pltpu


def conv1x1_matmul_kernel(x_ref, w_ref, o_ref):
    # x_ref: (1, C_in, rows) bf16  (ReLU already applied in the wrapper fusion)
    # w_ref: (c_blk, C_in)   bf16
    # o_ref: (1, c_blk, rows) f32
    o_ref[0] = jax.lax.dot_general(
        w_ref[...], x_ref[0],
        dimension_numbers=(((1,), (0,)), ((), ())),   # [c_blk,C_in] @ [C_in,rows]
        preferred_element_type=jnp.float32,           # f32 accumulation on the MXU
    ).astype(o_ref.dtype)


def _num_tensorcores_per_chip() -> int:
    """Best-effort query of TensorCores per chip (v7x / megacore = 2, v5e/v6e = 1)."""
    try:
        dev = jax.devices()[0]
    except Exception:
        return 1
    for attr in ("num_cores", "num_tensorcores", "cores_per_chip"):
        v = getattr(dev, attr, None)
        if isinstance(v, int) and v > 0:
            return v
    kind = str(getattr(dev, "device_kind", "")).lower()
    if ("v7" in kind) or ("v4" in kind) or ("v5p" in kind):
        return 2
    return 1


def prepare_weight(weight_oihw):
    """One-time parameter prep: [C_out, C_in, 1, 1] f32 -> [C_out, C_in] bf16."""
    c_out, c_in = weight_oihw.shape[0], weight_oihw.shape[1]
    return weight_oihw.reshape(c_out, c_in).astype(jnp.bfloat16)


def relu_conv2d_1x1_s2(x_nchw, w_mat_bf16):
    """x_nchw: [N, C_in, H, W] f32; w_mat_bf16: [C_out, C_in] bf16 (pre-cast once)."""
    N, C_in, H, W = x_nchw.shape
    C_out = w_mat_bf16.shape[0]
    stride = 2
    H_out = (H - 1) // stride + 1
    W_out = (W - 1) // stride + 1
    rows = H_out * W_out

    # A 1x1 / stride-2 conv only reads the strided pixels. Stay channel-major
    # (no NCHW<->NHWC transposes) and fuse ReLU + bf16 cast into this slice pass
    # so the kernel sees a ready-to-matmul bf16 operand (half the x DMA bytes).
    x_mat = (
        jnp.maximum(x_nchw[:, :, ::stride, ::stride], 0.0)
        .astype(jnp.bfloat16)
        .reshape(N, C_in, rows)
    )

    # Chip-dependent C_out split: one output block per TensorCore.
    n_split = 2 if _num_tensorcores_per_chip() >= 2 else 1
    if C_out % n_split != 0 or (C_out // n_split) % 16 != 0:
        n_split = 1
    c_blk = C_out // n_split
    assert C_out % n_split == 0 and c_blk % 16 == 0  # bf16 sublane packing of weight

    out = pl.pallas_call(
        conv1x1_matmul_kernel,
        out_shape=jax.ShapeDtypeStruct((N, C_out, rows), jnp.float32),
        grid=(N, n_split),
        in_specs=[
            pl.BlockSpec((1, C_in, rows), lambda n, j: (n, 0, 0)),   # x resident across j
            pl.BlockSpec((c_blk, C_in), lambda n, j: (j, 0)),        # one C_out block/step
        ],
        out_specs=pl.BlockSpec((1, c_blk, rows), lambda n, j: (n, j, 0)),
        compiler_params=pltpu.CompilerParams(
            dimension_semantics=("parallel", "parallel"),
        ),
    )(x_mat, w_mat_bf16)

    return out.reshape(N, C_out, H_out, W_out)


if __name__ == "__main__":
    # Shapes implied by the module: input [1, 672, 28, 28], weight [1344, 672, 1, 1].
    N, C_in, H, W = 1, 672, 28, 28
    C_out = 1344

    key = jax.random.PRNGKey(0)
    kx, kw = jax.random.split(key)
    x = jax.random.normal(kx, (N, C_in, H, W), dtype=jnp.float32)
    weight = jax.random.normal(kw, (C_out, C_in, 1, 1), dtype=jnp.float32) * 0.02

    # One-time parameter prep (hoisted out of the per-call path).
    w_mat = jax.block_until_ready(prepare_weight(weight))

    fwd = jax.jit(relu_conv2d_1x1_s2)
    out = jax.block_until_ready(fwd(x, w_mat))

    # Reference with the same bf16 operand rounding (f32 accumulation).
    x_b = jnp.maximum(x[:, :, ::2, ::2], 0.0).astype(jnp.bfloat16).astype(jnp.float32)
    w_b = weight.reshape(C_out, C_in).astype(jnp.bfloat16).astype(jnp.float32)
    ref = jnp.einsum("nchw,oc->nohw", x_b, w_b)

    assert out.shape == (N, C_out, (H - 1) // 2 + 1, (W - 1) // 2 + 1)
    assert out.dtype == jnp.float32
    assert jnp.allclose(out, ref, atol=1e-2, rtol=1e-2)

    print("KERNEL_OK")
</pallas_src>

<mosaic_0001>
module attributes {stable_mosaic.version = 11 : i64} {
  func.func @conv1x1_matmul_kernel(%arg0: i32, %arg1: i32, %arg2: memref<1x672x196xbf16, #tpu.memory_space<vmem>>, %arg3: memref<1344x672xbf16, #tpu.memory_space<vmem>>, %arg4: memref<1x1344x196xf32, #tpu.memory_space<vmem>>) attributes {dimension_semantics = [#tpu.dimension_semantics<parallel>, #tpu.dimension_semantics<parallel>], iteration_bounds = array<i64: 1, 1>, scalar_prefetch = 0 : i64, scratch_operands = 0 : i64, tpu.core_type = #tpu.core_type<tc>, window_params = [{transform_indices = @transform_0, window_bounds = array<i64: 1, 672, 196>}, {transform_indices = @transform_1, window_bounds = array<i64: 1344, 672>}, {transform_indices = @transform_2, window_bounds = array<i64: 1, 1344, 196>}]} {
    %c0 = arith.constant 0 : index
    %c0_0 = arith.constant 0 : index
    %0 = vector.load %arg3[%c0, %c0_0] : memref<1344x672xbf16, #tpu.memory_space<vmem>>, vector<1344x672xbf16>
    %c0_1 = arith.constant 0 : index
    %c0_2 = arith.constant 0 : index
    %c0_3 = arith.constant 0 : index
    %1 = vector.load %arg2[%c0_1, %c0_2, %c0_3] : memref<1x672x196xbf16, #tpu.memory_space<vmem>>, vector<1x672x196xbf16>
    %2 = vector.shape_cast %1 : vector<1x672x196xbf16> to vector<672x196xbf16>
    %cst = arith.constant dense<0.000000e+00> : vector<1344x196xf32>
    %3 = tpu.matmul %0, %2, %cst {dimension_numbers = #tpu.dot_dimension_numbers<[1], [0], [0], [1], [0, 0, 1, 1], [], []>} : vector<1344x672xbf16>, vector<672x196xbf16>, vector<1344x196xf32> -> vector<1344x196xf32>
    %c0_4 = arith.constant 0 : index
    %c0_5 = arith.constant 0 : index
    %c0_6 = arith.constant 0 : index
    %4 = vector.load %arg4[%c0_4, %c0_5, %c0_6] : memref<1x1344x196xf32, #tpu.memory_space<vmem>>, vector<1x1344x196xf32>
    %5 = vector.shape_cast %4 : vector<1x1344x196xf32> to vector<1344x196xf32>
    %6 = vector.shape_cast %3 : vector<1344x196xf32> to vector<1x1344x196xf32>
    tpu.vector_store %arg4[%c0_4, %c0_5, %c0_6], %6 {strides = array<i32>} : memref<1x1344x196xf32, #tpu.memory_space<vmem>>, vector<1x1344x196xf32>,
    return
  }
  func.func @transform_0(%arg0: i32, %arg1: i32) -> (i32, i32, i32) {
    %c0_i32 = arith.constant 0 : i32
    %c0_i32_0 = arith.constant 0 : i32
    %c0_i32_1 = arith.constant 0 : i32
    return %arg0, %c0_i32, %c0_i32_0 : i32, i32, i32
  }
  func.func @transform_1(%arg0: i32, %arg1: i32) -> (i32, i32) {
    %c0_i32 = arith.constant 0 : i32
    %c0_i32_0 = arith.constant 0 : i32
    return %arg1, %c0_i32 : i32, i32
  }
  func.func @transform_2(%arg0: i32, %arg1: i32) -> (i32, i32, i32) {
    %c0_i32 = arith.constant 0 : i32
    %c0_i32_0 = arith.constant 0 : i32
    return %arg0, %arg1, %c0_i32 : i32, i32, i32
  }
}

</mosaic_0001>

<llo_original>
// kernel: relu_conv2d_1x1_s2.1
$region0: #{relu_conv2d_1x1_s2.1}
  #allocation0 [shape = 'u32[]', space=smem, size = 0x4, offset = 0x4, fixed_abs, tag = 'smem constant byte address 0x4 - core index']
  #allocation1 [shape = 'u32[144,128]{1,0:T(1,128)}', space=vmem, size = 0x12000, scoped, tag = 'internal scratch']
  %s0 = inlined_call_operand.vmem [shape: bf16[1,672,196], index: 0, kind: input, shape index: {}]
  %s1 = inlined_call_operand.vmem [shape: bf16[1344,672], index: 1, kind: input, shape index: {}]
  %s2 = inlined_call_operand.vmem [shape: f32[1,1344,196], index: 2, kind: output, shape index: {}]
  %s3 = sld [smem:[#allocation0]]
  $region18: #{relu_conv2d_1x1_s2.1} parent=0
    _
  %s5 = ssub.s32 1, %s3
  %s6 = scalar_select 0, %s5, %s3
  // Predicated region
  $region2: #{relu_conv2d_1x1_s2.1} parent=0 // pred_check
    _
  $region3: #{relu_conv2d_1x1_s2.1} parent=0 // pred_check_branch
    %8 = sbr.rel (0) target = $region5
  $region4: #{relu_conv2d_1x1_s2.1} parent=0 // pred_region
    _
  $region5: #{relu_conv2d_1x1_s2.1} parent=0 // pred_fallthru
    _
  // Predicated region
  $region6: #{relu_conv2d_1x1_s2.1} parent=0 // pred_check
    _
  $region7: #{relu_conv2d_1x1_s2.1} parent=0 // pred_check_branch
    %10 = sbr.rel (0) target = $region9
  $region8: #{relu_conv2d_1x1_s2.1} parent=0 // pred_region
    _
  $region9: #{relu_conv2d_1x1_s2.1} parent=0 // pred_fallthru
    _
  %v12 = vld [vmem:[%s1] sm:$0xff]
  %v13 = vld [vmem:[%s1 + $0x8] sm:$0xff]
  %v14 = vld [vmem:[%s1 + $0x10] sm:$0xff]
  %v15 = vld [vmem:[%s1 + $0x18] sm:$0xff]
  %v16 = vld [vmem:[%s1 + $0x20] sm:$0xff]
  %v17 = vld [vmem:[%s1 + $0x28] sm:$0xff]
  %v18 = vld [vmem:[%s1 + $0x30] sm:$0xff]
  %v19 = vld [vmem:[%s1 + $0x38] sm:$0xff]
  %v20 = vld [vmem:[%s1 + $0x40] sm:$0xff]
  %v21 = vld [vmem:[%s1 + $0x48] sm:$0xff]
  %v22 = vld [vmem:[%s1 + $0x50] sm:$0xff]
  %v23 = vld [vmem:[%s1 + $0x58] sm:$0xff]
  %v24 = vld [vmem:[%s1 + $0x60] sm:$0xff]
  %v25 = vld [vmem:[%s1 + $0x68] sm:$0xff]
  %v26 = vld [vmem:[%s1 + $0x70] sm:$0xff]
  %v27 = vld [vmem:[%s1 + $0x78] sm:$0xff]
  %v28 = vld [vmem:[%s1 + $0x80] sm:$0xff]
  %v29 = vld [vmem:[%s1 + $0x88] sm:$0xff]
  %v30 = vld [vmem:[%s1 + $0x90] sm:$0xff]
  %v31 = vld [vmem:[%s1 + $0x98] sm:$0xff]
  %v32 = vld [vmem:[%s1 + $0xa0] sm:$0xff]
  %v33 = vld [vmem:[%s1 + $0xa8] sm:$0xff]
  %v34 = vld [vmem:[%s1 + $0xb0] sm:$0xff]
  %v35 = vld [vmem:[%s1 + $0xb8] sm:$0xff]
  %v36 = vld [vmem:[%s1 + $0xc0] sm:$0xff]
  %v37 = vld [vmem:[%s1 + $0xc8] sm:$0xff]
  %v38 = vld [vmem:[%s1 + $0xd0] sm:$0xff]
  %v39 = vld [vmem:[%s1 + $0xd8] sm:$0xff]
  %v40 = vld [vmem:[%s1 + $0xe0] sm:$0xff]
  %v41 = vld [vmem:[%s1 + $0xe8] sm:$0xff]
  %v42 = vld [vmem:[%s1 + $0xf0] sm:$0xff]
  %v43 = vld [vmem:[%s1 + $0xf8] sm:$0xff]
  %v44 = vld [vmem:[%s1 + $0x100] sm:$0xff]
  %v45 = vld [vmem:[%s1 + $0x108] sm:$0xff]
  %v46 = vld [vmem:[%s1 + $0x110] sm:$0xff]
  %v47 = vld [vmem:[%s1 + $0x118] sm:$0xff]
  %v48 = vld [vmem:[%s1 + $0x120] sm:$0xff]
  %v49 = vld [vmem:[%s1 + $0x128] sm:$0xff]
  %v50 = vld [vmem:[%s1 + $0x130] sm:$0xff]
  %v51 = vld [vmem:[%s1 + $0x138] sm:$0xff]
  %v52 = vld [vmem:[%s1 + $0x140] sm:$0xff]
  %v53 = vld [vmem:[%s1 + $0x148] sm:$0xff]
  %v54 = vld [vmem:[%s1 + $0x150] sm:$0xff]
  %v55 = vld [vmem:[%s1 + $0x158] sm:$0xff]
  %v56 = vld [vmem:[%s1 + $0x160] sm:$0xff]
  %v57 = vld [vmem:[%s1 + $0x168] sm:$0xff]
  %v58 = vld [vmem:[%s1 + $0x170] sm:$0xff]
  %v59 = vld [vmem:[%s1 + $0x178] sm:$0xff]
  %v60 = vld [vmem:[%s1 + $0x180] sm:$0xff]
  %v61 = vld [vmem:[%s1 + $0x188] sm:$0xff]
  %v62 = vld [vmem:[%s1 + $0x190] sm:$0xff]
  %v63 = vld [vmem:[%s1 + $0x198] sm:$0xff]
  %v64 = vld [vmem:[%s1 + $0x1a0] sm:$0xff]
  %v65 = vld [vmem:[%s1 + $0x1a8] sm:$0xff]
  %v66 = vld [vmem:[%s1 + $0x1b0] sm:$0xff]
  %v67 = vld [vmem:[%s1 + $0x1b8] sm:$0xff]
  %v68 = vld [vmem:[%s1 + $0x1c0] sm:$0xff]
  %v69 = vld [vmem:[%s1 + $0x1c8] sm:$0xff]
  %v70 = vld [vmem:[%s1 + $0x1d0] sm:$0xff]
  %v71 = vld [vmem:[%s1 + $0x1d8] sm:$0xff]
  %v72 = vld [vmem:[%s1 + $0x1e0] sm:$0xff]
  %v73 = vld [vmem:[%s1 + $0x1e8] sm:$0xff]
  %v74 = vld [vmem:[%s1 + $0x1f0] sm:$0xff]
  %v75 = vld [vmem:[%s1 + $0x1f8] sm:$0xff]
  %v76 = vld [vmem:[%s1 + $0x200] sm:$0xff]
  %v77 = vld [vmem:[%s1 + $0x208] sm:$0xff]
  %v78 = vld [vmem:[%s1 + $0x210] sm:$0xff]
  %v79 = vld [vmem:[%s1 + $0x218] sm:$0xff]
  %v80 = vld [vmem:[%s1 + $0x220] sm:$0xff]
  %v81 = vld [vmem:[%s1 + $0x228] sm:$0xff]
  %v82 = vld [vmem:[%s1 + $0x230] sm:$0xff]
  %v83 = vld [vmem:[%s1 + $0x238] sm:$0xff]
  %v84 = vld [vmem:[%s1 + $0x240] sm:$0xff]
  %v85 = vld [vmem:[%s1 + $0x248] sm:$0xff]
  %v86 = vld [vmem:[%s1 + $0x250] sm:$0xff]
  %v87 = vld [vmem:[%s1 + $0x258] sm:$0xff]
  %v88 = vld [vmem:[%s1 + $0x260] sm:$0xff]
  %v89 = vld [vmem:[%s1 + $0x268] sm:$0xff]
  %v90 = vld [vmem:[%s1 + $0x270] sm:$0xff]
  %v91 = vld [vmem:[%s1 + $0x278] sm:$0xff]
  %v92 = vld [vmem:[%s1 + $0x280] sm:$0xff]
  %v93 = vld [vmem:[%s1 + $0x288] sm:$0xff]
  %v94 = vld [vmem:[%s1 + $0x290] sm:$0xff]
  %v95 = vld [vmem:[%s1 + $0x298] sm:$0xff]
  %v96 = vld [vmem:[%s1 + $0x2a0] sm:$0xff]
  %v97 = vld [vmem:[%s1 + $0x2a8] sm:$0xff]
  %v98 = vld [vmem:[%s1 + $0x2b0] sm:$0xff]
  %v99 = vld [vmem:[%s1 + $0x2b8] sm:$0xff]
  %v100 = vld [vmem:[%s1 + $0x2c0] sm:$0xff]
  %v101 = vld [vmem:[%s1 + $0x2c8] sm:$0xff]
  %v102 = vld [vmem:[%s1 + $0x2d0] sm:$0xff]
  %v103 = vld [vmem:[%s1 + $0x2d8] sm:$0xff]
  %v104 = vld [vmem:[%s1 + $0x2e0] sm:$0xff]
  %v105 = vld [vmem:[%s1 + $0x2e8] sm:$0xff]
  %v106 = vld [vmem:[%s1 + $0x2f0] sm:$0xff]
  %v107 = vld [vmem:[%s1 + $0x2f8] sm:$0xff]
  %v108 = vld [vmem:[%s1 + $0x300] sm:$0xff]
  %v109 = vld [vmem:[%s1 + $0x308] sm:$0xff]
  %v110 = vld [vmem:[%s1 + $0x310] sm:$0xff]
  %v111 = vld [vmem:[%s1 + $0x318] sm:$0xff]
  %v112 = vld [vmem:[%s1 + $0x320] sm:$0xff]
  %v113 = vld [vmem:[%s1 + $0x328] sm:$0xff]
  %v114 = vld [vmem:[%s1 + $0x330] sm:$0xff]
  %v115 = vld [vmem:[%s1 + $0x338] sm:$0xff]
  %v116 = vld [vmem:[%s1 + $0x340] sm:$0xff]
  %v117 = vld [vmem:[%s1 + $0x348] sm:$0xff]
  %v118 = vld [vmem:[%s1 + $0x350] sm:$0xff]
  %v119 = vld [vmem:[%s1 + $0x358] sm:$0xff]
  %v120 = vld [vmem:[%s1 + $0x360] sm:$0xff]
  %v121 = vld [vmem:[%s1 + $0x368] sm:$0xff]
  %v122 = vld [vmem:[%s1 + $0x370] sm:$0xff]
  %v123 = vld [vmem:[%s1 + $0x378] sm:$0xff]
  %v124 = vld [vmem:[%s1 + $0x380] sm:$0xff]
  %v125 = vld [vmem:[%s1 + $0x388] sm:$0xff]
  %v126 = vld [vmem:[%s1 + $0x390] sm:$0xff]
  %v127 = vld [vmem:[%s1 + $0x398] sm:$0xff]
  %v128 = vld [vmem:[%s1 + $0x3a0] sm:$0xff]
  %v129 = vld [vmem:[%s1 + $0x3a8] sm:$0xff]
  %v130 = vld [vmem:[%s1 + $0x3b0] sm:$0xff]
  %v131 = vld [vmem:[%s1 + $0x3b8] sm:$0xff]
  %v132 = vld [vmem:[%s1 + $0x3c0] sm:$0xff]
  %v133 = vld [vmem:[%s1 + $0x3c8] sm:$0xff]
  %v134 = vld [vmem:[%s1 + $0x3d0] sm:$0xff]
  %v135 = vld [vmem:[%s1 + $0x3d8] sm:$0xff]
  %v136 = vld [vmem:[%s1 + $0x3e0] sm:$0xff]
  %v137 = vld [vmem:[%s1 + $0x3e8] sm:$0xff]
  %v138 = vld [vmem:[%s1 + $0x3f0] sm:$0xff]
  %v139 = vld [vmem:[%s1 + $0x3f8] sm:$0xff]
  %v140 = vld [vmem:[%s1 + $0x400] sm:$0xff]
  %v141 = vld [vmem:[%s1 + $0x408] sm:$0xff]
  %v142 = vld [vmem:[%s1 + $0x410] sm:$0xff]
  %v143 = vld [vmem:[%s1 + $0x418] sm:$0xff]
  %v144 = vld [vmem:[%s1 + $0x420] sm:$0xff]
  %v145 = vld [vmem:[%s1 + $0x428] sm:$0xff]
  %v146 = vld [vmem:[%s1 + $0x430] sm:$0xff]
  %v147 = vld [vmem:[%s1 + $0x438] sm:$0xff]
  %v148 = vld [vmem:[%s1 + $0x440] sm:$0xff]
  %v149 = vld [vmem:[%s1 + $0x448] sm:$0xff]
  %v150 = vld [vmem:[%s1 + $0x450] sm:$0xff]
  %v151 = vld [vmem:[%s1 + $0x458] sm:$0xff]
  %v152 = vld [vmem:[%s1 + $0x460] sm:$0xff]
  %v153 = vld [vmem:[%s1 + $0x468] sm:$0xff]
  %v154 = vld [vmem:[%s1 + $0x470] sm:$0xff]
  %v155 = vld [vmem:[%s1 + $0x478] sm:$0xff]
  %v156 = vld [vmem:[%s1 + $0x480] sm:$0xff]
  %v157 = vld [vmem:[%s1 + $0x488] sm:$0xff]
  %v158 = vld [vmem:[%s1 + $0x490] sm:$0xff]
  %v159 = vld [vmem:[%s1 + $0x498] sm:$0xff]
  %v160 = vld [vmem:[%s1 + $0x4a0] sm:$0xff]
  %v161 = vld [vmem:[%s1 + $0x4a8] sm:$0xff]
  %v162 = vld [vmem:[%s1 + $0x4b0] sm:$0xff]
  %v163 = vld [vmem:[%s1 + $0x4b8] sm:$0xff]
  %v164 = vld [vmem:[%s1 + $0x4c0] sm:$0xff]
  %v165 = vld [vmem:[%s1 + $0x4c8] sm:$0xff]
  %v166 = vld [vmem:[%s1 + $0x4d0] sm:$0xff]
  %v167 = vld [vmem:[%s1 + $0x4d8] sm:$0xff]
  %v168 = vld [vmem:[%s1 + $0x4e0] sm:$0xff]
  %v169 = vld [vmem:[%s1 + $0x4e8] sm:$0xff]
  %v170 = vld [vmem:[%s1 + $0x4f0] sm:$0xff]
  %v171 = vld [vmem:[%s1 + $0x4f8] sm:$0xff]
  %v172 = vld [vmem:[%s1 + $0x500] sm:$0xff]
  %v173 = vld [vmem:[%s1 + $0x508] sm:$0xff]
  %v174 = vld [vmem:[%s1 + $0x510] sm:$0xff]
  %v175 = vld [vmem:[%s1 + $0x518] sm:$0xff]
  %v176 = vld [vmem:[%s1 + $0x520] sm:$0xff]
  %v177 = vld [vmem:[%s1 + $0x528] sm:$0xff]
  %v178 = vld [vmem:[%s1 + $0x530] sm:$0xff]
  %v179 = vld [vmem:[%s1 + $0x538] sm:$0xff]
  %v180 = vld [vmem:[%s1 + $0x540] sm:$0xff]
  %v181 = vld [vmem:[%s1 + $0x548] sm:$0xff]
  %v182 = vld [vmem:[%s1 + $0x550] sm:$0xff]
  %v183 = vld [vmem:[%s1 + $0x558] sm:$0xff]
  %v184 = vld [vmem:[%s1 + $0x560] sm:$0xff]
  %v185 = vld [vmem:[%s1 + $0x568] sm:$0xff]
  %v186 = vld [vmem:[%s1 + $0x570] sm:$0xff]
  %v187 = vld [vmem:[%s1 + $0x578] sm:$0xff]
  %v188 = vld [vmem:[%s1 + $0x580] sm:$0xff]
  %v189 = vld [vmem:[%s1 + $0x588] sm:$0xff]
  %v190 = vld [vmem:[%s1 + $0x590] sm:$0xff]
  %v191 = vld [vmem:[%s1 + $0x598] sm:$0xff]
  %v192 = vld [vmem:[%s1 + $0x5a0] sm:$0xff]
  %v193 = vld [vmem:[%s1 + $0x5a8] sm:$0xff]
  %v194 = vld [vmem:[%s1 + $0x5b0] sm:$0xff]
  %v195 = vld [vmem:[%s1 + $0x5b8] sm:$0xff]
  %v196 = vld [vmem:[%s1 + $0x5c0] sm:$0xff]
  %v197 = vld [vmem:[%s1 + $0x5c8] sm:$0xff]
  %v198 = vld [vmem:[%s1 + $0x5d0] sm:$0xff]
  %v199 = vld [vmem:[%s1 + $0x5d8] sm:$0xff]
  %v200 = vld [vmem:[%s1 + $0x5e0] sm:$0xff]
  %v201 = vld [vmem:[%s1 + $0x5e8] sm:$0xff]
  %v202 = vld [vmem:[%s1 + $0x5f0] sm:$0xff]
  %v203 = vld [vmem:[%s1 + $0x5f8] sm:$0xff]
  %v204 = vld [vmem:[%s1 + $0x600] sm:$0xff]
  %v205 = vld [vmem:[%s1 + $0x608] sm:$0xff]
  %v206 = vld [vmem:[%s1 + $0x610] sm:$0xff]
  %v207 = vld [vmem:[%s1 + $0x618] sm:$0xff]
  %v208 = vld [vmem:[%s1 + $0x620] sm:$0xff]
  %v209 = vld [vmem:[%s1 + $0x628] sm:$0xff]
  %v210 = vld [vmem:[%s1 + $0x630] sm:$0xff]
  %v211 = vld [vmem:[%s1 + $0x638] sm:$0xff]
  %v212 = vld [vmem:[%s1 + $0x640] sm:$0xff]
  %v213 = vld [vmem:[%s1 + $0x648] sm:$0xff]
  %v214 = vld [vmem:[%s1 + $0x650] sm:$0xff]
  %v215 = vld [vmem:[%s1 + $0x658] sm:$0xff]
  %v216 = vld [vmem:[%s1 + $0x660] sm:$0xff]
  %v217 = vld [vmem:[%s1 + $0x668] sm:$0xff]
  %v218 = vld [vmem:[%s1 + $0x670] sm:$0xff]
  %v219 = vld [vmem:[%s1 + $0x678] sm:$0xff]
  %v220 = vld [vmem:[%s1 + $0x680] sm:$0xff]
  %v221 = vld [vmem:[%s1 + $0x688] sm:$0xff]
  %v222 = vld [vmem:[%s1 + $0x690] sm:$0xff]
  %v223 = vld [vmem:[%s1 + $0x698] sm:$0xff]
  %v224 = vld [vmem:[%s1 + $0x6a0] sm:$0xff]
  %v225 = vld [vmem:[%s1 + $0x6a8] sm:$0xff]
  %v226 = vld [vmem:[%s1 + $0x6b0] sm:$0xff]
  %v227 = vld [vmem:[%s1 + $0x6b8] sm:$0xff]
  %v228 = vld [vmem:[%s1 + $0x6c0] sm:$0xff]
  %v229 = vld [vmem:[%s1 + $0x6c8] sm:$0xff]
  %v230 = vld [vmem:[%s1 + $0x6d0] sm:$0xff]
  %v231 = vld [vmem:[%s1 + $0x6d8] sm:$0xff]
  %v232 = vld [vmem:[%s1 + $0x6e0] sm:$0xff]
  %v233 = vld [vmem:[%s1 + $0x6e8] sm:$0xff]
  %v234 = vld [vmem:[%s1 + $0x6f0] sm:$0xff]
  %v235 = vld [vmem:[%s1 + $0x6f8] sm:$0xff]
  %v236 = vld [vmem:[%s1 + $0x700] sm:$0xff]
  %v237 = vld [vmem:[%s1 + $0x708] sm:$0xff]
  %v238 = vld [vmem:[%s1 + $0x710] sm:$0xff]
  %v239 = vld [vmem:[%s1 + $0x718] sm:$0xff]
  %v240 = vld [vmem:[%s1 + $0x720] sm:$0xff]
  %v241 = vld [vmem:[%s1 + $0x728] sm:$0xff]
  %v242 = vld [vmem:[%s1 + $0x730] sm:$0xff]
  %v243 = vld [vmem:[%s1 + $0x738] sm:$0xff]
  %v244 = vld [vmem:[%s1 + $0x740] sm:$0xff]
  %v245 = vld [vmem:[%s1 + $0x748] sm:$0xff]
  %v246 = vld [vmem:[%s1 + $0x750] sm:$0xff]
  %v247 = vld [vmem:[%s1 + $0x758] sm:$0xff]
  %v248 = vld [vmem:[%s1 + $0x760] sm:$0xff]
  %v249 = vld [vmem:[%s1 + $0x768] sm:$0xff]
  %v250 = vld [vmem:[%s1 + $0x770] sm:$0xff]
  %v251 = vld [vmem:[%s1 + $0x778] sm:$0xff]
  %v252 = vld [vmem:[%s1 + $0x780] sm:$0xff]
  %v253 = vld [vmem:[%s1 + $0x788] sm:$0xff]
  %v254 = vld [vmem:[%s1 + $0x790] sm:$0xff]
  %v255 = vld [vmem:[%s1 + $0x798] sm:$0xff]
  %v256 = vld [vmem:[%s1 + $0x7a0] sm:$0xff]
  %v257 = vld [vmem:[%s1 + $0x7a8] sm:$0xff]
  %v258 = vld [vmem:[%s1 + $0x7b0] sm:$0xff]
  %v259 = vld [vmem:[%s1 + $0x7b8] sm:$0xff]
  %v260 = vld [vmem:[%s1 + $0x7c0] sm:$0xff]
  %v261 = vld [vmem:[%s1 + $0x7c8] sm:$0xff]
  %v262 = vld [vmem:[%s1 + $0x7d0] sm:$0xff]
  %v263 = vld [vmem:[%s1 + $0x7d8] sm:$0xff]
  %v264 = vld [vmem:[%s1 + $0x7e0] sm:$0xff]
  %v265 = vld [vmem:[%s1 + $0x7e8] sm:$0xff]
  %v266 = vld [vmem:[%s1 + $0x7f0] sm:$0xff]
  %v267 = vld [vmem:[%s1 + $0x7f8] sm:$0xff]
  %v268 = vld [vmem:[%s1 + $0x800] sm:$0xff]
  %v269 = vld [vmem:[%s1 + $0x808] sm:$0xff]
  %v270 = vld [vmem:[%s1 + $0x810] sm:$0xff]
  %v271 = vld [vmem:[%s1 + $0x818] sm:$0xff]
  %v272 = vld [vmem:[%s1 + $0x820] sm:$0xff]
  %v273 = vld [vmem:[%s1 + $0x828] sm:$0xff]
  %v274 = vld [vmem:[%s1 + $0x830] sm:$0xff]
  %v275 = vld [vmem:[%s1 + $0x838] sm:$0xff]
  %v276 = vld [vmem:[%s1 + $0x840] sm:$0xff]
  %v277 = vld [vmem:[%s1 + $0x848] sm:$0xff]
  %v278 = vld [vmem:[%s1 + $0x850] sm:$0xff]
  %v279 = vld [vmem:[%s1 + $0x858] sm:$0xff]
  %v280 = vld [vmem:[%s1 + $0x860] sm:$0xff]
  %v281 = vld [vmem:[%s1 + $0x868] sm:$0xff]
  %v282 = vld [vmem:[%s1 + $0x870] sm:$0xff]
  %v283 = vld [vmem:[%s1 + $0x878] sm:$0xff]
  %v284 = vld [vmem:[%s1 + $0x880] sm:$0xff]
  %v285 = vld [vmem:[%s1 + $0x888] sm:$0xff]
  %v286 = vld [vmem:[%s1 + $0x890] sm:$0xff]
  %v287 = vld [vmem:[%s1 + $0x898] sm:$0xff]
  %v288 = vld [vmem:[%s1 + $0x8a0] sm:$0xff]
  %v289 = vld [vmem:[%s1 + $0x8a8] sm:$0xff]
  %v290 = vld [vmem:[%s1 + $0x8b0] sm:$0xff]
  %v291 = vld [vmem:[%s1 + $0x8b8] sm:$0xff]
  %v292 = vld [vmem:[%s1 + $0x8c0] sm:$0xff]
  %v293 = vld [vmem:[%s1 + $0x8c8] sm:$0xff]
  %v294 = vld [vmem:[%s1 + $0x8d0] sm:$0xff]
  %v295 = vld [vmem:[%s1 + $0x8d8] sm:$0xff]
  %v296 = vld [vmem:[%s1 + $0x8e0] sm:$0xff]
  %v297 = vld [vmem:[%s1 + $0x8e8] sm:$0xff]
  %v298 = vld [vmem:[%s1 + $0x8f0] sm:$0xff]
  %v299 = vld [vmem:[%s1 + $0x8f8] sm:$0xff]
  %v300 = vld [vmem:[%s1 + $0x900] sm:$0xff]
  %v301 = vld [vmem:[%s1 + $0x908] sm:$0xff]
  %v302 = vld [vmem:[%s1 + $0x910] sm:$0xff]
  %v303 = vld [vmem:[%s1 + $0x918] sm:$0xff]
  %v304 = vld [vmem:[%s1 + $0x920] sm:$0xff]
  %v305 = vld [vmem:[%s1 + $0x928] sm:$0xff]
  %v306 = vld [vmem:[%s1 + $0x930] sm:$0xff]
  %v307 = vld [vmem:[%s1 + $0x938] sm:$0xff]
  %v308 = vld [vmem:[%s1 + $0x940] sm:$0xff]
  %v309 = vld [vmem:[%s1 + $0x948] sm:$0xff]
  %v310 = vld [vmem:[%s1 + $0x950] sm:$0xff]
  %v311 = vld [vmem:[%s1 + $0x958] sm:$0xff]
  %v312 = vld [vmem:[%s1 + $0x960] sm:$0xff]
  %v313 = vld [vmem:[%s1 + $0x968] sm:$0xff]
  %v314 = vld [vmem:[%s1 + $0x970] sm:$0xff]
  %v315 = vld [vmem:[%s1 + $0x978] sm:$0xff]
  %v316 = vld [vmem:[%s1 + $0x980] sm:$0xff]
  %v317 = vld [vmem:[%s1 + $0x988] sm:$0xff]
  %v318 = vld [vmem:[%s1 + $0x990] sm:$0xff]
  %v319 = vld [vmem:[%s1 + $0x998] sm:$0xff]
  %v320 = vld [vmem:[%s1 + $0x9a0] sm:$0xff]
  %v321 = vld [vmem:[%s1 + $0x9a8] sm:$0xff]
  %v322 = vld [vmem:[%s1 + $0x9b0] sm:$0xff]
  %v323 = vld [vmem:[%s1 + $0x9b8] sm:$0xff]
  %v324 = vld [vmem:[%s1 + $0x9c0] sm:$0xff]
  %v325 = vld [vmem:[%s1 + $0x9c8] sm:$0xff]
  %v326 = vld [vmem:[%s1 + $0x9d0] sm:$0xff]
  %v327 = vld [vmem:[%s1 + $0x9d8] sm:$0xff]
  %v328 = vld [vmem:[%s1 + $0x9e0] sm:$0xff]
  %v329 = vld [vmem:[%s1 + $0x9e8] sm:$0xff]
  %v330 = vld [vmem:[%s1 + $0x9f0] sm:$0xff]
  %v331 = vld [vmem:[%s1 + $0x9f8] sm:$0xff]
  %v332 = vld [vmem:[%s1 + $0xa00] sm:$0xff]
  %v333 = vld [vmem:[%s1 + $0xa08] sm:$0xff]
  %v334 = vld [vmem:[%s1 + $0xa10] sm:$0xff]
  %v335 = vld [vmem:[%s1 + $0xa18] sm:$0xff]
  %v336 = vld [vmem:[%s1 + $0xa20] sm:$0xff]
  %v337 = vld [vmem:[%s1 + $0xa28] sm:$0xff]
  %v338 = vld [vmem:[%s1 + $0xa30] sm:$0xff]
  %v339 = vld [vmem:[%s1 + $0xa38] sm:$0xff]
  %v340 = vld [vmem:[%s1 + $0xa40] sm:$0xff]
  %v341 = vld [vmem:[%s1 + $0xa48] sm:$0xff]
  %v342 = vld [vmem:[%s1 + $0xa50] sm:$0xff]
  %v343 = vld [vmem:[%s1 + $0xa58] sm:$0xff]
  %v344 = vld [vmem:[%s1 + $0xa60] sm:$0xff]
  %v345 = vld [vmem:[%s1 + $0xa68] sm:$0xff]
  %v346 = vld [vmem:[%s1 + $0xa70] sm:$0xff]
  %v347 = vld [vmem:[%s1 + $0xa78] sm:$0xff]
  %v348 = vld [vmem:[%s1 + $0xa80] sm:$0xff]
  %v349 = vld [vmem:[%s1 + $0xa88] sm:$0xff]
  %v350 = vld [vmem:[%s1 + $0xa90] sm:$0xff]
  %v351 = vld [vmem:[%s1 + $0xa98] sm:$0xff]
  %v352 = vld [vmem:[%s1 + $0xaa0] sm:$0xff]
  %v353 = vld [vmem:[%s1 + $0xaa8] sm:$0xff]
  %v354 = vld [vmem:[%s1 + $0xab0] sm:$0xff]
  %v355 = vld [vmem:[%s1 + $0xab8] sm:$0xff]
  %v356 = vld [vmem:[%s1 + $0xac0] sm:$0xff]
  %v357 = vld [vmem:[%s1 + $0xac8] sm:$0xff]
  %v358 = vld [vmem:[%s1 + $0xad0] sm:$0xff]
  %v359 = vld [vmem:[%s1 + $0xad8] sm:$0xff]
  %v360 = vld [vmem:[%s1 + $0xae0] sm:$0xff]
  %v361 = vld [vmem:[%s1 + $0xae8] sm:$0xff]
  %v362 = vld [vmem:[%s1 + $0xaf0] sm:$0xff]
  %v363 = vld [vmem:[%s1 + $0xaf8] sm:$0xff]
  %v364 = vld [vmem:[%s1 + $0xb00] sm:$0xff]
  %v365 = vld [vmem:[%s1 + $0xb08] sm:$0xff]
  %v366 = vld [vmem:[%s1 + $0xb10] sm:$0xff]
  %v367 = vld [vmem:[%s1 + $0xb18] sm:$0xff]
  %v368 = vld [vmem:[%s1 + $0xb20] sm:$0xff]
  %v369 = vld [vmem:[%s1 + $0xb28] sm:$0xff]
  %v370 = vld [vmem:[%s1 + $0xb30] sm:$0xff]
  %v371 = vld [vmem:[%s1 + $0xb38] sm:$0xff]
  %v372 = vld [vmem:[%s1 + $0xb40] sm:$0xff]
  %v373 = vld [vmem:[%s1 + $0xb48] sm:$0xff]
  %v374 = vld [vmem:[%s1 + $0xb50] sm:$0xff]
  %v375 = vld [vmem:[%s1 + $0xb58] sm:$0xff]
  %v376 = vld [vmem:[%s1 + $0xb60] sm:$0xff]
  %v377 = vld [vmem:[%s1 + $0xb68] sm:$0xff]
  %v378 = vld [vmem:[%s1 + $0xb70] sm:$0xff]
  %v379 = vld [vmem:[%s1 + $0xb78] sm:$0xff]
  %v380 = vld [vmem:[%s1 + $0xb80] sm:$0xff]
  %v381 = vld [vmem:[%s1 + $0xb88] sm:$0xff]
  %v382 = vld [vmem:[%s1 + $0xb90] sm:$0xff]
  %v383 = vld [vmem:[%s1 + $0xb98] sm:$0xff]
  %v384 = vld [vmem:[%s1 + $0xba0] sm:$0xff]
  %v385 = vld [vmem:[%s1 + $0xba8] sm:$0xff]
  %v386 = vld [vmem:[%s1 + $0xbb0] sm:$0xff]
  %v387 = vld [vmem:[%s1 + $0xbb8] sm:$0xff]
  %v388 = vld [vmem:[%s1 + $0xbc0] sm:$0xff]
  %v389 = vld [vmem:[%s1 + $0xbc8] sm:$0xff]
  %v390 = vld [vmem:[%s1 + $0xbd0] sm:$0xff]
  %v391 = vld [vmem:[%s1 + $0xbd8] sm:$0xff]
  %v392 = vld [vmem:[%s1 + $0xbe0] sm:$0xff]
  %v393 = vld [vmem:[%s1 + $0xbe8] sm:$0xff]
  %v394 = vld [vmem:[%s1 + $0xbf0] sm:$0xff]
  %v395 = vld [vmem:[%s1 + $0xbf8] sm:$0xff]
  %v396 = vld [vmem:[%s1 + $0xc00] sm:$0xff]
  %v397 = vld [vmem:[%s1 + $0xc08] sm:$0xff]
  %v398 = vld [vmem:[%s1 + $0xc10] sm:$0xff]
  %v399 = vld [vmem:[%s1 + $0xc18] sm:$0xff]
  %v400 = vld [vmem:[%s1 + $0xc20] sm:$0xff]
  %v401 = vld [vmem:[%s1 + $0xc28] sm:$0xff]
  %v402 = vld [vmem:[%s1 + $0xc30] sm:$0xff]
  %v403 = vld [vmem:[%s1 + $0xc38] sm:$0xff]
  %v404 = vld [vmem:[%s1 + $0xc40] sm:$0xff]
  %v405 = vld [vmem:[%s1 + $0xc48] sm:$0xff]
  %v406 = vld [vmem:[%s1 + $0xc50] sm:$0xff]
  %v407 = vld [vmem:[%s1 + $0xc58] sm:$0xff]
  %v408 = vld [vmem:[%s1 + $0xc60] sm:$0xff]
  %v409 = vld [vmem:[%s1 + $0xc68] sm:$0xff]
  %v410 = vld [vmem:[%s1 + $0xc70] sm:$0xff]
  %v411 = vld [vmem:[%s1 + $0xc78] sm:$0xff]
  %v412 = vld [vmem:[%s1 + $0xc80] sm:$0xff]
  %v413 = vld [vmem:[%s1 + $0xc88] sm:$0xff]
  %v414 = vld [vmem:[%s1 + $0xc90] sm:$0xff]
  %v415 = vld [vmem:[%s1 + $0xc98] sm:$0xff]
  %v416 = vld [vmem:[%s1 + $0xca0] sm:$0xff]
  %v417 = vld [vmem:[%s1 + $0xca8] sm:$0xff]
  %v418 = vld [vmem:[%s1 + $0xcb0] sm:$0xff]
  %v419 = vld [vmem:[%s1 + $0xcb8] sm:$0xff]
  %v420 = vld [vmem:[%s1 + $0xcc0] sm:$0xff]
  %v421 = vld [vmem:[%s1 + $0xcc8] sm:$0xff]
  %v422 = vld [vmem:[%s1 + $0xcd0] sm:$0xff]
  %v423 = vld [vmem:[%s1 + $0xcd8] sm:$0xff]
  %v424 = vld [vmem:[%s1 + $0xce0] sm:$0xff]
  %v425 = vld [vmem:[%s1 + $0xce8] sm:$0xff]
  %v426 = vld [vmem:[%s1 + $0xcf0] sm:$0xff]
  %v427 = vld [vmem:[%s1 + $0xcf8] sm:$0xff]
  %v428 = vld [vmem:[%s1 + $0xd00] sm:$0xff]
  %v429 = vld [vmem:[%s1 + $0xd08] sm:$0xff]
  %v430 = vld [vmem:[%s1 + $0xd10] sm:$0xff]
  %v431 = vld [vmem:[%s1 + $0xd18] sm:$0xff]
  %v432 = vld [vmem:[%s1 + $0xd20] sm:$0xff]
  %v433 = vld [vmem:[%s1 + $0xd28] sm:$0xff]
  %v434 = vld [vmem:[%s1 + $0xd30] sm:$0xff]
  %v435 = vld [vmem:[%s1 + $0xd38] sm:$0xff]
  %v436 = vld [vmem:[%s1 + $0xd40] sm:$0xff]
  %v437 = vld [vmem:[%s1 + $0xd48] sm:$0xff]
  %v438 = vld [vmem:[%s1 + $0xd50] sm:$0xff]
  %v439 = vld [vmem:[%s1 + $0xd58] sm:$0xff]
  %v440 = vld [vmem:[%s1 + $0xd60] sm:$0xff]
  %v441 = vld [vmem:[%s1 + $0xd68] sm:$0xff]
  %v442 = vld [vmem:[%s1 + $0xd70] sm:$0xff]
  %v443 = vld [vmem:[%s1 + $0xd78] sm:$0xff]
  %v444 = vld [vmem:[%s1 + $0xd80] sm:$0xff]
  %v445 = vld [vmem:[%s1 + $0xd88] sm:$0xff]
  %v446 = vld [vmem:[%s1 + $0xd90] sm:$0xff]
  %v447 = vld [vmem:[%s1 + $0xd98] sm:$0xff]
  %v448 = vld [vmem:[%s1 + $0xda0] sm:$0xff]
  %v449 = vld [vmem:[%s1 + $0xda8] sm:$0xff]
  %v450 = vld [vmem:[%s1 + $0xdb0] sm:$0xff]
  %v451 = vld [vmem:[%s1 + $0xdb8] sm:$0xff]
  %v452 = vld [vmem:[%s1 + $0xdc0] sm:$0xff]
  %v453 = vld [vmem:[%s1 + $0xdc8] sm:$0xff]
  %v454 = vld [vmem:[%s1 + $0xdd0] sm:$0xff]
  %v455 = vld [vmem:[%s1 + $0xdd8] sm:$0xff]
  %v456 = vld [vmem:[%s1 + $0xde0] sm:$0xff]
  %v457 = vld [vmem:[%s1 + $0xde8] sm:$0xff]
  %v458 = vld [vmem:[%s1 + $0xdf0] sm:$0xff]
  %v459 = vld [vmem:[%s1 + $0xdf8] sm:$0xff]
  %v460 = vld [vmem:[%s1 + $0xe00] sm:$0xff]
  %v461 = vld [vmem:[%s1 + $0xe08] sm:$0xff]
  %v462 = vld [vmem:[%s1 + $0xe10] sm:$0xff]
  %v463 = vld [vmem:[%s1 + $0xe18] sm:$0xff]
  %v464 = vld [vmem:[%s1 + $0xe20] sm:$0xff]
  %v465 = vld [vmem:[%s1 + $0xe28] sm:$0xff]
  %v466 = vld [vmem:[%s1 + $0xe30] sm:$0xff]
  %v467 = vld [vmem:[%s1 + $0xe38] sm:$0xff]
  %v468 = vld [vmem:[%s1 + $0xe40] sm:$0xff]
  %v469 = vld [vmem:[%s1 + $0xe48] sm:$0xff]
  %v470 = vld [vmem:[%s1 + $0xe50] sm:$0xff]
  %v471 = vld [vmem:[%s1 + $0xe58] sm:$0xff]
  %v472 = vld [vmem:[%s1 + $0xe60] sm:$0xff]
  %v473 = vld [vmem:[%s1 + $0xe68] sm:$0xff]
  %v474 = vld [vmem:[%s1 + $0xe70] sm:$0xff]
  %v475 = vld [vmem:[%s1 + $0xe78] sm:$0xff]
  %v476 = vld [vmem:[%s1 + $0xe80] sm:$0xff]
  %v477 = vld [vmem:[%s1 + $0xe88] sm:$0xff]
  %v478 = vld [vmem:[%s1 + $0xe90] sm:$0xff]
  %v479 = vld [vmem:[%s1 + $0xe98] sm:$0xff]
  %v480 = vld [vmem:[%s1 + $0xea0] sm:$0xff]
  %v481 = vld [vmem:[%s1 + $0xea8] sm:$0xff]
  %v482 = vld [vmem:[%s1 + $0xeb0] sm:$0xff]
  %v483 = vld [vmem:[%s1 + $0xeb8] sm:$0xff]
  %v484 = vld [vmem:[%s1 + $0xec0] sm:$0xff]
  %v485 = vld [vmem:[%s1 + $0xec8] sm:$0xff]
  %v486 = vld [vmem:[%s1 + $0xed0] sm:$0xff]
  %v487 = vld [vmem:[%s1 + $0xed8] sm:$0xff]
  %v488 = vld [vmem:[%s1 + $0xee0] sm:$0xff]
  %v489 = vld [vmem:[%s1 + $0xee8] sm:$0xff]
  %v490 = vld [vmem:[%s1 + $0xef0] sm:$0xff]
  %v491 = vld [vmem:[%s1 + $0xef8] sm:$0xff]
  %v492 = vld [vmem:[%s1 + $0xf00] sm:$0xff]
  %v493 = vld [vmem:[%s1 + $0xf08] sm:$0xff]
  %v494 = vld [vmem:[%s1 + $0xf10] sm:$0xff]
  %v495 = vld [vmem:[%s1 + $0xf18] sm:$0xff]
  %v496 = vld [vmem:[%s1 + $0xf20] sm:$0xff]
  %v497 = vld [vmem:[%s1 + $0xf28] sm:$0xff]
  %v498 = vld [vmem:[%s1 + $0xf30] sm:$0xff]
  %v499 = vld [vmem:[%s1 + $0xf38] sm:$0xff]
  %v500 = vld [vmem:[%s1 + $0xf40] sm:$0xff]
  %v501 = vld [vmem:[%s1 + $0xf48] sm:$0xff]
  %v502 = vld [vmem:[%s1 + $0xf50] sm:$0xff]
  %v503 = vld [vmem:[%s1 + $0xf58] sm:$0xff]
  %v504 = vld [vmem:[%s1 + $0xf60] sm:$0xff]
  %v505 = vld [vmem:[%s1 + $0xf68] sm:$0xff]
  %v506 = vld [vmem:[%s1 + $0xf70] sm:$0xff]
  %v507 = vld [vmem:[%s1 + $0xf78] sm:$0xff]
  %v508 = vld [vmem:[%s1 + $0xf80] sm:$0xff]
  %v509 = vld [vmem:[%s1 + $0xf88] sm:$0xff]
  %v510 = vld [vmem:[%s1 + $0xf90] sm:$0xff]
  %v511 = vld [vmem:[%s1 + $0xf98] sm:$0xff]
  %v512 = vld [vmem:[%s1 + $0xfa0] sm:$0xff]
  %v513 = vld [vmem:[%s1 + $0xfa8] sm:$0xff]
  %v514 = vld [vmem:[%s1 + $0xfb0] sm:$0xff]
  %v515 = vld [vmem:[%s1 + $0xfb8] sm:$0xff]
  %v516 = vld [vmem:[%s0] sm:$0xff]
  %v517 = vld [vmem:[%s0 + $0x8] sm:$0xff]
  %v518 = vld [vmem:[%s0 + $0x10] sm:$0xff]
  %v519 = vld [vmem:[%s0 + $0x18] sm:$0xff]
  %v520 = vld [vmem:[%s0 + $0x20] sm:$0xff]
  %v521 = vld [vmem:[%s0 + $0x28] sm:$0xff]
  %v522 = vld [vmem:[%s0 + $0x30] sm:$0xff]
  %v523 = vld [vmem:[%s0 + $0x38] sm:$0xff]
  %v524 = vld [vmem:[%s0 + $0x40] sm:$0xff]
  %v525 = vld [vmem:[%s0 + $0x48] sm:$0xff]
  %v526 = vld [vmem:[%s0 + $0x50] sm:$0xff]
  %v527 = vld [vmem:[%s0 + $0x58] sm:$0xff]
  %v528 = vld [vmem:[%s0 + $0x60] sm:$0xff]
  %v529 = vld [vmem:[%s0 + $0x68] sm:$0xff]
  %v530 = vld [vmem:[%s0 + $0x70] sm:$0xff]
  %v531 = vld [vmem:[%s0 + $0x78] sm:$0xff]
  %v532 = vld [vmem:[%s0 + $0x80] sm:$0xff]
  %v533 = vld [vmem:[%s0 + $0x88] sm:$0xff]
  %v534 = vld [vmem:[%s0 + $0x90] sm:$0xff]
  %v535 = vld [vmem:[%s0 + $0x98] sm:$0xff]
  %v536 = vld [vmem:[%s0 + $0xa0] sm:$0xff]
  %v537 = vld [vmem:[%s0 + $0xa8] sm:$0xff]
  %v538 = vld [vmem:[%s0 + $0xb0] sm:$0xff]
  %v539 = vld [vmem:[%s0 + $0xb8] sm:$0xff]
  %v540 = vld [vmem:[%s0 + $0xc0] sm:$0xff]
  %v541 = vld [vmem:[%s0 + $0xc8] sm:$0xff]
  %v542 = vld [vmem:[%s0 + $0xd0] sm:$0xff]
  %v543 = vld [vmem:[%s0 + $0xd8] sm:$0xff]
  %v544 = vld [vmem:[%s0 + $0xe0] sm:$0xff]
  %v545 = vld [vmem:[%s0 + $0xe8] sm:$0xff]
  %v546 = vld [vmem:[%s0 + $0xf0] sm:$0xff]
  %v547 = vld [vmem:[%s0 + $0xf8] sm:$0xff]
  %v548 = vld [vmem:[%s0 + $0x100] sm:$0xff]
  %v549 = vld [vmem:[%s0 + $0x108] sm:$0xff]
  %v550 = vld [vmem:[%s0 + $0x110] sm:$0xff]
  %v551 = vld [vmem:[%s0 + $0x118] sm:$0xff]
  %v552 = vld [vmem:[%s0 + $0x120] sm:$0xff]
  %v553 = vld [vmem:[%s0 + $0x128] sm:$0xff]
  %v554 = vld [vmem:[%s0 + $0x130] sm:$0xff]
  %v555 = vld [vmem:[%s0 + $0x138] sm:$0xff]
  %v556 = vld [vmem:[%s0 + $0x140] sm:$0xff]
  %v557 = vld [vmem:[%s0 + $0x148] sm:$0xff]
  %v558 = vld [vmem:[%s0 + $0x150] sm:$0xff]
  %v559 = vld [vmem:[%s0 + $0x158] sm:$0xff]
  %v560 = vld [vmem:[%s0 + $0x160] sm:$0xff]
  %v561 = vld [vmem:[%s0 + $0x168] sm:$0xff]
  %v562 = vld [vmem:[%s0 + $0x170] sm:$0xff]
  %v563 = vld [vmem:[%s0 + $0x178] sm:$0xff]
  %v564 = vld [vmem:[%s0 + $0x180] sm:$0xff]
  %v565 = vld [vmem:[%s0 + $0x188] sm:$0xff]
  %v566 = vld [vmem:[%s0 + $0x190] sm:$0xff]
  %v567 = vld [vmem:[%s0 + $0x198] sm:$0xff]
  %v568 = vld [vmem:[%s0 + $0x1a0] sm:$0xff]
  %v569 = vld [vmem:[%s0 + $0x1a8] sm:$0xff]
  %v570 = vld [vmem:[%s0 + $0x1b0] sm:$0xff]
  %v571 = vld [vmem:[%s0 + $0x1b8] sm:$0xff]
  %v572 = vld [vmem:[%s0 + $0x1c0] sm:$0xff]
  %v573 = vld [vmem:[%s0 + $0x1c8] sm:$0xff]
  %v574 = vld [vmem:[%s0 + $0x1d0] sm:$0xff]
  %v575 = vld [vmem:[%s0 + $0x1d8] sm:$0xff]
  %v576 = vld [vmem:[%s0 + $0x1e0] sm:$0xff]
  %v577 = vld [vmem:[%s0 + $0x1e8] sm:$0xff]
  %v578 = vld [vmem:[%s0 + $0x1f0] sm:$0xff]
  %v579 = vld [vmem:[%s0 + $0x1f8] sm:$0xff]
  %v580 = vld [vmem:[%s0 + $0x200] sm:$0xff]
  %v581 = vld [vmem:[%s0 + $0x208] sm:$0xff]
  %v582 = vld [vmem:[%s0 + $0x210] sm:$0xff]
  %v583 = vld [vmem:[%s0 + $0x218] sm:$0xff]
  %v584 = vld [vmem:[%s0 + $0x220] sm:$0xff]
  %v585 = vld [vmem:[%s0 + $0x228] sm:$0xff]
  %v586 = vld [vmem:[%s0 + $0x230] sm:$0xff]
  %v587 = vld [vmem:[%s0 + $0x238] sm:$0xff]
  %v588 = vld [vmem:[%s0 + $0x240] sm:$0xff]
  %v589 = vld [vmem:[%s0 + $0x248] sm:$0xff]
  %v590 = vld [vmem:[%s0 + $0x250] sm:$0xff]
  %v591 = vld [vmem:[%s0 + $0x258] sm:$0xff]
  %v592 = vld [vmem:[%s0 + $0x260] sm:$0xff]
  %v593 = vld [vmem:[%s0 + $0x268] sm:$0xff]
  %v594 = vld [vmem:[%s0 + $0x270] sm:$0xff]
  %v595 = vld [vmem:[%s0 + $0x278] sm:$0xff]
  %v596 = vld [vmem:[%s0 + $0x280] sm:$0xff]
  %v597 = vld [vmem:[%s0 + $0x288] sm:$0xff]
  %v598 = vld [vmem:[%s0 + $0x290] sm:$0xff]
  %v599 = vld [vmem:[%s0 + $0x298] sm:$0xff]
  %v1104 = vunpack.c.l.b16 %v12
  %v1105 = vunpack.c.h.b16 %v12
  %v1106 = vunpack.c.l.b16 %v13
  %v1107 = vunpack.c.h.b16 %v13
  %v1108 = vunpack.c.l.b16 %v14
  %v1109 = vunpack.c.h.b16 %v14
  %v1110 = vunpack.c.l.b16 %v15
  %v1111 = vunpack.c.h.b16 %v15
  %v1112 = vunpack.c.l.b16 %v16
  %v1113 = vunpack.c.h.b16 %v16
  %v1114 = vunpack.c.l.b16 %v17
  %v1115 = vunpack.c.h.b16 %v17
  %v1116 = vunpack.c.l.b16 %v18
  %v1117 = vunpack.c.h.b16 %v18
  %v1118 = vunpack.c.l.b16 %v19
  %v1119 = vunpack.c.h.b16 %v19
  %v1120 = vunpack.c.l.b16 %v20
  %v1121 = vunpack.c.h.b16 %v20
  %v1122 = vunpack.c.l.b16 %v21
  %v1123 = vunpack.c.h.b16 %v21
  %v1124 = vunpack.c.l.b16 %v22
  %v1125 = vunpack.c.h.b16 %v22
  %v1126 = vunpack.c.l.b16 %v23
  %v1127 = vunpack.c.h.b16 %v23
  %v1128 = vunpack.c.l.b16 %v24
  %v1129 = vunpack.c.h.b16 %v24
  %v1130 = vunpack.c.l.b16 %v25
  %v1131 = vunpack.c.h.b16 %v25
  %v1132 = vunpack.c.l.b16 %v26
  %v1133 = vunpack.c.h.b16 %v26
  %v1134 = vunpack.c.l.b16 %v27
  %v1135 = vunpack.c.h.b16 %v27
  %v1136 = vunpack.c.l.b16 %v28
  %v1137 = vunpack.c.h.b16 %v28
  %v1138 = vunpack.c.l.b16 %v29
  %v1139 = vunpack.c.h.b16 %v29
  %v1140 = vunpack.c.l.b16 %v30
  %v1141 = vunpack.c.h.b16 %v30
  %v1142 = vunpack.c.l.b16 %v31
  %v1143 = vunpack.c.h.b16 %v31
  %v1144 = vunpack.c.l.b16 %v32
  %v1145 = vunpack.c.h.b16 %v32
  %v1146 = vunpack.c.l.b16 %v33
  %v1147 = vunpack.c.h.b16 %v33
  %v1148 = vunpack.c.l.b16 %v34
  %v1149 = vunpack.c.h.b16 %v34
  %v1150 = vunpack.c.l.b16 %v35
  %v1151 = vunpack.c.h.b16 %v35
  %v1152 = vunpack.c.l.b16 %v36
  %v1153 = vunpack.c.h.b16 %v36
  %v1154 = vunpack.c.l.b16 %v37
  %v1155 = vunpack.c.h.b16 %v37
  %v1156 = vunpack.c.l.b16 %v38
  %v1157 = vunpack.c.h.b16 %v38
  %v1158 = vunpack.c.l.b16 %v39
  %v1159 = vunpack.c.h.b16 %v39
  %v1160 = vunpack.c.l.b16 %v40
  %v1161 = vunpack.c.h.b16 %v40
  %v1162 = vunpack.c.l.b16 %v41
  %v1163 = vunpack.c.h.b16 %v41
  %v1164 = vunpack.c.l.b16 %v42
  %v1165 = vunpack.c.h.b16 %v42
  %v1166 = vunpack.c.l.b16 %v43
  %v1167 = vunpack.c.h.b16 %v43
  %v1168 = vunpack.c.l.b16 %v44
  %v1169 = vunpack.c.h.b16 %v44
  %v1170 = vunpack.c.l.b16 %v45
  %v1171 = vunpack.c.h.b16 %v45
  %v1172 = vunpack.c.l.b16 %v46
  %v1173 = vunpack.c.h.b16 %v46
  %v1174 = vunpack.c.l.b16 %v47
  %v1175 = vunpack.c.h.b16 %v47
  %v1176 = vunpack.c.l.b16 %v48
  %v1177 = vunpack.c.h.b16 %v48
  %v1178 = vunpack.c.l.b16 %v49
  %v1179 = vunpack.c.h.b16 %v49
  %v1180 = vunpack.c.l.b16 %v50
  %v1181 = vunpack.c.h.b16 %v50
  %v1182 = vunpack.c.l.b16 %v51
  %v1183 = vunpack.c.h.b16 %v51
  %v1184 = vunpack.c.l.b16 %v52
  %v1185 = vunpack.c.h.b16 %v52
  %v1186 = vunpack.c.l.b16 %v53
  %v1187 = vunpack.c.h.b16 %v53
  %v1188 = vunpack.c.l.b16 %v54
  %v1189 = vunpack.c.h.b16 %v54
  %v1190 = vunpack.c.l.b16 %v55
  %v1191 = vunpack.c.h.b16 %v55
  %v1192 = vunpack.c.l.b16 %v56
  %v1193 = vunpack.c.h.b16 %v56
  %v1194 = vunpack.c.l.b16 %v57
  %v1195 = vunpack.c.h.b16 %v57
  %v1196 = vunpack.c.l.b16 %v58
  %v1197 = vunpack.c.h.b16 %v58
  %v1198 = vunpack.c.l.b16 %v59
  %v1199 = vunpack.c.h.b16 %v59
  %v1200 = vunpack.c.l.b16 %v60
  %v1201 = vunpack.c.h.b16 %v60
  %v1202 = vunpack.c.l.b16 %v61
  %v1203 = vunpack.c.h.b16 %v61
  %v1204 = vunpack.c.l.b16 %v62
  %v1205 = vunpack.c.h.b16 %v62
  %v1206 = vunpack.c.l.b16 %v63
  %v1207 = vunpack.c.h.b16 %v63
  %v1208 = vunpack.c.l.b16 %v64
  %v1209 = vunpack.c.h.b16 %v64
  %v1210 = vunpack.c.l.b16 %v65
  %v1211 = vunpack.c.h.b16 %v65
  %v1212 = vunpack.c.l.b16 %v66
  %v1213 = vunpack.c.h.b16 %v66
  %v1214 = vunpack.c.l.b16 %v67
  %v1215 = vunpack.c.h.b16 %v67
  %v1216 = vunpack.c.l.b16 %v68
  %v1217 = vunpack.c.h.b16 %v68
  %v1218 = vunpack.c.l.b16 %v69
  %v1219 = vunpack.c.h.b16 %v69
  %v1220 = vunpack.c.l.b16 %v70
  %v1221 = vunpack.c.h.b16 %v70
  %v1222 = vunpack.c.l.b16 %v71
  %v1223 = vunpack.c.h.b16 %v71
  %v1224 = vunpack.c.l.b16 %v72
  %v1225 = vunpack.c.h.b16 %v72
  %v1226 = vunpack.c.l.b16 %v73
  %v1227 = vunpack.c.h.b16 %v73
  %v1228 = vunpack.c.l.b16 %v74
  %v1229 = vunpack.c.h.b16 %v74
  %v1230 = vunpack.c.l.b16 %v75
  %v1231 = vunpack.c.h.b16 %v75
  %v1232 = vunpack.c.l.b16 %v76
  %v1233 = vunpack.c.h.b16 %v76
  %v1234 = vunpack.c.l.b16 %v77
  %v1235 = vunpack.c.h.b16 %v77
  %v1236 = vunpack.c.l.b16 %v78
  %v1237 = vunpack.c.h.b16 %v78
  %v1238 = vunpack.c.l.b16 %v79
  %v1239 = vunpack.c.h.b16 %v79
  %v1240 = vunpack.c.l.b16 %v80
  %v1241 = vunpack.c.h.b16 %v80
  %v1242 = vunpack.c.l.b16 %v81
  %v1243 = vunpack.c.h.b16 %v81
  %v1244 = vunpack.c.l.b16 %v82
  %v1245 = vunpack.c.h.b16 %v82
  %v1246 = vunpack.c.l.b16 %v83
  %v1247 = vunpack.c.h.b16 %v83
  %v1248 = vunpack.c.l.b16 %v84
  %v1249 = vunpack.c.h.b16 %v84
  %v1250 = vunpack.c.l.b16 %v85
  %v1251 = vunpack.c.h.b16 %v85
  %v1252 = vunpack.c.l.b16 %v86
  %v1253 = vunpack.c.h.b16 %v86
  %v1254 = vunpack.c.l.b16 %v87
  %v1255 = vunpack.c.h.b16 %v87
  %v1256 = vunpack.c.l.b16 %v88
  %v1257 = vunpack.c.h.b16 %v88
  %v1258 = vunpack.c.l.b16 %v89
  %v1259 = vunpack.c.h.b16 %v89
  %v1260 = vunpack.c.l.b16 %v90
  %v1261 = vunpack.c.h.b16 %v90
  %v1262 = vunpack.c.l.b16 %v91
  %v1263 = vunpack.c.h.b16 %v91
  %v1264 = vunpack.c.l.b16 %v92
  %v1265 = vunpack.c.h.b16 %v92
  %v1266 = vunpack.c.l.b16 %v93
  %v1267 = vunpack.c.h.b16 %v93
  %v1268 = vunpack.c.l.b16 %v94
  %v1269 = vunpack.c.h.b16 %v94
  %v1270 = vunpack.c.l.b16 %v95
  %v1271 = vunpack.c.h.b16 %v95
  %v1272 = vunpack.c.l.b16 %v96
  %v1273 = vunpack.c.h.b16 %v96
  %v1274 = vunpack.c.l.b16 %v97
  %v1275 = vunpack.c.h.b16 %v97
  %v1276 = vunpack.c.l.b16 %v98
  %v1277 = vunpack.c.h.b16 %v98
  %v1278 = vunpack.c.l.b16 %v99
  %v1279 = vunpack.c.h.b16 %v99
  %v1280 = vunpack.c.l.b16 %v100
  %v1281 = vunpack.c.h.b16 %v100
  %v1282 = vunpack.c.l.b16 %v101
  %v1283 = vunpack.c.h.b16 %v101
  %v1284 = vunpack.c.l.b16 %v102
  %v1285 = vunpack.c.h.b16 %v102
  %v1286 = vunpack.c.l.b16 %v103
  %v1287 = vunpack.c.h.b16 %v103
  %v1288 = vunpack.c.l.b16 %v104
  %v1289 = vunpack.c.h.b16 %v104
  %v1290 = vunpack.c.l.b16 %v105
  %v1291 = vunpack.c.h.b16 %v105
  %v1292 = vunpack.c.l.b16 %v106
  %v1293 = vunpack.c.h.b16 %v106
  %v1294 = vunpack.c.l.b16 %v107
  %v1295 = vunpack.c.h.b16 %v107
  %v1296 = vunpack.c.l.b16 %v108
  %v1297 = vunpack.c.h.b16 %v108
  %v1298 = vunpack.c.l.b16 %v109
  %v1299 = vunpack.c.h.b16 %v109
  %v1300 = vunpack.c.l.b16 %v110
  %v1301 = vunpack.c.h.b16 %v110
  %v1302 = vunpack.c.l.b16 %v111
  %v1303 = vunpack.c.h.b16 %v111
  %v1304 = vunpack.c.l.b16 %v112
  %v1305 = vunpack.c.h.b16 %v112
  %v1306 = vunpack.c.l.b16 %v113
  %v1307 = vunpack.c.h.b16 %v113
  %v1308 = vunpack.c.l.b16 %v114
  %v1309 = vunpack.c.h.b16 %v114
  %v1310 = vunpack.c.l.b16 %v115
  %v1311 = vunpack.c.h.b16 %v115
  %v1312 = vunpack.c.l.b16 %v116
  %v1313 = vunpack.c.h.b16 %v116
  %v1314 = vunpack.c.l.b16 %v117
  %v1315 = vunpack.c.h.b16 %v117
  %v1316 = vunpack.c.l.b16 %v118
  %v1317 = vunpack.c.h.b16 %v118
  %v1318 = vunpack.c.l.b16 %v119
  %v1319 = vunpack.c.h.b16 %v119
  %v1320 = vunpack.c.l.b16 %v120
  %v1321 = vunpack.c.h.b16 %v120
  %v1322 = vunpack.c.l.b16 %v121
  %v1323 = vunpack.c.h.b16 %v121
  %v1324 = vunpack.c.l.b16 %v122
  %v1325 = vunpack.c.h.b16 %v122
  %v1326 = vunpack.c.l.b16 %v123
  %v1327 = vunpack.c.h.b16 %v123
  %v1328 = vunpack.c.l.b16 %v124
  %v1329 = vunpack.c.h.b16 %v124
  %v1330 = vunpack.c.l.b16 %v125
  %v1331 = vunpack.c.h.b16 %v125
  %v1332 = vunpack.c.l.b16 %v126
  %v1333 = vunpack.c.h.b16 %v126
  %v1334 = vunpack.c.l.b16 %v127
  %v1335 = vunpack.c.h.b16 %v127
  %v1336 = vunpack.c.l.b16 %v128
  %v1337 = vunpack.c.h.b16 %v128
  %v1338 = vunpack.c.l.b16 %v129
  %v1339 = vunpack.c.h.b16 %v129
  %v1340 = vunpack.c.l.b16 %v130
  %v1341 = vunpack.c.h.b16 %v130
  %v1342 = vunpack.c.l.b16 %v131
  %v1343 = vunpack.c.h.b16 %v131
  %v1344 = vunpack.c.l.b16 %v132
  %v1345 = vunpack.c.h.b16 %v132
  %v1346 = vunpack.c.l.b16 %v133
  %v1347 = vunpack.c.h.b16 %v133
  %v1348 = vunpack.c.l.b16 %v134
  %v1349 = vunpack.c.h.b16 %v134
  %v1350 = vunpack.c.l.b16 %v135
  %v1351 = vunpack.c.h.b16 %v135
  %v1352 = vunpack.c.l.b16 %v136
  %v1353 = vunpack.c.h.b16 %v136
  %v1354 = vunpack.c.l.b16 %v137
  %v1355 = vunpack.c.h.b16 %v137
  %v1356 = vunpack.c.l.b16 %v138
  %v1357 = vunpack.c.h.b16 %v138
  %v1358 = vunpack.c.l.b16 %v139
  %v1359 = vunpack.c.h.b16 %v139
  %v1360 = vunpack.c.l.b16 %v140
  %v1361 = vunpack.c.h.b16 %v140
  %v1362 = vunpack.c.l.b16 %v141
  %v1363 = vunpack.c.h.b16 %v141
  %v1364 = vunpack.c.l.b16 %v142
  %v1365 = vunpack.c.h.b16 %v142
  %v1366 = vunpack.c.l.b16 %v143
  %v1367 = vunpack.c.h.b16 %v143
  %v1368 = vunpack.c.l.b16 %v144
  %v1369 = vunpack.c.h.b16 %v144
  %v1370 = vunpack.c.l.b16 %v145
  %v1371 = vunpack.c.h.b16 %v145
  %v1372 = vunpack.c.l.b16 %v146
  %v1373 = vunpack.c.h.b16 %v146
  %v1374 = vunpack.c.l.b16 %v147
  %v1375 = vunpack.c.h.b16 %v147
  %v1376 = vunpack.c.l.b16 %v148
  %v1377 = vunpack.c.h.b16 %v148
  %v1378 = vunpack.c.l.b16 %v149
  %v1379 = vunpack.c.h.b16 %v149
  %v1380 = vunpack.c.l.b16 %v150
  %v1381 = vunpack.c.h.b16 %v150
  %v1382 = vunpack.c.l.b16 %v151
  %v1383 = vunpack.c.h.b16 %v151
  %v1384 = vunpack.c.l.b16 %v152
  %v1385 = vunpack.c.h.b16 %v152
  %v1386 = vunpack.c.l.b16 %v153
  %v1387 = vunpack.c.h.b16 %v153
  %v1388 = vunpack.c.l.b16 %v154
  %v1389 = vunpack.c.h.b16 %v154
  %v1390 = vunpack.c.l.b16 %v155
  %v1391 = vunpack.c.h.b16 %v155
  %v1392 = vunpack.c.l.b16 %v156
  %v1393 = vunpack.c.h.b16 %v156
  %v1394 = vunpack.c.l.b16 %v157
  %v1395 = vunpack.c.h.b16 %v157
  %v1396 = vunpack.c.l.b16 %v158
  %v1397 = vunpack.c.h.b16 %v158
  %v1398 = vunpack.c.l.b16 %v159
  %v1399 = vunpack.c.h.b16 %v159
  %v1400 = vunpack.c.l.b16 %v160
  %v1401 = vunpack.c.h.b16 %v160
  %v1402 = vunpack.c.l.b16 %v161
  %v1403 = vunpack.c.h.b16 %v161
  %v1404 = vunpack.c.l.b16 %v162
  %v1405 = vunpack.c.h.b16 %v162
  %v1406 = vunpack.c.l.b16 %v163
  %v1407 = vunpack.c.h.b16 %v163
  %v1408 = vunpack.c.l.b16 %v164
  %v1409 = vunpack.c.h.b16 %v164
  %v1410 = vunpack.c.l.b16 %v165
  %v1411 = vunpack.c.h.b16 %v165
  %v1412 = vunpack.c.l.b16 %v166
  %v1413 = vunpack.c.h.b16 %v166
  %v1414 = vunpack.c.l.b16 %v167
  %v1415 = vunpack.c.h.b16 %v167
  %v1416 = vunpack.c.l.b16 %v168
  %v1417 = vunpack.c.h.b16 %v168
  %v1418 = vunpack.c.l.b16 %v169
  %v1419 = vunpack.c.h.b16 %v169
  %v1420 = vunpack.c.l.b16 %v170
  %v1421 = vunpack.c.h.b16 %v170
  %v1422 = vunpack.c.l.b16 %v171
  %v1423 = vunpack.c.h.b16 %v171
  %v1424 = vunpack.c.l.b16 %v172
  %v1425 = vunpack.c.h.b16 %v172
  %v1426 = vunpack.c.l.b16 %v173
  %v1427 = vunpack.c.h.b16 %v173
  %v1428 = vunpack.c.l.b16 %v174
  %v1429 = vunpack.c.h.b16 %v174
  %v1430 = vunpack.c.l.b16 %v175
  %v1431 = vunpack.c.h.b16 %v175
  %v1432 = vunpack.c.l.b16 %v176
  %v1433 = vunpack.c.h.b16 %v176
  %v1434 = vunpack.c.l.b16 %v177
  %v1435 = vunpack.c.h.b16 %v177
  %v1436 = vunpack.c.l.b16 %v178
  %v1437 = vunpack.c.h.b16 %v178
  %v1438 = vunpack.c.l.b16 %v179
  %v1439 = vunpack.c.h.b16 %v179
  %v1440 = vunpack.c.l.b16 %v180
  %v1441 = vunpack.c.h.b16 %v180
  %v1442 = vunpack.c.l.b16 %v181
  %v1443 = vunpack.c.h.b16 %v181
  %v1444 = vunpack.c.l.b16 %v182
  %v1445 = vunpack.c.h.b16 %v182
  %v1446 = vunpack.c.l.b16 %v183
  %v1447 = vunpack.c.h.b16 %v183
  %v1448 = vunpack.c.l.b16 %v184
  %v1449 = vunpack.c.h.b16 %v184
  %v1450 = vunpack.c.l.b16 %v185
  %v1451 = vunpack.c.h.b16 %v185
  %v1452 = vunpack.c.l.b16 %v186
  %v1453 = vunpack.c.h.b16 %v186
  %v1454 = vunpack.c.l.b16 %v187
  %v1455 = vunpack.c.h.b16 %v187
  %v1456 = vunpack.c.l.b16 %v188
  %v1457 = vunpack.c.h.b16 %v188
  %v1458 = vunpack.c.l.b16 %v189
  %v1459 = vunpack.c.h.b16 %v189
  %v1460 = vunpack.c.l.b16 %v190
  %v1461 = vunpack.c.h.b16 %v190
  %v1462 = vunpack.c.l.b16 %v191
  %v1463 = vunpack.c.h.b16 %v191
  %v1464 = vunpack.c.l.b16 %v192
  %v1465 = vunpack.c.h.b16 %v192
  %v1466 = vunpack.c.l.b16 %v193
  %v1467 = vunpack.c.h.b16 %v193
  %v1468 = vunpack.c.l.b16 %v194
  %v1469 = vunpack.c.h.b16 %v194
  %v1470 = vunpack.c.l.b16 %v195
  %v1471 = vunpack.c.h.b16 %v195
  %v1472 = vunpack.c.l.b16 %v196
  %v1473 = vunpack.c.h.b16 %v196
  %v1474 = vunpack.c.l.b16 %v197
  %v1475 = vunpack.c.h.b16 %v197
  %v1476 = vunpack.c.l.b16 %v198
  %v1477 = vunpack.c.h.b16 %v198
  %v1478 = vunpack.c.l.b16 %v199
  %v1479 = vunpack.c.h.b16 %v199
  %v1480 = vunpack.c.l.b16 %v200
  %v1481 = vunpack.c.h.b16 %v200
  %v1482 = vunpack.c.l.b16 %v201
  %v1483 = vunpack.c.h.b16 %v201
  %v1484 = vunpack.c.l.b16 %v202
  %v1485 = vunpack.c.h.b16 %v202
  %v1486 = vunpack.c.l.b16 %v203
  %v1487 = vunpack.c.h.b16 %v203
  %v1488 = vunpack.c.l.b16 %v204
  %v1489 = vunpack.c.h.b16 %v204
  %v1490 = vunpack.c.l.b16 %v205
  %v1491 = vunpack.c.h.b16 %v205
  %v1492 = vunpack.c.l.b16 %v206
  %v1493 = vunpack.c.h.b16 %v206
  %v1494 = vunpack.c.l.b16 %v207
  %v1495 = vunpack.c.h.b16 %v207
  %v1496 = vunpack.c.l.b16 %v208
  %v1497 = vunpack.c.h.b16 %v208
  %v1498 = vunpack.c.l.b16 %v209
  %v1499 = vunpack.c.h.b16 %v209
  %v1500 = vunpack.c.l.b16 %v210
  %v1501 = vunpack.c.h.b16 %v210
  %v1502 = vunpack.c.l.b16 %v211
  %v1503 = vunpack.c.h.b16 %v211
  %v1504 = vunpack.c.l.b16 %v212
  %v1505 = vunpack.c.h.b16 %v212
  %v1506 = vunpack.c.l.b16 %v213
  %v1507 = vunpack.c.h.b16 %v213
  %v1508 = vunpack.c.l.b16 %v214
  %v1509 = vunpack.c.h.b16 %v214
  %v1510 = vunpack.c.l.b16 %v215
  %v1511 = vunpack.c.h.b16 %v215
  %v1512 = vunpack.c.l.b16 %v216
  %v1513 = vunpack.c.h.b16 %v216
  %v1514 = vunpack.c.l.b16 %v217
  %v1515 = vunpack.c.h.b16 %v217
  %v1516 = vunpack.c.l.b16 %v218
  %v1517 = vunpack.c.h.b16 %v218
  %v1518 = vunpack.c.l.b16 %v219
  %v1519 = vunpack.c.h.b16 %v219
  %v1520 = vunpack.c.l.b16 %v220
  %v1521 = vunpack.c.h.b16 %v220
  %v1522 = vunpack.c.l.b16 %v221
  %v1523 = vunpack.c.h.b16 %v221
  %v1524 = vunpack.c.l.b16 %v222
  %v1525 = vunpack.c.h.b16 %v222
  %v1526 = vunpack.c.l.b16 %v223
  %v1527 = vunpack.c.h.b16 %v223
  %v1528 = vunpack.c.l.b16 %v224
  %v1529 = vunpack.c.h.b16 %v224
  %v1530 = vunpack.c.l.b16 %v225
  %v1531 = vunpack.c.h.b16 %v225
  %v1532 = vunpack.c.l.b16 %v226
  %v1533 = vunpack.c.h.b16 %v226
  %v1534 = vunpack.c.l.b16 %v227
  %v1535 = vunpack.c.h.b16 %v227
  %v1536 = vunpack.c.l.b16 %v228
  %v1537 = vunpack.c.h.b16 %v228
  %v1538 = vunpack.c.l.b16 %v229
  %v1539 = vunpack.c.h.b16 %v229
  %v1540 = vunpack.c.l.b16 %v230
  %v1541 = vunpack.c.h.b16 %v230
  %v1542 = vunpack.c.l.b16 %v231
  %v1543 = vunpack.c.h.b16 %v231
  %v1544 = vunpack.c.l.b16 %v232
  %v1545 = vunpack.c.h.b16 %v232
  %v1546 = vunpack.c.l.b16 %v233
  %v1547 = vunpack.c.h.b16 %v233
  %v1548 = vunpack.c.l.b16 %v234
  %v1549 = vunpack.c.h.b16 %v234
  %v1550 = vunpack.c.l.b16 %v235
  %v1551 = vunpack.c.h.b16 %v235
  %v1552 = vunpack.c.l.b16 %v236
  %v1553 = vunpack.c.h.b16 %v236
  %v1554 = vunpack.c.l.b16 %v237
  %v1555 = vunpack.c.h.b16 %v237
  %v1556 = vunpack.c.l.b16 %v238
  %v1557 = vunpack.c.h.b16 %v238
  %v1558 = vunpack.c.l.b16 %v239
  %v1559 = vunpack.c.h.b16 %v239
  %v1560 = vunpack.c.l.b16 %v240
  %v1561 = vunpack.c.h.b16 %v240
  %v1562 = vunpack.c.l.b16 %v241
  %v1563 = vunpack.c.h.b16 %v241
  %v1564 = vunpack.c.l.b16 %v242
  %v1565 = vunpack.c.h.b16 %v242
  %v1566 = vunpack.c.l.b16 %v243
  %v1567 = vunpack.c.h.b16 %v243
  %v1568 = vunpack.c.l.b16 %v244
  %v1569 = vunpack.c.h.b16 %v244
  %v1570 = vunpack.c.l.b16 %v245
  %v1571 = vunpack.c.h.b16 %v245
  %v1572 = vunpack.c.l.b16 %v246
  %v1573 = vunpack.c.h.b16 %v246
  %v1574 = vunpack.c.l.b16 %v247
  %v1575 = vunpack.c.h.b16 %v247
  %v1576 = vunpack.c.l.b16 %v248
  %v1577 = vunpack.c.h.b16 %v248
  %v1578 = vunpack.c.l.b16 %v249
  %v1579 = vunpack.c.h.b16 %v249
  %v1580 = vunpack.c.l.b16 %v250
  %v1581 = vunpack.c.h.b16 %v250
  %v1582 = vunpack.c.l.b16 %v251
  %v1583 = vunpack.c.h.b16 %v251
  %v1584 = vunpack.c.l.b16 %v252
  %v1585 = vunpack.c.h.b16 %v252
  %v1586 = vunpack.c.l.b16 %v253
  %v1587 = vunpack.c.h.b16 %v253
  %v1588 = vunpack.c.l.b16 %v254
  %v1589 = vunpack.c.h.b16 %v254
  %v1590 = vunpack.c.l.b16 %v255
  %v1591 = vunpack.c.h.b16 %v255
  %v1592 = vunpack.c.l.b16 %v256
  %v1593 = vunpack.c.h.b16 %v256
  %v1594 = vunpack.c.l.b16 %v257
  %v1595 = vunpack.c.h.b16 %v257
  %v1596 = vunpack.c.l.b16 %v258
  %v1597 = vunpack.c.h.b16 %v258
  %v1598 = vunpack.c.l.b16 %v259
  %v1599 = vunpack.c.h.b16 %v259
  %v1600 = vunpack.c.l.b16 %v260
  %v1601 = vunpack.c.h.b16 %v260
  %v1602 = vunpack.c.l.b16 %v261
  %v1603 = vunpack.c.h.b16 %v261
  %v1604 = vunpack.c.l.b16 %v262
  %v1605 = vunpack.c.h.b16 %v262
  %v1606 = vunpack.c.l.b16 %v263
  %v1607 = vunpack.c.h.b16 %v263
  %v1608 = vunpack.c.l.b16 %v264
  %v1609 = vunpack.c.h.b16 %v264
  %v1610 = vunpack.c.l.b16 %v265
  %v1611 = vunpack.c.h.b16 %v265
  %v1612 = vunpack.c.l.b16 %v266
  %v1613 = vunpack.c.h.b16 %v266
  %v1614 = vunpack.c.l.b16 %v267
  %v1615 = vunpack.c.h.b16 %v267
  %v1616 = vunpack.c.l.b16 %v268
  %v1617 = vunpack.c.h.b16 %v268
  %v1618 = vunpack.c.l.b16 %v269
  %v1619 = vunpack.c.h.b16 %v269
  %v1620 = vunpack.c.l.b16 %v270
  %v1621 = vunpack.c.h.b16 %v270
  %v1622 = vunpack.c.l.b16 %v271
  %v1623 = vunpack.c.h.b16 %v271
  %v1624 = vunpack.c.l.b16 %v272
  %v1625 = vunpack.c.h.b16 %v272
  %v1626 = vunpack.c.l.b16 %v273
  %v1627 = vunpack.c.h.b16 %v273
  %v1628 = vunpack.c.l.b16 %v274
  %v1629 = vunpack.c.h.b16 %v274
  %v1630 = vunpack.c.l.b16 %v275
  %v1631 = vunpack.c.h.b16 %v275
  %v1632 = vunpack.c.l.b16 %v276
  %v1633 = vunpack.c.h.b16 %v276
  %v1634 = vunpack.c.l.b16 %v277
  %v1635 = vunpack.c.h.b16 %v277
  %v1636 = vunpack.c.l.b16 %v278
  %v1637 = vunpack.c.h.b16 %v278
  %v1638 = vunpack.c.l.b16 %v279
  %v1639 = vunpack.c.h.b16 %v279
  %v1640 = vunpack.c.l.b16 %v280
  %v1641 = vunpack.c.h.b16 %v280
  %v1642 = vunpack.c.l.b16 %v281
  %v1643 = vunpack.c.h.b16 %v281
  %v1644 = vunpack.c.l.b16 %v282
  %v1645 = vunpack.c.h.b16 %v282
  %v1646 = vunpack.c.l.b16 %v283
  %v1647 = vunpack.c.h.b16 %v283
  %v1648 = vunpack.c.l.b16 %v284
  %v1649 = vunpack.c.h.b16 %v284
  %v1650 = vunpack.c.l.b16 %v285
  %v1651 = vunpack.c.h.b16 %v285
  %v1652 = vunpack.c.l.b16 %v286
  %v1653 = vunpack.c.h.b16 %v286
  %v1654 = vunpack.c.l.b16 %v287
  %v1655 = vunpack.c.h.b16 %v287
  %v1656 = vunpack.c.l.b16 %v288
  %v1657 = vunpack.c.h.b16 %v288
  %v1658 = vunpack.c.l.b16 %v289
  %v1659 = vunpack.c.h.b16 %v289
  %v1660 = vunpack.c.l.b16 %v290
  %v1661 = vunpack.c.h.b16 %v290
  %v1662 = vunpack.c.l.b16 %v291
  %v1663 = vunpack.c.h.b16 %v291
  %v1664 = vunpack.c.l.b16 %v292
  %v1665 = vunpack.c.h.b16 %v292
  %v1666 = vunpack.c.l.b16 %v293
  %v1667 = vunpack.c.h.b16 %v293
  %v1668 = vunpack.c.l.b16 %v294
  %v1669 = vunpack.c.h.b16 %v294
  %v1670 = vunpack.c.l.b16 %v295
  %v1671 = vunpack.c.h.b16 %v295
  %v1672 = vunpack.c.l.b16 %v296
  %v1673 = vunpack.c.h.b16 %v296
  %v1674 = vunpack.c.l.b16 %v297
  %v1675 = vunpack.c.h.b16 %v297
  %v1676 = vunpack.c.l.b16 %v298
  %v1677 = vunpack.c.h.b16 %v298
  %v1678 = vunpack.c.l.b16 %v299
  %v1679 = vunpack.c.h.b16 %v299
  %v1680 = vunpack.c.l.b16 %v300
  %v1681 = vunpack.c.h.b16 %v300
  %v1682 = vunpack.c.l.b16 %v301
  %v1683 = vunpack.c.h.b16 %v301
  %v1684 = vunpack.c.l.b16 %v302
  %v1685 = vunpack.c.h.b16 %v302
  %v1686 = vunpack.c.l.b16 %v303
  %v1687 = vunpack.c.h.b16 %v303
  %v1688 = vunpack.c.l.b16 %v304
  %v1689 = vunpack.c.h.b16 %v304
  %v1690 = vunpack.c.l.b16 %v305
  %v1691 = vunpack.c.h.b16 %v305
  %v1692 = vunpack.c.l.b16 %v306
  %v1693 = vunpack.c.h.b16 %v306
  %v1694 = vunpack.c.l.b16 %v307
  %v1695 = vunpack.c.h.b16 %v307
  %v1696 = vunpack.c.l.b16 %v308
  %v1697 = vunpack.c.h.b16 %v308
  %v1698 = vunpack.c.l.b16 %v309
  %v1699 = vunpack.c.h.b16 %v309
  %v1700 = vunpack.c.l.b16 %v310
  %v1701 = vunpack.c.h.b16 %v310
  %v1702 = vunpack.c.l.b16 %v311
  %v1703 = vunpack.c.h.b16 %v311
  %v1704 = vunpack.c.l.b16 %v312
  %v1705 = vunpack.c.h.b16 %v312
  %v1706 = vunpack.c.l.b16 %v313
  %v1707 = vunpack.c.h.b16 %v313
  %v1708 = vunpack.c.l.b16 %v314
  %v1709 = vunpack.c.h.b16 %v314
  %v1710 = vunpack.c.l.b16 %v315
  %v1711 = vunpack.c.h.b16 %v315
  %v1712 = vunpack.c.l.b16 %v316
  %v1713 = vunpack.c.h.b16 %v316
  %v1714 = vunpack.c.l.b16 %v317
  %v1715 = vunpack.c.h.b16 %v317
  %v1716 = vunpack.c.l.b16 %v318
  %v1717 = vunpack.c.h.b16 %v318
  %v1718 = vunpack.c.l.b16 %v319
  %v1719 = vunpack.c.h.b16 %v319
  %v1720 = vunpack.c.l.b16 %v320
  %v1721 = vunpack.c.h.b16 %v320
  %v1722 = vunpack.c.l.b16 %v321
  %v1723 = vunpack.c.h.b16 %v321
  %v1724 = vunpack.c.l.b16 %v322
  %v1725 = vunpack.c.h.b16 %v322
  %v1726 = vunpack.c.l.b16 %v323
  %v1727 = vunpack.c.h.b16 %v323
  %v1728 = vunpack.c.l.b16 %v324
  %v1729 = vunpack.c.h.b16 %v324
  %v1730 = vunpack.c.l.b16 %v325
  %v1731 = vunpack.c.h.b16 %v325
  %v1732 = vunpack.c.l.b16 %v326
  %v1733 = vunpack.c.h.b16 %v326
  %v1734 = vunpack.c.l.b16 %v327
  %v1735 = vunpack.c.h.b16 %v327
  %v1736 = vunpack.c.l.b16 %v328
  %v1737 = vunpack.c.h.b16 %v328
  %v1738 = vunpack.c.l.b16 %v329
  %v1739 = vunpack.c.h.b16 %v329
  %v1740 = vunpack.c.l.b16 %v330
  %v1741 = vunpack.c.h.b16 %v330
  %v1742 = vunpack.c.l.b16 %v331
  %v1743 = vunpack.c.h.b16 %v331
  %v1744 = vunpack.c.l.b16 %v332
  %v1745 = vunpack.c.h.b16 %v332
  %v1746 = vunpack.c.l.b16 %v333
  %v1747 = vunpack.c.h.b16 %v333
  %v1748 = vunpack.c.l.b16 %v334
  %v1749 = vunpack.c.h.b16 %v334
  %v1750 = vunpack.c.l.b16 %v335
  %v1751 = vunpack.c.h.b16 %v335
  %v1752 = vunpack.c.l.b16 %v336
  %v1753 = vunpack.c.h.b16 %v336
  %v1754 = vunpack.c.l.b16 %v337
  %v1755 = vunpack.c.h.b16 %v337
  %v1756 = vunpack.c.l.b16 %v338
  %v1757 = vunpack.c.h.b16 %v338
  %v1758 = vunpack.c.l.b16 %v339
  %v1759 = vunpack.c.h.b16 %v339
  %v1760 = vunpack.c.l.b16 %v340
  %v1761 = vunpack.c.h.b16 %v340
  %v1762 = vunpack.c.l.b16 %v341
  %v1763 = vunpack.c.h.b16 %v341
  %v1764 = vunpack.c.l.b16 %v342
  %v1765 = vunpack.c.h.b16 %v342
  %v1766 = vunpack.c.l.b16 %v343
  %v1767 = vunpack.c.h.b16 %v343
  %v1768 = vunpack.c.l.b16 %v344
  %v1769 = vunpack.c.h.b16 %v344
  %v1770 = vunpack.c.l.b16 %v345
  %v1771 = vunpack.c.h.b16 %v345
  %v1772 = vunpack.c.l.b16 %v346
  %v1773 = vunpack.c.h.b16 %v346
  %v1774 = vunpack.c.l.b16 %v347
  %v1775 = vunpack.c.h.b16 %v347
  %v1776 = vunpack.c.l.b16 %v348
  %v1777 = vunpack.c.h.b16 %v348
  %v1778 = vunpack.c.l.b16 %v349
  %v1779 = vunpack.c.h.b16 %v349
  %v1780 = vunpack.c.l.b16 %v350
  %v1781 = vunpack.c.h.b16 %v350
  %v1782 = vunpack.c.l.b16 %v351
  %v1783 = vunpack.c.h.b16 %v351
  %v1784 = vunpack.c.l.b16 %v352
  %v1785 = vunpack.c.h.b16 %v352
  %v1786 = vunpack.c.l.b16 %v353
  %v1787 = vunpack.c.h.b16 %v353
  %v1788 = vunpack.c.l.b16 %v354
  %v1789 = vunpack.c.h.b16 %v354
  %v1790 = vunpack.c.l.b16 %v355
  %v1791 = vunpack.c.h.b16 %v355
  %v1792 = vunpack.c.l.b16 %v356
  %v1793 = vunpack.c.h.b16 %v356
  %v1794 = vunpack.c.l.b16 %v357
  %v1795 = vunpack.c.h.b16 %v357
  %v1796 = vunpack.c.l.b16 %v358
  %v1797 = vunpack.c.h.b16 %v358
  %v1798 = vunpack.c.l.b16 %v359
  %v1799 = vunpack.c.h.b16 %v359
  %v1800 = vunpack.c.l.b16 %v360
  %v1801 = vunpack.c.h.b16 %v360
  %v1802 = vunpack.c.l.b16 %v361
  %v1803 = vunpack.c.h.b16 %v361
  %v1804 = vunpack.c.l.b16 %v362
  %v1805 = vunpack.c.h.b16 %v362
  %v1806 = vunpack.c.l.b16 %v363
  %v1807 = vunpack.c.h.b16 %v363
  %v1808 = vunpack.c.l.b16 %v364
  %v1809 = vunpack.c.h.b16 %v364
  %v1810 = vunpack.c.l.b16 %v365
  %v1811 = vunpack.c.h.b16 %v365
  %v1812 = vunpack.c.l.b16 %v366
  %v1813 = vunpack.c.h.b16 %v366
  %v1814 = vunpack.c.l.b16 %v367
  %v1815 = vunpack.c.h.b16 %v367
  %v1816 = vunpack.c.l.b16 %v368
  %v1817 = vunpack.c.h.b16 %v368
  %v1818 = vunpack.c.l.b16 %v369
  %v1819 = vunpack.c.h.b16 %v369
  %v1820 = vunpack.c.l.b16 %v370
  %v1821 = vunpack.c.h.b16 %v370
  %v1822 = vunpack.c.l.b16 %v371
  %v1823 = vunpack.c.h.b16 %v371
  %v1824 = vunpack.c.l.b16 %v372
  %v1825 = vunpack.c.h.b16 %v372
  %v1826 = vunpack.c.l.b16 %v373
  %v1827 = vunpack.c.h.b16 %v373
  %v1828 = vunpack.c.l.b16 %v374
  %v1829 = vunpack.c.h.b16 %v374
  %v1830 = vunpack.c.l.b16 %v375
  %v1831 = vunpack.c.h.b16 %v375
  %v1832 = vunpack.c.l.b16 %v376
  %v1833 = vunpack.c.h.b16 %v376
  %v1834 = vunpack.c.l.b16 %v377
  %v1835 = vunpack.c.h.b16 %v377
  %v1836 = vunpack.c.l.b16 %v378
  %v1837 = vunpack.c.h.b16 %v378
  %v1838 = vunpack.c.l.b16 %v379
  %v1839 = vunpack.c.h.b16 %v379
  %v1840 = vunpack.c.l.b16 %v380
  %v1841 = vunpack.c.h.b16 %v380
  %v1842 = vunpack.c.l.b16 %v381
  %v1843 = vunpack.c.h.b16 %v381
  %v1844 = vunpack.c.l.b16 %v382
  %v1845 = vunpack.c.h.b16 %v382
  %v1846 = vunpack.c.l.b16 %v383
  %v1847 = vunpack.c.h.b16 %v383
  %v1848 = vunpack.c.l.b16 %v384
  %v1849 = vunpack.c.h.b16 %v384
  %v1850 = vunpack.c.l.b16 %v385
  %v1851 = vunpack.c.h.b16 %v385
  %v1852 = vunpack.c.l.b16 %v386
  %v1853 = vunpack.c.h.b16 %v386
  %v1854 = vunpack.c.l.b16 %v387
  %v1855 = vunpack.c.h.b16 %v387
  %v1856 = vunpack.c.l.b16 %v388
  %v1857 = vunpack.c.h.b16 %v388
  %v1858 = vunpack.c.l.b16 %v389
  %v1859 = vunpack.c.h.b16 %v389
  %v1860 = vunpack.c.l.b16 %v390
  %v1861 = vunpack.c.h.b16 %v390
  %v1862 = vunpack.c.l.b16 %v391
  %v1863 = vunpack.c.h.b16 %v391
  %v1864 = vunpack.c.l.b16 %v392
  %v1865 = vunpack.c.h.b16 %v392
  %v1866 = vunpack.c.l.b16 %v393
  %v1867 = vunpack.c.h.b16 %v393
  %v1868 = vunpack.c.l.b16 %v394
  %v1869 = vunpack.c.h.b16 %v394
  %v1870 = vunpack.c.l.b16 %v395
  %v1871 = vunpack.c.h.b16 %v395
  %v1872 = vunpack.c.l.b16 %v396
  %v1873 = vunpack.c.h.b16 %v396
  %v1874 = vunpack.c.l.b16 %v397
  %v1875 = vunpack.c.h.b16 %v397
  %v1876 = vunpack.c.l.b16 %v398
  %v1877 = vunpack.c.h.b16 %v398
  %v1878 = vunpack.c.l.b16 %v399
  %v1879 = vunpack.c.h.b16 %v399
  %v1880 = vunpack.c.l.b16 %v400
  %v1881 = vunpack.c.h.b16 %v400
  %v1882 = vunpack.c.l.b16 %v401
  %v1883 = vunpack.c.h.b16 %v401
  %v1884 = vunpack.c.l.b16 %v402
  %v1885 = vunpack.c.h.b16 %v402
  %v1886 = vunpack.c.l.b16 %v403
  %v1887 = vunpack.c.h.b16 %v403
  %v1888 = vunpack.c.l.b16 %v404
  %v1889 = vunpack.c.h.b16 %v404
  %v1890 = vunpack.c.l.b16 %v405
  %v1891 = vunpack.c.h.b16 %v405
  %v1892 = vunpack.c.l.b16 %v406
  %v1893 = vunpack.c.h.b16 %v406
  %v1894 = vunpack.c.l.b16 %v407
  %v1895 = vunpack.c.h.b16 %v407
  %v1896 = vunpack.c.l.b16 %v408
  %v1897 = vunpack.c.h.b16 %v408
  %v1898 = vunpack.c.l.b16 %v409
  %v1899 = vunpack.c.h.b16 %v409
  %v1900 = vunpack.c.l.b16 %v410
  %v1901 = vunpack.c.h.b16 %v410
  %v1902 = vunpack.c.l.b16 %v411
  %v1903 = vunpack.c.h.b16 %v411
  %v1904 = vunpack.c.l.b16 %v412
  %v1905 = vunpack.c.h.b16 %v412
  %v1906 = vunpack.c.l.b16 %v413
  %v1907 = vunpack.c.h.b16 %v413
  %v1908 = vunpack.c.l.b16 %v414
  %v1909 = vunpack.c.h.b16 %v414
  %v1910 = vunpack.c.l.b16 %v415
  %v1911 = vunpack.c.h.b16 %v415
  %v1912 = vunpack.c.l.b16 %v416
  %v1913 = vunpack.c.h.b16 %v416
  %v1914 = vunpack.c.l.b16 %v417
  %v1915 = vunpack.c.h.b16 %v417
  %v1916 = vunpack.c.l.b16 %v418
  %v1917 = vunpack.c.h.b16 %v418
  %v1918 = vunpack.c.l.b16 %v419
  %v1919 = vunpack.c.h.b16 %v419
  %v1920 = vunpack.c.l.b16 %v420
  %v1921 = vunpack.c.h.b16 %v420
  %v1922 = vunpack.c.l.b16 %v421
  %v1923 = vunpack.c.h.b16 %v421
  %v1924 = vunpack.c.l.b16 %v422
  %v1925 = vunpack.c.h.b16 %v422
  %v1926 = vunpack.c.l.b16 %v423
  %v1927 = vunpack.c.h.b16 %v423
  %v1928 = vunpack.c.l.b16 %v424
  %v1929 = vunpack.c.h.b16 %v424
  %v1930 = vunpack.c.l.b16 %v425
  %v1931 = vunpack.c.h.b16 %v425
  %v1932 = vunpack.c.l.b16 %v426
  %v1933 = vunpack.c.h.b16 %v426
  %v1934 = vunpack.c.l.b16 %v427
  %v1935 = vunpack.c.h.b16 %v427
  %v1936 = vunpack.c.l.b16 %v428
  %v1937 = vunpack.c.h.b16 %v428
  %v1938 = vunpack.c.l.b16 %v429
  %v1939 = vunpack.c.h.b16 %v429
  %v1940 = vunpack.c.l.b16 %v430
  %v1941 = vunpack.c.h.b16 %v430
  %v1942 = vunpack.c.l.b16 %v431
  %v1943 = vunpack.c.h.b16 %v431
  %v1944 = vunpack.c.l.b16 %v432
  %v1945 = vunpack.c.h.b16 %v432
  %v1946 = vunpack.c.l.b16 %v433
  %v1947 = vunpack.c.h.b16 %v433
  %v1948 = vunpack.c.l.b16 %v434
  %v1949 = vunpack.c.h.b16 %v434
  %v1950 = vunpack.c.l.b16 %v435
  %v1951 = vunpack.c.h.b16 %v435
  %v1952 = vunpack.c.l.b16 %v436
  %v1953 = vunpack.c.h.b16 %v436
  %v1954 = vunpack.c.l.b16 %v437
  %v1955 = vunpack.c.h.b16 %v437
  %v1956 = vunpack.c.l.b16 %v438
  %v1957 = vunpack.c.h.b16 %v438
  %v1958 = vunpack.c.l.b16 %v439
  %v1959 = vunpack.c.h.b16 %v439
  %v1960 = vunpack.c.l.b16 %v440
  %v1961 = vunpack.c.h.b16 %v440
  %v1962 = vunpack.c.l.b16 %v441
  %v1963 = vunpack.c.h.b16 %v441
  %v1964 = vunpack.c.l.b16 %v442
  %v1965 = vunpack.c.h.b16 %v442
  %v1966 = vunpack.c.l.b16 %v443
  %v1967 = vunpack.c.h.b16 %v443
  %v1968 = vunpack.c.l.b16 %v444
  %v1969 = vunpack.c.h.b16 %v444
  %v1970 = vunpack.c.l.b16 %v445
  %v1971 = vunpack.c.h.b16 %v445
  %v1972 = vunpack.c.l.b16 %v446
  %v1973 = vunpack.c.h.b16 %v446
  %v1974 = vunpack.c.l.b16 %v447
  %v1975 = vunpack.c.h.b16 %v447
  %v1976 = vunpack.c.l.b16 %v448
  %v1977 = vunpack.c.h.b16 %v448
  %v1978 = vunpack.c.l.b16 %v449
  %v1979 = vunpack.c.h.b16 %v449
  %v1980 = vunpack.c.l.b16 %v450
  %v1981 = vunpack.c.h.b16 %v450
  %v1982 = vunpack.c.l.b16 %v451
  %v1983 = vunpack.c.h.b16 %v451
  %v1984 = vunpack.c.l.b16 %v452
  %v1985 = vunpack.c.h.b16 %v452
  %v1986 = vunpack.c.l.b16 %v453
  %v1987 = vunpack.c.h.b16 %v453
  %v1988 = vunpack.c.l.b16 %v454
  %v1989 = vunpack.c.h.b16 %v454
  %v1990 = vunpack.c.l.b16 %v455
  %v1991 = vunpack.c.h.b16 %v455
  %v1992 = vunpack.c.l.b16 %v456
  %v1993 = vunpack.c.h.b16 %v456
  %v1994 = vunpack.c.l.b16 %v457
  %v1995 = vunpack.c.h.b16 %v457
  %v1996 = vunpack.c.l.b16 %v458
  %v1997 = vunpack.c.h.b16 %v458
  %v1998 = vunpack.c.l.b16 %v459
  %v1999 = vunpack.c.h.b16 %v459
  %v2000 = vunpack.c.l.b16 %v460
  %v2001 = vunpack.c.h.b16 %v460
  %v2002 = vunpack.c.l.b16 %v461
  %v2003 = vunpack.c.h.b16 %v461
  %v2004 = vunpack.c.l.b16 %v462
  %v2005 = vunpack.c.h.b16 %v462
  %v2006 = vunpack.c.l.b16 %v463
  %v2007 = vunpack.c.h.b16 %v463
  %v2008 = vunpack.c.l.b16 %v464
  %v2009 = vunpack.c.h.b16 %v464
  %v2010 = vunpack.c.l.b16 %v465
  %v2011 = vunpack.c.h.b16 %v465
  %v2012 = vunpack.c.l.b16 %v466
  %v2013 = vunpack.c.h.b16 %v466
  %v2014 = vunpack.c.l.b16 %v467
  %v2015 = vunpack.c.h.b16 %v467
  %v2016 = vunpack.c.l.b16 %v468
  %v2017 = vunpack.c.h.b16 %v468
  %v2018 = vunpack.c.l.b16 %v469
  %v2019 = vunpack.c.h.b16 %v469
  %v2020 = vunpack.c.l.b16 %v470
  %v2021 = vunpack.c.h.b16 %v470
  %v2022 = vunpack.c.l.b16 %v471
  %v2023 = vunpack.c.h.b16 %v471
  %v2024 = vunpack.c.l.b16 %v472
  %v2025 = vunpack.c.h.b16 %v472
  %v2026 = vunpack.c.l.b16 %v473
  %v2027 = vunpack.c.h.b16 %v473
  %v2028 = vunpack.c.l.b16 %v474
  %v2029 = vunpack.c.h.b16 %v474
  %v2030 = vunpack.c.l.b16 %v475
  %v2031 = vunpack.c.h.b16 %v475
  %v2032 = vunpack.c.l.b16 %v476
  %v2033 = vunpack.c.h.b16 %v476
  %v2034 = vunpack.c.l.b16 %v477
  %v2035 = vunpack.c.h.b16 %v477
  %v2036 = vunpack.c.l.b16 %v478
  %v2037 = vunpack.c.h.b16 %v478
  %v2038 = vunpack.c.l.b16 %v479
  %v2039 = vunpack.c.h.b16 %v479
  %v2040 = vunpack.c.l.b16 %v480
  %v2041 = vunpack.c.h.b16 %v480
  %v2042 = vunpack.c.l.b16 %v481
  %v2043 = vunpack.c.h.b16 %v481
  %v2044 = vunpack.c.l.b16 %v482
  %v2045 = vunpack.c.h.b16 %v482
  %v2046 = vunpack.c.l.b16 %v483
  %v2047 = vunpack.c.h.b16 %v483
  %v2048 = vunpack.c.l.b16 %v484
  %v2049 = vunpack.c.h.b16 %v484
  %v2050 = vunpack.c.l.b16 %v485
  %v2051 = vunpack.c.h.b16 %v485
  %v2052 = vunpack.c.l.b16 %v486
  %v2053 = vunpack.c.h.b16 %v486
  %v2054 = vunpack.c.l.b16 %v487
  %v2055 = vunpack.c.h.b16 %v487
  %v2056 = vunpack.c.l.b16 %v488
  %v2057 = vunpack.c.h.b16 %v488
  %v2058 = vunpack.c.l.b16 %v489
  %v2059 = vunpack.c.h.b16 %v489
  %v2060 = vunpack.c.l.b16 %v490
  %v2061 = vunpack.c.h.b16 %v490
  %v2062 = vunpack.c.l.b16 %v491
  %v2063 = vunpack.c.h.b16 %v491
  %v2064 = vunpack.c.l.b16 %v492
  %v2065 = vunpack.c.h.b16 %v492
  %v2066 = vunpack.c.l.b16 %v493
  %v2067 = vunpack.c.h.b16 %v493
  %v2068 = vunpack.c.l.b16 %v494
  %v2069 = vunpack.c.h.b16 %v494
  %v2070 = vunpack.c.l.b16 %v495
  %v2071 = vunpack.c.h.b16 %v495
  %v2072 = vunpack.c.l.b16 %v496
  %v2073 = vunpack.c.h.b16 %v496
  %v2074 = vunpack.c.l.b16 %v497
  %v2075 = vunpack.c.h.b16 %v497
  %v2076 = vunpack.c.l.b16 %v498
  %v2077 = vunpack.c.h.b16 %v498
  %v2078 = vunpack.c.l.b16 %v499
  %v2079 = vunpack.c.h.b16 %v499
  %v2080 = vunpack.c.l.b16 %v500
  %v2081 = vunpack.c.h.b16 %v500
  %v2082 = vunpack.c.l.b16 %v501
  %v2083 = vunpack.c.h.b16 %v501
  %v2084 = vunpack.c.l.b16 %v502
  %v2085 = vunpack.c.h.b16 %v502
  %v2086 = vunpack.c.l.b16 %v503
  %v2087 = vunpack.c.h.b16 %v503
  %v2088 = vunpack.c.l.b16 %v504
  %v2089 = vunpack.c.h.b16 %v504
  %v2090 = vunpack.c.l.b16 %v505
  %v2091 = vunpack.c.h.b16 %v505
  %v2092 = vunpack.c.l.b16 %v506
  %v2093 = vunpack.c.h.b16 %v506
  %v2094 = vunpack.c.l.b16 %v507
  %v2095 = vunpack.c.h.b16 %v507
  %v2096 = vunpack.c.l.b16 %v508
  %v2097 = vunpack.c.h.b16 %v508
  %v2098 = vunpack.c.l.b16 %v509
  %v2099 = vunpack.c.h.b16 %v509
  %v2100 = vunpack.c.l.b16 %v510
  %v2101 = vunpack.c.h.b16 %v510
  %v2102 = vunpack.c.l.b16 %v511
  %v2103 = vunpack.c.h.b16 %v511
  %v2104 = vunpack.c.l.b16 %v512
  %v2105 = vunpack.c.h.b16 %v512
  %v2106 = vunpack.c.l.b16 %v513
  %v2107 = vunpack.c.h.b16 %v513
  %v2108 = vunpack.c.l.b16 %v514
  %v2109 = vunpack.c.h.b16 %v514
  %v2110 = vunpack.c.l.b16 %v515
  %v2111 = vunpack.c.h.b16 %v515
  %v2112 = vpack.c.b16 %v1110, %v1104
  %v2113 = vpack.c.b16 %v1111, %v1105
  %v2114 = vpack.c.b16 %v1112, %v1106
  %v2115 = vpack.c.b16 %v1113, %v1107
  %v2116 = vpack.c.b16 %v1114, %v1108
  %v2117 = vpack.c.b16 %v1115, %v1109
  %v2118 = vpack.c.b16 %v1122, %v1116
  %v2119 = vpack.c.b16 %v1123, %v1117
  %v2120 = vpack.c.b16 %v1124, %v1118
  %v2121 = vpack.c.b16 %v1125, %v1119
  %v2122 = vpack.c.b16 %v1126, %v1120
  %v2123 = vpack.c.b16 %v1127, %v1121
  %v2124 = vpack.c.b16 %v1134, %v1128
  %v2125 = vpack.c.b16 %v1135, %v1129
  %v2126 = vpack.c.b16 %v1136, %v1130
  %v2127 = vpack.c.b16 %v1137, %v1131
  %v2128 = vpack.c.b16 %v1138, %v1132
  %v2129 = vpack.c.b16 %v1139, %v1133
  %v2130 = vpack.c.b16 %v1146, %v1140
  %v2131 = vpack.c.b16 %v1147, %v1141
  %v2132 = vpack.c.b16 %v1148, %v1142
  %v2133 = vpack.c.b16 %v1149, %v1143
  %v2134 = vpack.c.b16 %v1150, %v1144
  %v2135 = vpack.c.b16 %v1151, %v1145
  %v2136 = vpack.c.b16 %v1158, %v1152
  %v2137 = vpack.c.b16 %v1159, %v1153
  %v2138 = vpack.c.b16 %v1160, %v1154
  %v2139 = vpack.c.b16 %v1161, %v1155
  %v2140 = vpack.c.b16 %v1162, %v1156
  %v2141 = vpack.c.b16 %v1163, %v1157
  %v2142 = vpack.c.b16 %v1170, %v1164
  %v2143 = vpack.c.b16 %v1171, %v1165
  %v2144 = vpack.c.b16 %v1172, %v1166
  %v2145 = vpack.c.b16 %v1173, %v1167
  %v2146 = vpack.c.b16 %v1174, %v1168
  %v2147 = vpack.c.b16 %v1175, %v1169
  %v2148 = vpack.c.b16 %v1182, %v1176
  %v2149 = vpack.c.b16 %v1183, %v1177
  %v2150 = vpack.c.b16 %v1184, %v1178
  %v2151 = vpack.c.b16 %v1185, %v1179
  %v2152 = vpack.c.b16 %v1186, %v1180
  %v2153 = vpack.c.b16 %v1187, %v1181
  %v2154 = vpack.c.b16 %v1194, %v1188
  %v2155 = vpack.c.b16 %v1195, %v1189
  %v2156 = vpack.c.b16 %v1196, %v1190
  %v2157 = vpack.c.b16 %v1197, %v1191
  %v2158 = vpack.c.b16 %v1198, %v1192
  %v2159 = vpack.c.b16 %v1199, %v1193
  %v2160 = vpack.c.b16 %v1206, %v1200
  %v2161 = vpack.c.b16 %v1207, %v1201
  %v2162 = vpack.c.b16 %v1208, %v1202
  %v2163 = vpack.c.b16 %v1209, %v1203
  %v2164 = vpack.c.b16 %v1210, %v1204
  %v2165 = vpack.c.b16 %v1211, %v1205
  %v2166 = vpack.c.b16 %v1218, %v1212
  %v2167 = vpack.c.b16 %v1219, %v1213
  %v2168 = vpack.c.b16 %v1220, %v1214
  %v2169 = vpack.c.b16 %v1221, %v1215
  %v2170 = vpack.c.b16 %v1222, %v1216
  %v2171 = vpack.c.b16 %v1223, %v1217
  %v2172 = vpack.c.b16 %v1230, %v1224
  %v2173 = vpack.c.b16 %v1231, %v1225
  %v2174 = vpack.c.b16 %v1232, %v1226
  %v2175 = vpack.c.b16 %v1233, %v1227
  %v2176 = vpack.c.b16 %v1234, %v1228
  %v2177 = vpack.c.b16 %v1235, %v1229
  %v2178 = vpack.c.b16 %v1242, %v1236
  %v2179 = vpack.c.b16 %v1243, %v1237
  %v2180 = vpack.c.b16 %v1244, %v1238
  %v2181 = vpack.c.b16 %v1245, %v1239
  %v2182 = vpack.c.b16 %v1246, %v1240
  %v2183 = vpack.c.b16 %v1247, %v1241
  %v2184 = vpack.c.b16 %v1254, %v1248
  %v2185 = vpack.c.b16 %v1255, %v1249
  %v2186 = vpack.c.b16 %v1256, %v1250
  %v2187 = vpack.c.b16 %v1257, %v1251
  %v2188 = vpack.c.b16 %v1258, %v1252
  %v2189 = vpack.c.b16 %v1259, %v1253
  %v2190 = vpack.c.b16 %v1266, %v1260
  %v2191 = vpack.c.b16 %v1267, %v1261
  %v2192 = vpack.c.b16 %v1268, %v1262
  %v2193 = vpack.c.b16 %v1269, %v1263
  %v2194 = vpack.c.b16 %v1270, %v1264
  %v2195 = vpack.c.b16 %v1271, %v1265
  %v2196 = vpack.c.b16 %v1278, %v1272
  %v2197 = vpack.c.b16 %v1279, %v1273
  %v2198 = vpack.c.b16 %v1280, %v1274
  %v2199 = vpack.c.b16 %v1281, %v1275
  %v2200 = vpack.c.b16 %v1282, %v1276
  %v2201 = vpack.c.b16 %v1283, %v1277
  %v2202 = vpack.c.b16 %v1290, %v1284
  %v2203 = vpack.c.b16 %v1291, %v1285
  %v2204 = vpack.c.b16 %v1292, %v1286
  %v2205 = vpack.c.b16 %v1293, %v1287
  %v2206 = vpack.c.b16 %v1294, %v1288
  %v2207 = vpack.c.b16 %v1295, %v1289
  %v2208 = vpack.c.b16 %v1302, %v1296
  %v2209 = vpack.c.b16 %v1303, %v1297
  %v2210 = vpack.c.b16 %v1304, %v1298
  %v2211 = vpack.c.b16 %v1305, %v1299
  %v2212 = vpack.c.b16 %v1306, %v1300
  %v2213 = vpack.c.b16 %v1307, %v1301
  %v2214 = vpack.c.b16 %v1314, %v1308
  %v2215 = vpack.c.b16 %v1315, %v1309
  %v2216 = vpack.c.b16 %v1316, %v1310
  %v2217 = vpack.c.b16 %v1317, %v1311
  %v2218 = vpack.c.b16 %v1318, %v1312
  %v2219 = vpack.c.b16 %v1319, %v1313
  %v2220 = vpack.c.b16 %v1326, %v1320
  %v2221 = vpack.c.b16 %v1327, %v1321
  %v2222 = vpack.c.b16 %v1328, %v1322
  %v2223 = vpack.c.b16 %v1329, %v1323
  %v2224 = vpack.c.b16 %v1330, %v1324
  %v2225 = vpack.c.b16 %v1331, %v1325
  %v2226 = vpack.c.b16 %v1338, %v1332
  %v2227 = vpack.c.b16 %v1339, %v1333
  %v2228 = vpack.c.b16 %v1340, %v1334
  %v2229 = vpack.c.b16 %v1341, %v1335
  %v2230 = vpack.c.b16 %v1342, %v1336
  %v2231 = vpack.c.b16 %v1343, %v1337
  %v2232 = vpack.c.b16 %v1350, %v1344
  %v2233 = vpack.c.b16 %v1351, %v1345
  %v2234 = vpack.c.b16 %v1352, %v1346
  %v2235 = vpack.c.b16 %v1353, %v1347
  %v2236 = vpack.c.b16 %v1354, %v1348
  %v2237 = vpack.c.b16 %v1355, %v1349
  %v2238 = vpack.c.b16 %v1362, %v1356
  %v2239 = vpack.c.b16 %v1363, %v1357
  %v2240 = vpack.c.b16 %v1364, %v1358
  %v2241 = vpack.c.b16 %v1365, %v1359
  %v2242 = vpack.c.b16 %v1366, %v1360
  %v2243 = vpack.c.b16 %v1367, %v1361
  %v2244 = vpack.c.b16 %v1374, %v1368
  %v2245 = vpack.c.b16 %v1375, %v1369
  %v2246 = vpack.c.b16 %v1376, %v1370
  %v2247 = vpack.c.b16 %v1377, %v1371
  %v2248 = vpack.c.b16 %v1378, %v1372
  %v2249 = vpack.c.b16 %v1379, %v1373
  %v2250 = vpack.c.b16 %v1386, %v1380
  %v2251 = vpack.c.b16 %v1387, %v1381
  %v2252 = vpack.c.b16 %v1388, %v1382
  %v2253 = vpack.c.b16 %v1389, %v1383
  %v2254 = vpack.c.b16 %v1390, %v1384
  %v2255 = vpack.c.b16 %v1391, %v1385
  %v2256 = vpack.c.b16 %v1398, %v1392
  %v2257 = vpack.c.b16 %v1399, %v1393
  %v2258 = vpack.c.b16 %v1400, %v1394
  %v2259 = vpack.c.b16 %v1401, %v1395
  %v2260 = vpack.c.b16 %v1402, %v1396
  %v2261 = vpack.c.b16 %v1403, %v1397
  %v2262 = vpack.c.b16 %v1410, %v1404
  %v2263 = vpack.c.b16 %v1411, %v1405
  %v2264 = vpack.c.b16 %v1412, %v1406
  %v2265 = vpack.c.b16 %v1413, %v1407
  %v2266 = vpack.c.b16 %v1414, %v1408
  %v2267 = vpack.c.b16 %v1415, %v1409
  %v2268 = vpack.c.b16 %v1422, %v1416
  %v2269 = vpack.c.b16 %v1423, %v1417
  %v2270 = vpack.c.b16 %v1424, %v1418
  %v2271 = vpack.c.b16 %v1425, %v1419
  %v2272 = vpack.c.b16 %v1426, %v1420
  %v2273 = vpack.c.b16 %v1427, %v1421
  %v2274 = vpack.c.b16 %v1434, %v1428
  %v2275 = vpack.c.b16 %v1435, %v1429
  %v2276 = vpack.c.b16 %v1436, %v1430
  %v2277 = vpack.c.b16 %v1437, %v1431
  %v2278 = vpack.c.b16 %v1438, %v1432
  %v2279 = vpack.c.b16 %v1439, %v1433
  %v2280 = vpack.c.b16 %v1446, %v1440
  %v2281 = vpack.c.b16 %v1447, %v1441
  %v2282 = vpack.c.b16 %v1448, %v1442
  %v2283 = vpack.c.b16 %v1449, %v1443
  %v2284 = vpack.c.b16 %v1450, %v1444
  %v2285 = vpack.c.b16 %v1451, %v1445
  %v2286 = vpack.c.b16 %v1458, %v1452
  %v2287 = vpack.c.b16 %v1459, %v1453
  %v2288 = vpack.c.b16 %v1460, %v1454
  %v2289 = vpack.c.b16 %v1461, %v1455
  %v2290 = vpack.c.b16 %v1462, %v1456
  %v2291 = vpack.c.b16 %v1463, %v1457
  %v2292 = vpack.c.b16 %v1470, %v1464
  %v2293 = vpack.c.b16 %v1471, %v1465
  %v2294 = vpack.c.b16 %v1472, %v1466
  %v2295 = vpack.c.b16 %v1473, %v1467
  %v2296 = vpack.c.b16 %v1474, %v1468
  %v2297 = vpack.c.b16 %v1475, %v1469
  %v2298 = vpack.c.b16 %v1482, %v1476
  %v2299 = vpack.c.b16 %v1483, %v1477
  %v2300 = vpack.c.b16 %v1484, %v1478
  %v2301 = vpack.c.b16 %v1485, %v1479
  %v2302 = vpack.c.b16 %v1486, %v1480
  %v2303 = vpack.c.b16 %v1487, %v1481
  %v2304 = vpack.c.b16 %v1494, %v1488
  %v2305 = vpack.c.b16 %v1495, %v1489
  %v2306 = vpack.c.b16 %v1496, %v1490
  %v2307 = vpack.c.b16 %v1497, %v1491
  %v2308 = vpack.c.b16 %v1498, %v1492
  %v2309 = vpack.c.b16 %v1499, %v1493
  %v2310 = vpack.c.b16 %v1506, %v1500
  %v2311 = vpack.c.b16 %v1507, %v1501
  %v2312 = vpack.c.b16 %v1508, %v1502
  %v2313 = vpack.c.b16 %v1509, %v1503
  %v2314 = vpack.c.b16 %v1510, %v1504
  %v2315 = vpack.c.b16 %v1511, %v1505
  %v2316 = vpack.c.b16 %v1518, %v1512
  %v2317 = vpack.c.b16 %v1519, %v1513
  %v2318 = vpack.c.b16 %v1520, %v1514
  %v2319 = vpack.c.b16 %v1521, %v1515
  %v2320 = vpack.c.b16 %v1522, %v1516
  %v2321 = vpack.c.b16 %v1523, %v1517
  %v2322 = vpack.c.b16 %v1530, %v1524
  %v2323 = vpack.c.b16 %v1531, %v1525
  %v2324 = vpack.c.b16 %v1532, %v1526
  %v2325 = vpack.c.b16 %v1533, %v1527
  %v2326 = vpack.c.b16 %v1534, %v1528
  %v2327 = vpack.c.b16 %v1535, %v1529
  %v2328 = vpack.c.b16 %v1542, %v1536
  %v2329 = vpack.c.b16 %v1543, %v1537
  %v2330 = vpack.c.b16 %v1544, %v1538
  %v2331 = vpack.c.b16 %v1545, %v1539
  %v2332 = vpack.c.b16 %v1546, %v1540
  %v2333 = vpack.c.b16 %v1547, %v1541
  %v2334 = vpack.c.b16 %v1554, %v1548
  %v2335 = vpack.c.b16 %v1555, %v1549
  %v2336 = vpack.c.b16 %v1556, %v1550
  %v2337 = vpack.c.b16 %v1557, %v1551
  %v2338 = vpack.c.b16 %v1558, %v1552
  %v2339 = vpack.c.b16 %v1559, %v1553
  %v2340 = vpack.c.b16 %v1566, %v1560
  %v2341 = vpack.c.b16 %v1567, %v1561
  %v2342 = vpack.c.b16 %v1568, %v1562
  %v2343 = vpack.c.b16 %v1569, %v1563
  %v2344 = vpack.c.b16 %v1570, %v1564
  %v2345 = vpack.c.b16 %v1571, %v1565
  %v2346 = vpack.c.b16 %v1578, %v1572
  %v2347 = vpack.c.b16 %v1579, %v1573
  %v2348 = vpack.c.b16 %v1580, %v1574
  %v2349 = vpack.c.b16 %v1581, %v1575
  %v2350 = vpack.c.b16 %v1582, %v1576
  %v2351 = vpack.c.b16 %v1583, %v1577
  %v2352 = vpack.c.b16 %v1590, %v1584
  %v2353 = vpack.c.b16 %v1591, %v1585
  %v2354 = vpack.c.b16 %v1592, %v1586
  %v2355 = vpack.c.b16 %v1593, %v1587
  %v2356 = vpack.c.b16 %v1594, %v1588
  %v2357 = vpack.c.b16 %v1595, %v1589
  %v2358 = vpack.c.b16 %v1602, %v1596
  %v2359 = vpack.c.b16 %v1603, %v1597
  %v2360 = vpack.c.b16 %v1604, %v1598
  %v2361 = vpack.c.b16 %v1605, %v1599
  %v2362 = vpack.c.b16 %v1606, %v1600
  %v2363 = vpack.c.b16 %v1607, %v1601
  %v2364 = vpack.c.b16 %v1614, %v1608
  %v2365 = vpack.c.b16 %v1615, %v1609
  %v2366 = vpack.c.b16 %v1616, %v1610
  %v2367 = vpack.c.b16 %v1617, %v1611
  %v2368 = vpack.c.b16 %v1618, %v1612
  %v2369 = vpack.c.b16 %v1619, %v1613
  %v2370 = vpack.c.b16 %v1626, %v1620
  %v2371 = vpack.c.b16 %v1627, %v1621
  %v2372 = vpack.c.b16 %v1628, %v1622
  %v2373 = vpack.c.b16 %v1629, %v1623
  %v2374 = vpack.c.b16 %v1630, %v1624
  %v2375 = vpack.c.b16 %v1631, %v1625
  %v2376 = vpack.c.b16 %v1638, %v1632
  %v2377 = vpack.c.b16 %v1639, %v1633
  %v2378 = vpack.c.b16 %v1640, %v1634
  %v2379 = vpack.c.b16 %v1641, %v1635
  %v2380 = vpack.c.b16 %v1642, %v1636
  %v2381 = vpack.c.b16 %v1643, %v1637
  %v2382 = vpack.c.b16 %v1650, %v1644
  %v2383 = vpack.c.b16 %v1651, %v1645
  %v2384 = vpack.c.b16 %v1652, %v1646
  %v2385 = vpack.c.b16 %v1653, %v1647
  %v2386 = vpack.c.b16 %v1654, %v1648
  %v2387 = vpack.c.b16 %v1655, %v1649
  %v2388 = vpack.c.b16 %v1662, %v1656
  %v2389 = vpack.c.b16 %v1663, %v1657
  %v2390 = vpack.c.b16 %v1664, %v1658
  %v2391 = vpack.c.b16 %v1665, %v1659
  %v2392 = vpack.c.b16 %v1666, %v1660
  %v2393 = vpack.c.b16 %v1667, %v1661
  %v2394 = vpack.c.b16 %v1674, %v1668
  %v2395 = vpack.c.b16 %v1675, %v1669
  %v2396 = vpack.c.b16 %v1676, %v1670
  %v2397 = vpack.c.b16 %v1677, %v1671
  %v2398 = vpack.c.b16 %v1678, %v1672
  %v2399 = vpack.c.b16 %v1679, %v1673
  %v2400 = vpack.c.b16 %v1686, %v1680
  %v2401 = vpack.c.b16 %v1687, %v1681
  %v2402 = vpack.c.b16 %v1688, %v1682
  %v2403 = vpack.c.b16 %v1689, %v1683
  %v2404 = vpack.c.b16 %v1690, %v1684
  %v2405 = vpack.c.b16 %v1691, %v1685
  %v2406 = vpack.c.b16 %v1698, %v1692
  %v2407 = vpack.c.b16 %v1699, %v1693
  %v2408 = vpack.c.b16 %v1700, %v1694
  %v2409 = vpack.c.b16 %v1701, %v1695
  %v2410 = vpack.c.b16 %v1702, %v1696
  %v2411 = vpack.c.b16 %v1703, %v1697
  %v2412 = vpack.c.b16 %v1710, %v1704
  %v2413 = vpack.c.b16 %v1711, %v1705
  %v2414 = vpack.c.b16 %v1712, %v1706
  %v2415 = vpack.c.b16 %v1713, %v1707
  %v2416 = vpack.c.b16 %v1714, %v1708
  %v2417 = vpack.c.b16 %v1715, %v1709
  %v2418 = vpack.c.b16 %v1722, %v1716
  %v2419 = vpack.c.b16 %v1723, %v1717
  %v2420 = vpack.c.b16 %v1724, %v1718
  %v2421 = vpack.c.b16 %v1725, %v1719
  %v2422 = vpack.c.b16 %v1726, %v1720
  %v2423 = vpack.c.b16 %v1727, %v1721
  %v2424 = vpack.c.b16 %v1734, %v1728
  %v2425 = vpack.c.b16 %v1735, %v1729
  %v2426 = vpack.c.b16 %v1736, %v1730
  %v2427 = vpack.c.b16 %v1737, %v1731
  %v2428 = vpack.c.b16 %v1738, %v1732
  %v2429 = vpack.c.b16 %v1739, %v1733
  %v2430 = vpack.c.b16 %v1746, %v1740
  %v2431 = vpack.c.b16 %v1747, %v1741
  %v2432 = vpack.c.b16 %v1748, %v1742
  %v2433 = vpack.c.b16 %v1749, %v1743
  %v2434 = vpack.c.b16 %v1750, %v1744
  %v2435 = vpack.c.b16 %v1751, %v1745
  %v2436 = vpack.c.b16 %v1758, %v1752
  %v2437 = vpack.c.b16 %v1759, %v1753
  %v2438 = vpack.c.b16 %v1760, %v1754
  %v2439 = vpack.c.b16 %v1761, %v1755
  %v2440 = vpack.c.b16 %v1762, %v1756
  %v2441 = vpack.c.b16 %v1763, %v1757
  %v2442 = vpack.c.b16 %v1770, %v1764
  %v2443 = vpack.c.b16 %v1771, %v1765
  %v2444 = vpack.c.b16 %v1772, %v1766
  %v2445 = vpack.c.b16 %v1773, %v1767
  %v2446 = vpack.c.b16 %v1774, %v1768
  %v2447 = vpack.c.b16 %v1775, %v1769
  %v2448 = vpack.c.b16 %v1782, %v1776
  %v2449 = vpack.c.b16 %v1783, %v1777
  %v2450 = vpack.c.b16 %v1784, %v1778
  %v2451 = vpack.c.b16 %v1785, %v1779
  %v2452 = vpack.c.b16 %v1786, %v1780
  %v2453 = vpack.c.b16 %v1787, %v1781
  %v2454 = vpack.c.b16 %v1794, %v1788
  %v2455 = vpack.c.b16 %v1795, %v1789
  %v2456 = vpack.c.b16 %v1796, %v1790
  %v2457 = vpack.c.b16 %v1797, %v1791
  %v2458 = vpack.c.b16 %v1798, %v1792
  %v2459 = vpack.c.b16 %v1799, %v1793
  %v2460 = vpack.c.b16 %v1806, %v1800
  %v2461 = vpack.c.b16 %v1807, %v1801
  %v2462 = vpack.c.b16 %v1808, %v1802
  %v2463 = vpack.c.b16 %v1809, %v1803
  %v2464 = vpack.c.b16 %v1810, %v1804
  %v2465 = vpack.c.b16 %v1811, %v1805
  %v2466 = vpack.c.b16 %v1818, %v1812
  %v2467 = vpack.c.b16 %v1819, %v1813
  %v2468 = vpack.c.b16 %v1820, %v1814
  %v2469 = vpack.c.b16 %v1821, %v1815
  %v2470 = vpack.c.b16 %v1822, %v1816
  %v2471 = vpack.c.b16 %v1823, %v1817
  %v2472 = vpack.c.b16 %v1830, %v1824
  %v2473 = vpack.c.b16 %v1831, %v1825
  %v2474 = vpack.c.b16 %v1832, %v1826
  %v2475 = vpack.c.b16 %v1833, %v1827
  %v2476 = vpack.c.b16 %v1834, %v1828
  %v2477 = vpack.c.b16 %v1835, %v1829
  %v2478 = vpack.c.b16 %v1842, %v1836
  %v2479 = vpack.c.b16 %v1843, %v1837
  %v2480 = vpack.c.b16 %v1844, %v1838
  %v2481 = vpack.c.b16 %v1845, %v1839
  %v2482 = vpack.c.b16 %v1846, %v1840
  %v2483 = vpack.c.b16 %v1847, %v1841
  %v2484 = vpack.c.b16 %v1854, %v1848
  %v2485 = vpack.c.b16 %v1855, %v1849
  %v2486 = vpack.c.b16 %v1856, %v1850
  %v2487 = vpack.c.b16 %v1857, %v1851
  %v2488 = vpack.c.b16 %v1858, %v1852
  %v2489 = vpack.c.b16 %v1859, %v1853
  %v2490 = vpack.c.b16 %v1866, %v1860
  %v2491 = vpack.c.b16 %v1867, %v1861
  %v2492 = vpack.c.b16 %v1868, %v1862
  %v2493 = vpack.c.b16 %v1869, %v1863
  %v2494 = vpack.c.b16 %v1870, %v1864
  %v2495 = vpack.c.b16 %v1871, %v1865
  %v2496 = vpack.c.b16 %v1878, %v1872
  %v2497 = vpack.c.b16 %v1879, %v1873
  %v2498 = vpack.c.b16 %v1880, %v1874
  %v2499 = vpack.c.b16 %v1881, %v1875
  %v2500 = vpack.c.b16 %v1882, %v1876
  %v2501 = vpack.c.b16 %v1883, %v1877
  %v2502 = vpack.c.b16 %v1890, %v1884
  %v2503 = vpack.c.b16 %v1891, %v1885
  %v2504 = vpack.c.b16 %v1892, %v1886
  %v2505 = vpack.c.b16 %v1893, %v1887
  %v2506 = vpack.c.b16 %v1894, %v1888
  %v2507 = vpack.c.b16 %v1895, %v1889
  %v2508 = vpack.c.b16 %v1902, %v1896
  %v2509 = vpack.c.b16 %v1903, %v1897
  %v2510 = vpack.c.b16 %v1904, %v1898
  %v2511 = vpack.c.b16 %v1905, %v1899
  %v2512 = vpack.c.b16 %v1906, %v1900
  %v2513 = vpack.c.b16 %v1907, %v1901
  %v2514 = vpack.c.b16 %v1914, %v1908
  %v2515 = vpack.c.b16 %v1915, %v1909
  %v2516 = vpack.c.b16 %v1916, %v1910
  %v2517 = vpack.c.b16 %v1917, %v1911
  %v2518 = vpack.c.b16 %v1918, %v1912
  %v2519 = vpack.c.b16 %v1919, %v1913
  %v2520 = vpack.c.b16 %v1926, %v1920
  %v2521 = vpack.c.b16 %v1927, %v1921
  %v2522 = vpack.c.b16 %v1928, %v1922
  %v2523 = vpack.c.b16 %v1929, %v1923
  %v2524 = vpack.c.b16 %v1930, %v1924
  %v2525 = vpack.c.b16 %v1931, %v1925
  %v2526 = vpack.c.b16 %v1938, %v1932
  %v2527 = vpack.c.b16 %v1939, %v1933
  %v2528 = vpack.c.b16 %v1940, %v1934
  %v2529 = vpack.c.b16 %v1941, %v1935
  %v2530 = vpack.c.b16 %v1942, %v1936
  %v2531 = vpack.c.b16 %v1943, %v1937
  %v2532 = vpack.c.b16 %v1950, %v1944
  %v2533 = vpack.c.b16 %v1951, %v1945
  %v2534 = vpack.c.b16 %v1952, %v1946
  %v2535 = vpack.c.b16 %v1953, %v1947
  %v2536 = vpack.c.b16 %v1954, %v1948
  %v2537 = vpack.c.b16 %v1955, %v1949
  %v2538 = vpack.c.b16 %v1962, %v1956
  %v2539 = vpack.c.b16 %v1963, %v1957
  %v2540 = vpack.c.b16 %v1964, %v1958
  %v2541 = vpack.c.b16 %v1965, %v1959
  %v2542 = vpack.c.b16 %v1966, %v1960
  %v2543 = vpack.c.b16 %v1967, %v1961
  %v2544 = vpack.c.b16 %v1974, %v1968
  %v2545 = vpack.c.b16 %v1975, %v1969
  %v2546 = vpack.c.b16 %v1976, %v1970
  %v2547 = vpack.c.b16 %v1977, %v1971
  %v2548 = vpack.c.b16 %v1978, %v1972
  %v2549 = vpack.c.b16 %v1979, %v1973
  %v2550 = vpack.c.b16 %v1986, %v1980
  %v2551 = vpack.c.b16 %v1987, %v1981
  %v2552 = vpack.c.b16 %v1988, %v1982
  %v2553 = vpack.c.b16 %v1989, %v1983
  %v2554 = vpack.c.b16 %v1990, %v1984
  %v2555 = vpack.c.b16 %v1991, %v1985
  %v2556 = vpack.c.b16 %v1998, %v1992
  %v2557 = vpack.c.b16 %v1999, %v1993
  %v2558 = vpack.c.b16 %v2000, %v1994
  %v2559 = vpack.c.b16 %v2001, %v1995
  %v2560 = vpack.c.b16 %v2002, %v1996
  %v2561 = vpack.c.b16 %v2003, %v1997
  %v2562 = vpack.c.b16 %v2010, %v2004
  %v2563 = vpack.c.b16 %v2011, %v2005
  %v2564 = vpack.c.b16 %v2012, %v2006
  %v2565 = vpack.c.b16 %v2013, %v2007
  %v2566 = vpack.c.b16 %v2014, %v2008
  %v2567 = vpack.c.b16 %v2015, %v2009
  %v2568 = vpack.c.b16 %v2022, %v2016
  %v2569 = vpack.c.b16 %v2023, %v2017
  %v2570 = vpack.c.b16 %v2024, %v2018
  %v2571 = vpack.c.b16 %v2025, %v2019
  %v2572 = vpack.c.b16 %v2026, %v2020
  %v2573 = vpack.c.b16 %v2027, %v2021
  %v2574 = vpack.c.b16 %v2034, %v2028
  %v2575 = vpack.c.b16 %v2035, %v2029
  %v2576 = vpack.c.b16 %v2036, %v2030
  %v2577 = vpack.c.b16 %v2037, %v2031
  %v2578 = vpack.c.b16 %v2038, %v2032
  %v2579 = vpack.c.b16 %v2039, %v2033
  %v2580 = vpack.c.b16 %v2046, %v2040
  %v2581 = vpack.c.b16 %v2047, %v2041
  %v2582 = vpack.c.b16 %v2048, %v2042
  %v2583 = vpack.c.b16 %v2049, %v2043
  %v2584 = vpack.c.b16 %v2050, %v2044
  %v2585 = vpack.c.b16 %v2051, %v2045
  %v2586 = vpack.c.b16 %v2058, %v2052
  %v2587 = vpack.c.b16 %v2059, %v2053
  %v2588 = vpack.c.b16 %v2060, %v2054
  %v2589 = vpack.c.b16 %v2061, %v2055
  %v2590 = vpack.c.b16 %v2062, %v2056
  %v2591 = vpack.c.b16 %v2063, %v2057
  %v2592 = vpack.c.b16 %v2070, %v2064
  %v2593 = vpack.c.b16 %v2071, %v2065
  %v2594 = vpack.c.b16 %v2072, %v2066
  %v2595 = vpack.c.b16 %v2073, %v2067
  %v2596 = vpack.c.b16 %v2074, %v2068
  %v2597 = vpack.c.b16 %v2075, %v2069
  %v2598 = vpack.c.b16 %v2082, %v2076
  %v2599 = vpack.c.b16 %v2083, %v2077
  %v2600 = vpack.c.b16 %v2084, %v2078
  %v2601 = vpack.c.b16 %v2085, %v2079
  %v2602 = vpack.c.b16 %v2086, %v2080
  %v2603 = vpack.c.b16 %v2087, %v2081
  %v2604 = vpack.c.b16 %v2094, %v2088
  %v2605 = vpack.c.b16 %v2095, %v2089
  %v2606 = vpack.c.b16 %v2096, %v2090
  %v2607 = vpack.c.b16 %v2097, %v2091
  %v2608 = vpack.c.b16 %v2098, %v2092
  %v2609 = vpack.c.b16 %v2099, %v2093
  %v2610 = vpack.c.b16 %v2106, %v2100
  %v2611 = vpack.c.b16 %v2107, %v2101
  %v2612 = vpack.c.b16 %v2108, %v2102
  %v2613 = vpack.c.b16 %v2109, %v2103
  %v2614 = vpack.c.b16 %v2110, %v2104
  %v2615 = vpack.c.b16 %v2111, %v2105
  %v3120 = vunpack.c.l.b16 %v516
  %v3121 = vunpack.c.h.b16 %v516
  %v3122 = vunpack.c.l.b16 %v517
  %v3123 = vunpack.c.h.b16 %v517
  %v3124 = vunpack.c.l.b16 %v518
  %v3125 = vunpack.c.h.b16 %v518
  %v3126 = vunpack.c.l.b16 %v519
  %v3127 = vunpack.c.h.b16 %v519
  %v3128 = vunpack.c.l.b16 %v520
  %v3129 = vunpack.c.h.b16 %v520
  %v3130 = vunpack.c.l.b16 %v521
  %v3131 = vunpack.c.h.b16 %v521
  %v3132 = vunpack.c.l.b16 %v522
  %v3133 = vunpack.c.h.b16 %v522
  %v3134 = vunpack.c.l.b16 %v523
  %v3135 = vunpack.c.h.b16 %v523
  %v3136 = vunpack.c.l.b16 %v524
  %v3137 = vunpack.c.h.b16 %v524
  %v3138 = vunpack.c.l.b16 %v525
  %v3139 = vunpack.c.h.b16 %v525
  %v3140 = vunpack.c.l.b16 %v526
  %v3141 = vunpack.c.h.b16 %v526
  %v3142 = vunpack.c.l.b16 %v527
  %v3143 = vunpack.c.h.b16 %v527
  %v3144 = vunpack.c.l.b16 %v528
  %v3145 = vunpack.c.h.b16 %v528
  %v3146 = vunpack.c.l.b16 %v529
  %v3147 = vunpack.c.h.b16 %v529
  %v3148 = vunpack.c.l.b16 %v530
  %v3149 = vunpack.c.h.b16 %v530
  %v3150 = vunpack.c.l.b16 %v531
  %v3151 = vunpack.c.h.b16 %v531
  %v3152 = vunpack.c.l.b16 %v532
  %v3153 = vunpack.c.h.b16 %v532
  %v3154 = vunpack.c.l.b16 %v533
  %v3155 = vunpack.c.h.b16 %v533
  %v3156 = vunpack.c.l.b16 %v534
  %v3157 = vunpack.c.h.b16 %v534
  %v3158 = vunpack.c.l.b16 %v535
  %v3159 = vunpack.c.h.b16 %v535
  %v3160 = vunpack.c.l.b16 %v536
  %v3161 = vunpack.c.h.b16 %v536
  %v3162 = vunpack.c.l.b16 %v537
  %v3163 = vunpack.c.h.b16 %v537
  %v3164 = vunpack.c.l.b16 %v538
  %v3165 = vunpack.c.h.b16 %v538
  %v3166 = vunpack.c.l.b16 %v539
  %v3167 = vunpack.c.h.b16 %v539
  %v3168 = vunpack.c.l.b16 %v540
  %v3169 = vunpack.c.h.b16 %v540
  %v3170 = vunpack.c.l.b16 %v541
  %v3171 = vunpack.c.h.b16 %v541
  %v3172 = vunpack.c.l.b16 %v542
  %v3173 = vunpack.c.h.b16 %v542
  %v3174 = vunpack.c.l.b16 %v543
  %v3175 = vunpack.c.h.b16 %v543
  %v3176 = vunpack.c.l.b16 %v544
  %v3177 = vunpack.c.h.b16 %v544
  %v3178 = vunpack.c.l.b16 %v545
  %v3179 = vunpack.c.h.b16 %v545
  %v3180 = vunpack.c.l.b16 %v546
  %v3181 = vunpack.c.h.b16 %v546
  %v3182 = vunpack.c.l.b16 %v547
  %v3183 = vunpack.c.h.b16 %v547
  %v3184 = vunpack.c.l.b16 %v548
  %v3185 = vunpack.c.h.b16 %v548
  %v3186 = vunpack.c.l.b16 %v549
  %v3187 = vunpack.c.h.b16 %v549
  %v3188 = vunpack.c.l.b16 %v550
  %v3189 = vunpack.c.h.b16 %v550
  %v3190 = vunpack.c.l.b16 %v551
  %v3191 = vunpack.c.h.b16 %v551
  %v3192 = vunpack.c.l.b16 %v552
  %v3193 = vunpack.c.h.b16 %v552
  %v3194 = vunpack.c.l.b16 %v553
  %v3195 = vunpack.c.h.b16 %v553
  %v3196 = vunpack.c.l.b16 %v554
  %v3197 = vunpack.c.h.b16 %v554
  %v3198 = vunpack.c.l.b16 %v555
  %v3199 = vunpack.c.h.b16 %v555
  %v3200 = vunpack.c.l.b16 %v556
  %v3201 = vunpack.c.h.b16 %v556
  %v3202 = vunpack.c.l.b16 %v557
  %v3203 = vunpack.c.h.b16 %v557
  %v3204 = vunpack.c.l.b16 %v558
  %v3205 = vunpack.c.h.b16 %v558
  %v3206 = vunpack.c.l.b16 %v559
  %v3207 = vunpack.c.h.b16 %v559
  %v3208 = vunpack.c.l.b16 %v560
  %v3209 = vunpack.c.h.b16 %v560
  %v3210 = vunpack.c.l.b16 %v561
  %v3211 = vunpack.c.h.b16 %v561
  %v3212 = vunpack.c.l.b16 %v562
  %v3213 = vunpack.c.h.b16 %v562
  %v3214 = vunpack.c.l.b16 %v563
  %v3215 = vunpack.c.h.b16 %v563
  %v3216 = vunpack.c.l.b16 %v564
  %v3217 = vunpack.c.h.b16 %v564
  %v3218 = vunpack.c.l.b16 %v565
  %v3219 = vunpack.c.h.b16 %v565
  %v3220 = vunpack.c.l.b16 %v566
  %v3221 = vunpack.c.h.b16 %v566
  %v3222 = vunpack.c.l.b16 %v567
  %v3223 = vunpack.c.h.b16 %v567
  %v3224 = vunpack.c.l.b16 %v568
  %v3225 = vunpack.c.h.b16 %v568
  %v3226 = vunpack.c.l.b16 %v569
  %v3227 = vunpack.c.h.b16 %v569
  %v3228 = vunpack.c.l.b16 %v570
  %v3229 = vunpack.c.h.b16 %v570
  %v3230 = vunpack.c.l.b16 %v571
  %v3231 = vunpack.c.h.b16 %v571
  %v3232 = vunpack.c.l.b16 %v572
  %v3233 = vunpack.c.h.b16 %v572
  %v3234 = vunpack.c.l.b16 %v573
  %v3235 = vunpack.c.h.b16 %v573
  %v3236 = vunpack.c.l.b16 %v574
  %v3237 = vunpack.c.h.b16 %v574
  %v3238 = vunpack.c.l.b16 %v575
  %v3239 = vunpack.c.h.b16 %v575
  %v3240 = vunpack.c.l.b16 %v576
  %v3241 = vunpack.c.h.b16 %v576
  %v3242 = vunpack.c.l.b16 %v577
  %v3243 = vunpack.c.h.b16 %v577
  %v3244 = vunpack.c.l.b16 %v578
  %v3245 = vunpack.c.h.b16 %v578
  %v3246 = vunpack.c.l.b16 %v579
  %v3247 = vunpack.c.h.b16 %v579
  %v3248 = vunpack.c.l.b16 %v580
  %v3249 = vunpack.c.h.b16 %v580
  %v3250 = vunpack.c.l.b16 %v581
  %v3251 = vunpack.c.h.b16 %v581
  %v3252 = vunpack.c.l.b16 %v582
  %v3253 = vunpack.c.h.b16 %v582
  %v3254 = vunpack.c.l.b16 %v583
  %v3255 = vunpack.c.h.b16 %v583
  %v3256 = vunpack.c.l.b16 %v584
  %v3257 = vunpack.c.h.b16 %v584
  %v3258 = vunpack.c.l.b16 %v585
  %v3259 = vunpack.c.h.b16 %v585
  %v3260 = vunpack.c.l.b16 %v586
  %v3261 = vunpack.c.h.b16 %v586
  %v3262 = vunpack.c.l.b16 %v587
  %v3263 = vunpack.c.h.b16 %v587
  %v3264 = vunpack.c.l.b16 %v588
  %v3265 = vunpack.c.h.b16 %v588
  %v3266 = vunpack.c.l.b16 %v589
  %v3267 = vunpack.c.h.b16 %v589
  %v3268 = vunpack.c.l.b16 %v590
  %v3269 = vunpack.c.h.b16 %v590
  %v3270 = vunpack.c.l.b16 %v591
  %v3271 = vunpack.c.h.b16 %v591
  %v3272 = vunpack.c.l.b16 %v592
  %v3273 = vunpack.c.h.b16 %v592
  %v3274 = vunpack.c.l.b16 %v593
  %v3275 = vunpack.c.h.b16 %v593
  %v3276 = vunpack.c.l.b16 %v594
  %v3277 = vunpack.c.h.b16 %v594
  %v3278 = vunpack.c.l.b16 %v595
  %v3279 = vunpack.c.h.b16 %v595
  %v3280 = vunpack.c.l.b16 %v596
  %v3281 = vunpack.c.h.b16 %v596
  %v3282 = vunpack.c.l.b16 %v597
  %v3283 = vunpack.c.h.b16 %v597
  %v3284 = vunpack.c.l.b16 %v598
  %v3285 = vunpack.c.h.b16 %v598
  %v3286 = vunpack.c.l.b16 %v599
  %v3287 = vunpack.c.h.b16 %v599
  %v3288 = vpack.c.b16 %v3122, %v3120
  %v3289 = vpack.c.b16 %v3123, %v3121
  %v3290 = vpack.c.b16 %v3126, %v3124
  %v3291 = vpack.c.b16 %v3127, %v3125
  %v3292 = vpack.c.b16 %v3130, %v3128
  %v3293 = vpack.c.b16 %v3131, %v3129
  %v3294 = vpack.c.b16 %v3134, %v3132
  %v3295 = vpack.c.b16 %v3135, %v3133
  %v3296 = vpack.c.b16 %v3138, %v3136
  %v3297 = vpack.c.b16 %v3139, %v3137
  %v3298 = vpack.c.b16 %v3142, %v3140
  %v3299 = vpack.c.b16 %v3143, %v3141
  %v3300 = vpack.c.b16 %v3146, %v3144
  %v3301 = vpack.c.b16 %v3147, %v3145
  %v3302 = vpack.c.b16 %v3150, %v3148
  %v3303 = vpack.c.b16 %v3151, %v3149
  %v3304 = vpack.c.b16 %v3154, %v3152
  %v3305 = vpack.c.b16 %v3155, %v3153
  %v3306 = vpack.c.b16 %v3158, %v3156
  %v3307 = vpack.c.b16 %v3159, %v3157
  %v3308 = vpack.c.b16 %v3162, %v3160
  %v3309 = vpack.c.b16 %v3163, %v3161
  %v3310 = vpack.c.b16 %v3166, %v3164
  %v3311 = vpack.c.b16 %v3167, %v3165
  %v3312 = vpack.c.b16 %v3170, %v3168
  %v3313 = vpack.c.b16 %v3171, %v3169
  %v3314 = vpack.c.b16 %v3174, %v3172
  %v3315 = vpack.c.b16 %v3175, %v3173
  %v3316 = vpack.c.b16 %v3178, %v3176
  %v3317 = vpack.c.b16 %v3179, %v3177
  %v3318 = vpack.c.b16 %v3182, %v3180
  %v3319 = vpack.c.b16 %v3183, %v3181
  %v3320 = vpack.c.b16 %v3186, %v3184
  %v3321 = vpack.c.b16 %v3187, %v3185
  %v3322 = vpack.c.b16 %v3190, %v3188
  %v3323 = vpack.c.b16 %v3191, %v3189
  %v3324 = vpack.c.b16 %v3194, %v3192
  %v3325 = vpack.c.b16 %v3195, %v3193
  %v3326 = vpack.c.b16 %v3198, %v3196
  %v3327 = vpack.c.b16 %v3199, %v3197
  %v3328 = vpack.c.b16 %v3202, %v3200
  %v3329 = vpack.c.b16 %v3203, %v3201
  %v3330 = vpack.c.b16 %v3206, %v3204
  %v3331 = vpack.c.b16 %v3207, %v3205
  %v3332 = vpack.c.b16 %v3210, %v3208
  %v3333 = vpack.c.b16 %v3211, %v3209
  %v3334 = vpack.c.b16 %v3214, %v3212
  %v3335 = vpack.c.b16 %v3215, %v3213
  %v3336 = vpack.c.b16 %v3218, %v3216
  %v3337 = vpack.c.b16 %v3219, %v3217
  %v3338 = vpack.c.b16 %v3222, %v3220
  %v3339 = vpack.c.b16 %v3223, %v3221
  %v3340 = vpack.c.b16 %v3226, %v3224
  %v3341 = vpack.c.b16 %v3227, %v3225
  %v3342 = vpack.c.b16 %v3230, %v3228
  %v3343 = vpack.c.b16 %v3231, %v3229
  %v3344 = vpack.c.b16 %v3234, %v3232
  %v3345 = vpack.c.b16 %v3235, %v3233
  %v3346 = vpack.c.b16 %v3238, %v3236
  %v3347 = vpack.c.b16 %v3239, %v3237
  %v3348 = vpack.c.b16 %v3242, %v3240
  %v3349 = vpack.c.b16 %v3243, %v3241
  %v3350 = vpack.c.b16 %v3246, %v3244
  %v3351 = vpack.c.b16 %v3247, %v3245
  %v3352 = vpack.c.b16 %v3250, %v3248
  %v3353 = vpack.c.b16 %v3251, %v3249
  %v3354 = vpack.c.b16 %v3254, %v3252
  %v3355 = vpack.c.b16 %v3255, %v3253
  %v3356 = vpack.c.b16 %v3258, %v3256
  %v3357 = vpack.c.b16 %v3259, %v3257
  %v3358 = vpack.c.b16 %v3262, %v3260
  %v3359 = vpack.c.b16 %v3263, %v3261
  %v3360 = vpack.c.b16 %v3266, %v3264
  %v3361 = vpack.c.b16 %v3267, %v3265
  %v3362 = vpack.c.b16 %v3270, %v3268
  %v3363 = vpack.c.b16 %v3271, %v3269
  %v3364 = vpack.c.b16 %v3274, %v3272
  %v3365 = vpack.c.b16 %v3275, %v3273
  %v3366 = vpack.c.b16 %v3278, %v3276
  %v3367 = vpack.c.b16 %v3279, %v3277
  %v3368 = vpack.c.b16 %v3282, %v3280
  %v3369 = vpack.c.b16 %v3283, %v3281
  %v3370 = vpack.c.b16 %v3286, %v3284
  %v3371 = vpack.c.b16 %v3287, %v3285
  %vm3456 = vcmask 261120
  %v3458 = vsel %vm3456, %v2117, 0
  %v3461 = vsel %vm3456, %v2123, 0
  %v3464 = vsel %vm3456, %v2129, 0
  %v3467 = vsel %vm3456, %v2135, 0
  %v3470 = vsel %vm3456, %v2141, 0
  %v3473 = vsel %vm3456, %v2147, 0
  %v3476 = vsel %vm3456, %v2153, 0
  %v3479 = vsel %vm3456, %v2159, 0
  %v3482 = vsel %vm3456, %v2165, 0
  %v3485 = vsel %vm3456, %v2171, 0
  %v3488 = vsel %vm3456, %v2177, 0
  %v3491 = vsel %vm3456, %v2183, 0
  %v3494 = vsel %vm3456, %v2189, 0
  %v3497 = vsel %vm3456, %v2195, 0
  %v3500 = vsel %vm3456, %v2201, 0
  %v3503 = vsel %vm3456, %v2207, 0
  %v3506 = vsel %vm3456, %v2213, 0
  %v3509 = vsel %vm3456, %v2219, 0
  %v3512 = vsel %vm3456, %v2225, 0
  %v3515 = vsel %vm3456, %v2231, 0
  %v3518 = vsel %vm3456, %v2237, 0
  %v3521 = vsel %vm3456, %v2243, 0
  %v3524 = vsel %vm3456, %v2249, 0
  %v3527 = vsel %vm3456, %v2255, 0
  %v3530 = vsel %vm3456, %v2261, 0
  %v3533 = vsel %vm3456, %v2267, 0
  %v3536 = vsel %vm3456, %v2273, 0
  %v3539 = vsel %vm3456, %v2279, 0
  %v3542 = vsel %vm3456, %v2285, 0
  %v3545 = vsel %vm3456, %v2291, 0
  %v3548 = vsel %vm3456, %v2297, 0
  %v3551 = vsel %vm3456, %v2303, 0
  %v3554 = vsel %vm3456, %v2309, 0
  %v3557 = vsel %vm3456, %v2315, 0
  %v3560 = vsel %vm3456, %v2321, 0
  %v3563 = vsel %vm3456, %v2327, 0
  %v3566 = vsel %vm3456, %v2333, 0
  %v3569 = vsel %vm3456, %v2339, 0
  %v3572 = vsel %vm3456, %v2345, 0
  %v3575 = vsel %vm3456, %v2351, 0
  %v3578 = vsel %vm3456, %v2357, 0
  %v3581 = vsel %vm3456, %v2363, 0
  %v3584 = vsel %vm3456, %v2369, 0
  %v3587 = vsel %vm3456, %v2375, 0
  %v3590 = vsel %vm3456, %v2381, 0
  %v3593 = vsel %vm3456, %v2387, 0
  %v3596 = vsel %vm3456, %v2393, 0
  %v3599 = vsel %vm3456, %v2399, 0
  %v3602 = vsel %vm3456, %v2405, 0
  %v3605 = vsel %vm3456, %v2411, 0
  %v3608 = vsel %vm3456, %v2417, 0
  %v3611 = vsel %vm3456, %v2423, 0
  %v3614 = vsel %vm3456, %v2429, 0
  %v3617 = vsel %vm3456, %v2435, 0
  %v3620 = vsel %vm3456, %v2441, 0
  %v3623 = vsel %vm3456, %v2447, 0
  %v3626 = vsel %vm3456, %v2453, 0
  %v3629 = vsel %vm3456, %v2459, 0
  %v3632 = vsel %vm3456, %v2465, 0
  %v3635 = vsel %vm3456, %v2471, 0
  %v3638 = vsel %vm3456, %v2477, 0
  %v3641 = vsel %vm3456, %v2483, 0
  %v3644 = vsel %vm3456, %v2489, 0
  %v3647 = vsel %vm3456, %v2495, 0
  %v3650 = vsel %vm3456, %v2501, 0
  %v3653 = vsel %vm3456, %v2507, 0
  %v3656 = vsel %vm3456, %v2513, 0
  %v3659 = vsel %vm3456, %v2519, 0
  %v3662 = vsel %vm3456, %v2525, 0
  %v3665 = vsel %vm3456, %v2531, 0
  %v3668 = vsel %vm3456, %v2537, 0
  %v3671 = vsel %vm3456, %v2543, 0
  %v3674 = vsel %vm3456, %v2549, 0
  %v3677 = vsel %vm3456, %v2555, 0
  %v3680 = vsel %vm3456, %v2561, 0
  %v3683 = vsel %vm3456, %v2567, 0
  %v3686 = vsel %vm3456, %v2573, 0
  %v3689 = vsel %vm3456, %v2579, 0
  %v3692 = vsel %vm3456, %v2585, 0
  %v3695 = vsel %vm3456, %v2591, 0
  %v3698 = vsel %vm3456, %v2597, 0
  %v3701 = vsel %vm3456, %v2603, 0
  %v3704 = vsel %vm3456, %v2609, 0
  %v3707 = vsel %vm3456, %v2615, 0
  %3709 = vmatprep.subr.bf16.mxu0 %v3289
  %3710 = vmatpush1.bf16.msra.mxu0 %v3288
  %3711 = vmatprep.subr.bf16.mxu0 %v3291
  %3712 = vmatpush1.bf16.msra.mxu0 %v3290
  %3713 = vmatprep.subr.bf16.mxu0 %v3293
  %3714 = vmatpush1.bf16.msra.mxu0 %v3292
  %3715 = vmatprep.subr.bf16.mxu0 %v3295
  %3716 = vmatpush1.bf16.msra.mxu0 %v3294
  %3717 = vmatprep.subr.bf16.mxu0 %v3297
  %3718 = vmatpush1.bf16.msra.mxu0 %v3296
  %3719 = vmatprep.subr.bf16.mxu0 %v3299
  %3720 = vmatpush1.bf16.msra.mxu0 %v3298
  %3721 = vmatprep.subr.bf16.mxu0 %v3301
  %3722 = vmatpush1.bf16.msra.mxu0 %v3300
  %3723 = vmatprep.subr.bf16.mxu0 %v3303
  %3724 = vmatpush1.bf16.msra.mxu0 %v3302
  %3725 = vmatprep.subr.bf16.mxu0 %v3305
  %3726 = vmatpush1.bf16.msra.mxu0 %v3304
  %3727 = vmatprep.subr.bf16.mxu0 %v3307
  %3728 = vmatpush1.bf16.msra.mxu0 %v3306
  %3729 = vmatprep.subr.bf16.mxu0 %v3309
  %3730 = vmatpush1.bf16.msra.mxu0 %v3308
  %3731 = vmatprep.subr.bf16.mxu0 %v3311
  %3732 = vmatpush1.bf16.msra.mxu0 %v3310
  %3733 = vmatprep.subr.bf16.mxu0 %v3313
  %3734 = vmatpush1.bf16.msra.mxu0 %v3312
  %3735 = vmatprep.subr.bf16.mxu0 %v3315
  %3736 = vmatpush1.bf16.msra.mxu0 %v3314
  %3737 = vmatprep.subr.bf16.mxu0 %v3317
  %3738 = vmatpush1.bf16.msra.mxu0 %v3316
  %3739 = vmatprep.subr.bf16.mxu0 %v3319
  %3740 = vmatpush1.bf16.msra.mxu0 %v3318
  %3741 = vmatprep.mubr.bf16.mxu0 %v2113
  %3742 = vmatmul.mubr.bf16.gmra.mrb[0].mxu0 %v2112
  %v3743 = vpop.f32.mrb[0].mxu0
  %v3744 = vadd.f32 0.0, %v3743
  %v3745 = vpop.f32.mrb[0].mxu0
  %v3746 = vadd.f32 0.0, %v3745
  %v3747 = vpop.f32.mrb[0].mxu0
  %v3748 = vadd.f32 0.0, %v3747
  %v3749 = vpop.f32.mrb[0].mxu0
  %v3750 = vadd.f32 0.0, %v3749
  %3751 = vmatprep.mubr.bf16.mxu0 %v2119
  %3752 = vmatmul.mubr.bf16.gmra.mrb[0].mxu0 %v2118
  %v3753 = vpop.f32.mrb[0].mxu0
  %v3754 = vadd.f32 0.0, %v3753
  %v3755 = vpop.f32.mrb[0].mxu0
  %v3756 = vadd.f32 0.0, %v3755
  %v3757 = vpop.f32.mrb[0].mxu0
  %v3758 = vadd.f32 0.0, %v3757
  %v3759 = vpop.f32.mrb[0].mxu0
  %v3760 = vadd.f32 0.0, %v3759
  %3761 = vmatprep.mubr.bf16.mxu0 %v2125
  %3762 = vmatmul.mubr.bf16.gmra.mrb[0].mxu0 %v2124
  %v3763 = vpop.f32.mrb[0].mxu0
  %v3764 = vadd.f32 0.0, %v3763
  %v3765 = vpop.f32.mrb[0].mxu0
  %v3766 = vadd.f32 0.0, %v3765
  %v3767 = vpop.f32.mrb[0].mxu0
  %v3768 = vadd.f32 0.0, %v3767
  %v3769 = vpop.f32.mrb[0].mxu0
  %v3770 = vadd.f32 0.0, %v3769
  %3771 = vmatprep.mubr.bf16.mxu0 %v2131
  %3772 = vmatmul.mubr.bf16.gmra.mrb[0].mxu0 %v2130
  %v3773 = vpop.f32.mrb[0].mxu0
  %v3774 = vadd.f32 0.0, %v3773
  %v3775 = vpop.f32.mrb[0].mxu0
  %v3776 = vadd.f32 0.0, %v3775
  %v3777 = vpop.f32.mrb[0].mxu0
  %v3778 = vadd.f32 0.0, %v3777
  %v3779 = vpop.f32.mrb[0].mxu0
  %v3780 = vadd.f32 0.0, %v3779
  %3781 = vmatprep.mubr.bf16.mxu0 %v2137
  %3782 = vmatmul.mubr.bf16.gmra.mrb[0].mxu0 %v2136
  %v3783 = vpop.f32.mrb[0].mxu0
  %v3784 = vadd.f32 0.0, %v3783
  %v3785 = vpop.f32.mrb[0].mxu0
  %v3786 = vadd.f32 0.0, %v3785
  %v3787 = vpop.f32.mrb[0].mxu0
  %v3788 = vadd.f32 0.0, %v3787
  %v3789 = vpop.f32.mrb[0].mxu0
  %v3790 = vadd.f32 0.0, %v3789
  %3791 = vmatprep.mubr.bf16.mxu0 %v2143
  %3792 = vmatmul.mubr.bf16.gmra.mrb[0].mxu0 %v2142
  %v3793 = vpop.f32.mrb[0].mxu0
  %v3794 = vadd.f32 0.0, %v3793
  %v3795 = vpop.f32.mrb[0].mxu0
  %v3796 = vadd.f32 0.0, %v3795
  %v3797 = vpop.f32.mrb[0].mxu0
  %v3798 = vadd.f32 0.0, %v3797
  %v3799 = vpop.f32.mrb[0].mxu0
  %v3800 = vadd.f32 0.0, %v3799
  %3801 = vmatprep.mubr.bf16.mxu0 %v2149
  %3802 = vmatmul.mubr.bf16.gmra.mrb[0].mxu0 %v2148
  %v3803 = vpop.f32.mrb[0].mxu0
  %v3804 = vadd.f32 0.0, %v3803
  %v3805 = vpop.f32.mrb[0].mxu0
  %v3806 = vadd.f32 0.0, %v3805
  %v3807 = vpop.f32.mrb[0].mxu0
  %v3808 = vadd.f32 0.0, %v3807
  %v3809 = vpop.f32.mrb[0].mxu0
  %v3810 = vadd.f32 0.0, %v3809
  %3811 = vmatprep.mubr.bf16.mxu0 %v2155
  %3812 = vmatmul.mubr.bf16.gmra.mrb[0].mxu0 %v2154
  %v3813 = vpop.f32.mrb[0].mxu0
  %v3814 = vadd.f32 0.0, %v3813
  %v3815 = vpop.f32.mrb[0].mxu0
  %v3816 = vadd.f32 0.0, %v3815
  %v3817 = vpop.f32.mrb[0].mxu0
  %v3818 = vadd.f32 0.0, %v3817
  %v3819 = vpop.f32.mrb[0].mxu0
  %v3820 = vadd.f32 0.0, %v3819
  %3821 = vmatprep.mubr.bf16.mxu0 %v2161
  %3822 = vmatmul.mubr.bf16.gmra.mrb[0].mxu0 %v2160
  %v3823 = vpop.f32.mrb[0].mxu0
  %v3824 = vadd.f32 0.0, %v3823
  %v3825 = vpop.f32.mrb[0].mxu0
  %v3826 = vadd.f32 0.0, %v3825
  %v3827 = vpop.f32.mrb[0].mxu0
  %v3828 = vadd.f32 0.0, %v3827
  %v3829 = vpop.f32.mrb[0].mxu0
  %v3830 = vadd.f32 0.0, %v3829
  %3831 = vmatprep.mubr.bf16.mxu0 %v2167
  %3832 = vmatmul.mubr.bf16.gmra.mrb[0].mxu0 %v2166
  %v3833 = vpop.f32.mrb[0].mxu0
  %v3834 = vadd.f32 0.0, %v3833
  %v3835 = vpop.f32.mrb[0].mxu0
  %v3836 = vadd.f32 0.0, %v3835
  %v3837 = vpop.f32.mrb[0].mxu0
  %v3838 = vadd.f32 0.0, %v3837
  %v3839 = vpop.f32.mrb[0].mxu0
  %v3840 = vadd.f32 0.0, %v3839
  %3841 = vmatprep.mubr.bf16.mxu0 %v2173
  %3842 = vmatmul.mubr.bf16.gmra.mrb[0].mxu0 %v2172
  %v3843 = vpop.f32.mrb[0].mxu0
  %v3844 = vadd.f32 0.0, %v3843
  %v3845 = vpop.f32.mrb[0].mxu0
  %v3846 = vadd.f32 0.0, %v3845
  %v3847 = vpop.f32.mrb[0].mxu0
  %v3848 = vadd.f32 0.0, %v3847
  %v3849 = vpop.f32.mrb[0].mxu0
  %v3850 = vadd.f32 0.0, %v3849
  %3851 = vmatprep.mubr.bf16.mxu0 %v2179
  %3852 = vmatmul.mubr.bf16.gmra.mrb[0].mxu0 %v2178
  %v3853 = vpop.f32.mrb[0].mxu0
  %v3854 = vadd.f32 0.0, %v3853
  %v3855 = vpop.f32.mrb[0].mxu0
  %v3856 = vadd.f32 0.0, %v3855
  %v3857 = vpop.f32.mrb[0].mxu0
  %v3858 = vadd.f32 0.0, %v3857
  %v3859 = vpop.f32.mrb[0].mxu0
  %v3860 = vadd.f32 0.0, %v3859
  %3861 = vmatprep.mubr.bf16.mxu0 %v2185
  %3862 = vmatmul.mubr.bf16.gmra.mrb[0].mxu0 %v2184
  %v3863 = vpop.f32.mrb[0].mxu0
  %v3864 = vadd.f32 0.0, %v3863
  %v3865 = vpop.f32.mrb[0].mxu0
  %v3866 = vadd.f32 0.0, %v3865
  %v3867 = vpop.f32.mrb[0].mxu0
  %v3868 = vadd.f32 0.0, %v3867
  %v3869 = vpop.f32.mrb[0].mxu0
  %v3870 = vadd.f32 0.0, %v3869
  %3871 = vmatprep.mubr.bf16.mxu0 %v2191
  %3872 = vmatmul.mubr.bf16.gmra.mrb[0].mxu0 %v2190
  %v3873 = vpop.f32.mrb[0].mxu0
  %v3874 = vadd.f32 0.0, %v3873
  %v3875 = vpop.f32.mrb[0].mxu0
  %v3876 = vadd.f32 0.0, %v3875
  %v3877 = vpop.f32.mrb[0].mxu0
  %v3878 = vadd.f32 0.0, %v3877
  %v3879 = vpop.f32.mrb[0].mxu0
  %v3880 = vadd.f32 0.0, %v3879
  %3881 = vmatprep.mubr.bf16.mxu0 %v2197
  %3882 = vmatmul.mubr.bf16.gmra.mrb[0].mxu0 %v2196
  %v3883 = vpop.f32.mrb[0].mxu0
  %v3884 = vadd.f32 0.0, %v3883
  %v3885 = vpop.f32.mrb[0].mxu0
  %v3886 = vadd.f32 0.0, %v3885
  %v3887 = vpop.f32.mrb[0].mxu0
  %v3888 = vadd.f32 0.0, %v3887
  %v3889 = vpop.f32.mrb[0].mxu0
  %v3890 = vadd.f32 0.0, %v3889
  %3891 = vmatprep.mubr.bf16.mxu0 %v2203
  %3892 = vmatmul.mubr.bf16.gmra.mrb[0].mxu0 %v2202
  %v3893 = vpop.f32.mrb[0].mxu0
  %v3894 = vadd.f32 0.0, %v3893
  %v3895 = vpop.f32.mrb[0].mxu0
  %v3896 = vadd.f32 0.0, %v3895
  %v3897 = vpop.f32.mrb[0].mxu0
  %v3898 = vadd.f32 0.0, %v3897
  %v3899 = vpop.f32.mrb[0].mxu0
  %v3900 = vadd.f32 0.0, %v3899
  %3901 = vmatprep.mubr.bf16.mxu0 %v2209
  %3902 = vmatmul.mubr.bf16.gmra.mrb[0].mxu0 %v2208
  %v3903 = vpop.f32.mrb[0].mxu0
  %v3904 = vadd.f32 0.0, %v3903
  %v3905 = vpop.f32.mrb[0].mxu0
  %v3906 = vadd.f32 0.0, %v3905
  %v3907 = vpop.f32.mrb[0].mxu0
  %v3908 = vadd.f32 0.0, %v3907
  %v3909 = vpop.f32.mrb[0].mxu0
  %v3910 = vadd.f32 0.0, %v3909
  %3911 = vmatprep.mubr.bf16.mxu0 %v2215
  %3912 = vmatmul.mubr.bf16.gmra.mrb[0].mxu0 %v2214
  %v3913 = vpop.f32.mrb[0].mxu0
  %v3914 = vadd.f32 0.0, %v3913
  %v3915 = vpop.f32.mrb[0].mxu0
  %v3916 = vadd.f32 0.0, %v3915
  %v3917 = vpop.f32.mrb[0].mxu0
  %v3918 = vadd.f32 0.0, %v3917
  %v3919 = vpop.f32.mrb[0].mxu0
  %v3920 = vadd.f32 0.0, %v3919
  %3921 = vmatprep.mubr.bf16.mxu0 %v2221
  %3922 = vmatmul.mubr.bf16.gmra.mrb[0].mxu0 %v2220
  %v3923 = vpop.f32.mrb[0].mxu0
  %v3924 = vadd.f32 0.0, %v3923
  %v3925 = vpop.f32.mrb[0].mxu0
  %v3926 = vadd.f32 0.0, %v3925
  %v3927 = vpop.f32.mrb[0].mxu0
  %v3928 = vadd.f32 0.0, %v3927
  %v3929 = vpop.f32.mrb[0].mxu0
  %v3930 = vadd.f32 0.0, %v3929
  %3931 = vmatprep.mubr.bf16.mxu0 %v2227
  %3932 = vmatmul.mubr.bf16.gmra.mrb[0].mxu0 %v2226
  %v3933 = vpop.f32.mrb[0].mxu0
  %v3934 = vadd.f32 0.0, %v3933
  %v3935 = vpop.f32.mrb[0].mxu0
  %v3936 = vadd.f32 0.0, %v3935
  %v3937 = vpop.f32.mrb[0].mxu0
  %v3938 = vadd.f32 0.0, %v3937
  %v3939 = vpop.f32.mrb[0].mxu0
  %v3940 = vadd.f32 0.0, %v3939
  %3941 = vmatprep.mubr.bf16.mxu0 %v2233
  %3942 = vmatmul.mubr.bf16.gmra.mrb[0].mxu0 %v2232
  %v3943 = vpop.f32.mrb[0].mxu0
  %v3944 = vadd.f32 0.0, %v3943
  %v3945 = vpop.f32.mrb[0].mxu0
  %v3946 = vadd.f32 0.0, %v3945
  %v3947 = vpop.f32.mrb[0].mxu0
  %v3948 = vadd.f32 0.0, %v3947
  %v3949 = vpop.f32.mrb[0].mxu0
  %v3950 = vadd.f32 0.0, %v3949
  %3951 = vmatprep.mubr.bf16.mxu0 %v2239
  %3952 = vmatmul.mubr.bf16.gmra.mrb[0].mxu0 %v2238
  %v3953 = vpop.f32.mrb[0].mxu0
  %v3954 = vadd.f32 0.0, %v3953
  %v3955 = vpop.f32.mrb[0].mxu0
  %v3956 = vadd.f32 0.0, %v3955
  %v3957 = vpop.f32.mrb[0].mxu0
  %v3958 = vadd.f32 0.0, %v3957
  %v3959 = vpop.f32.mrb[0].mxu0
  %v3960 = vadd.f32 0.0, %v3959
  %3961 = vmatprep.mubr.bf16.mxu0 %v2245
  %3962 = vmatmul.mubr.bf16.gmra.mrb[0].mxu0 %v2244
  %v3963 = vpop.f32.mrb[0].mxu0
  %v3964 = vadd.f32 0.0, %v3963
  %v3965 = vpop.f32.mrb[0].mxu0
  %v3966 = vadd.f32 0.0, %v3965
  %v3967 = vpop.f32.mrb[0].mxu0
  %v3968 = vadd.f32 0.0, %v3967
  %v3969 = vpop.f32.mrb[0].mxu0
  %v3970 = vadd.f32 0.0, %v3969
  %3971 = vmatprep.mubr.bf16.mxu0 %v2251
  %3972 = vmatmul.mubr.bf16.gmra.mrb[0].mxu0 %v2250
  %v3973 = vpop.f32.mrb[0].mxu0
  %v3974 = vadd.f32 0.0, %v3973
  %v3975 = vpop.f32.mrb[0].mxu0
  %v3976 = vadd.f32 0.0, %v3975
  %v3977 = vpop.f32.mrb[0].mxu0
  %v3978 = vadd.f32 0.0, %v3977
  %v3979 = vpop.f32.mrb[0].mxu0
  %v3980 = vadd.f32 0.0, %v3979
  %3981 = vmatprep.mubr.bf16.mxu0 %v2257
  %3982 = vmatmul.mubr.bf16.gmra.mrb[0].mxu0 %v2256
  %v3983 = vpop.f32.mrb[0].mxu0
  %v3984 = vadd.f32 0.0, %v3983
  %v3985 = vpop.f32.mrb[0].mxu0
  %v3986 = vadd.f32 0.0, %v3985
  %v3987 = vpop.f32.mrb[0].mxu0
  %v3988 = vadd.f32 0.0, %v3987
  %v3989 = vpop.f32.mrb[0].mxu0
  %v3990 = vadd.f32 0.0, %v3989
  %3991 = vmatprep.mubr.bf16.mxu0 %v2263
  %3992 = vmatmul.mubr.bf16.gmra.mrb[0].mxu0 %v2262
  %v3993 = vpop.f32.mrb[0].mxu0
  %v3994 = vadd.f32 0.0, %v3993
  %v3995 = vpop.f32.mrb[0].mxu0
  %v3996 = vadd.f32 0.0, %v3995
  %v3997 = vpop.f32.mrb[0].mxu0
  %v3998 = vadd.f32 0.0, %v3997
  %v3999 = vpop.f32.mrb[0].mxu0
  %v4000 = vadd.f32 0.0, %v3999
  %4001 = vmatprep.mubr.bf16.mxu0 %v2269
  %4002 = vmatmul.mubr.bf16.gmra.mrb[0].mxu0 %v2268
  %v4003 = vpop.f32.mrb[0].mxu0
  %v4004 = vadd.f32 0.0, %v4003
  %v4005 = vpop.f32.mrb[0].mxu0
  %v4006 = vadd.f32 0.0, %v4005
  %v4007 = vpop.f32.mrb[0].mxu0
  %v4008 = vadd.f32 0.0, %v4007
  %v4009 = vpop.f32.mrb[0].mxu0
  %v4010 = vadd.f32 0.0, %v4009
  %4011 = vmatprep.mubr.bf16.mxu0 %v2275
  %4012 = vmatmul.mubr.bf16.gmra.mrb[0].mxu0 %v2274
  %v4013 = vpop.f32.mrb[0].mxu0
  %v4014 = vadd.f32 0.0, %v4013
  %v4015 = vpop.f32.mrb[0].mxu0
  %v4016 = vadd.f32 0.0, %v4015
  %v4017 = vpop.f32.mrb[0].mxu0
  %v4018 = vadd.f32 0.0, %v4017
  %v4019 = vpop.f32.mrb[0].mxu0
  %v4020 = vadd.f32 0.0, %v4019
  %4021 = vmatprep.mubr.bf16.mxu0 %v2281
  %4022 = vmatmul.mubr.bf16.gmra.mrb[0].mxu0 %v2280
  %v4023 = vpop.f32.mrb[0].mxu0
  %v4024 = vadd.f32 0.0, %v4023
  %v4025 = vpop.f32.mrb[0].mxu0
  %v4026 = vadd.f32 0.0, %v4025
  %v4027 = vpop.f32.mrb[0].mxu0
  %v4028 = vadd.f32 0.0, %v4027
  %v4029 = vpop.f32.mrb[0].mxu0
  %v4030 = vadd.f32 0.0, %v4029
  %4031 = vmatprep.mubr.bf16.mxu0 %v2287
  %4032 = vmatmul.mubr.bf16.gmra.mrb[0].mxu0 %v2286
  %v4033 = vpop.f32.mrb[0].mxu0
  %v4034 = vadd.f32 0.0, %v4033
  %v4035 = vpop.f32.mrb[0].mxu0
  %v4036 = vadd.f32 0.0, %v4035
  %v4037 = vpop.f32.mrb[0].mxu0
  %v4038 = vadd.f32 0.0, %v4037
  %v4039 = vpop.f32.mrb[0].mxu0
  %v4040 = vadd.f32 0.0, %v4039
  %4041 = vmatprep.mubr.bf16.mxu0 %v2293
  %4042 = vmatmul.mubr.bf16.gmra.mrb[0].mxu0 %v2292
  %v4043 = vpop.f32.mrb[0].mxu0
  %v4044 = vadd.f32 0.0, %v4043
  %v4045 = vpop.f32.mrb[0].mxu0
  %v4046 = vadd.f32 0.0, %v4045
  %v4047 = vpop.f32.mrb[0].mxu0
  %v4048 = vadd.f32 0.0, %v4047
  %v4049 = vpop.f32.mrb[0].mxu0
  %v4050 = vadd.f32 0.0, %v4049
  %4051 = vmatprep.mubr.bf16.mxu0 %v2299
  %4052 = vmatmul.mubr.bf16.gmra.mrb[0].mxu0 %v2298
  %v4053 = vpop.f32.mrb[0].mxu0
  %v4054 = vadd.f32 0.0, %v4053
  %v4055 = vpop.f32.mrb[0].mxu0
  %v4056 = vadd.f32 0.0, %v4055
  %v4057 = vpop.f32.mrb[0].mxu0
  %v4058 = vadd.f32 0.0, %v4057
  %v4059 = vpop.f32.mrb[0].mxu0
  %v4060 = vadd.f32 0.0, %v4059
  %4061 = vmatprep.mubr.bf16.mxu0 %v2305
  %4062 = vmatmul.mubr.bf16.gmra.mrb[0].mxu0 %v2304
  %v4063 = vpop.f32.mrb[0].mxu0
  %v4064 = vadd.f32 0.0, %v4063
  %v4065 = vpop.f32.mrb[0].mxu0
  %v4066 = vadd.f32 0.0, %v4065
  %v4067 = vpop.f32.mrb[0].mxu0
  %v4068 = vadd.f32 0.0, %v4067
  %v4069 = vpop.f32.mrb[0].mxu0
  %v4070 = vadd.f32 0.0, %v4069
  %4071 = vmatprep.mubr.bf16.mxu0 %v2311
  %4072 = vmatmul.mubr.bf16.gmra.mrb[0].mxu0 %v2310
  %v4073 = vpop.f32.mrb[0].mxu0
  %v4074 = vadd.f32 0.0, %v4073
  %v4075 = vpop.f32.mrb[0].mxu0
  %v4076 = vadd.f32 0.0, %v4075
  %v4077 = vpop.f32.mrb[0].mxu0
  %v4078 = vadd.f32 0.0, %v4077
  %v4079 = vpop.f32.mrb[0].mxu0
  %v4080 = vadd.f32 0.0, %v4079
  %4081 = vmatprep.mubr.bf16.mxu0 %v2317
  %4082 = vmatmul.mubr.bf16.gmra.mrb[0].mxu0 %v2316
  %v4083 = vpop.f32.mrb[0].mxu0
  %v4084 = vadd.f32 0.0, %v4083
  %v4085 = vpop.f32.mrb[0].mxu0
  %v4086 = vadd.f32 0.0, %v4085
  %v4087 = vpop.f32.mrb[0].mxu0
  %v4088 = vadd.f32 0.0, %v4087
  %v4089 = vpop.f32.mrb[0].mxu0
  %v4090 = vadd.f32 0.0, %v4089
  %4091 = vmatprep.mubr.bf16.mxu0 %v2323
  %4092 = vmatmul.mubr.bf16.gmra.mrb[0].mxu0 %v2322
  %v4093 = vpop.f32.mrb[0].mxu0
  %v4094 = vadd.f32 0.0, %v4093
  %v4095 = vpop.f32.mrb[0].mxu0
  %v4096 = vadd.f32 0.0, %v4095
  %v4097 = vpop.f32.mrb[0].mxu0
  %v4098 = vadd.f32 0.0, %v4097
  %v4099 = vpop.f32.mrb[0].mxu0
  %v4100 = vadd.f32 0.0, %v4099
  %4101 = vmatprep.mubr.bf16.mxu0 %v2329
  %4102 = vmatmul.mubr.bf16.gmra.mrb[0].mxu0 %v2328
  %v4103 = vpop.f32.mrb[0].mxu0
  %v4104 = vadd.f32 0.0, %v4103
  %v4105 = vpop.f32.mrb[0].mxu0
  %v4106 = vadd.f32 0.0, %v4105
  %v4107 = vpop.f32.mrb[0].mxu0
  %v4108 = vadd.f32 0.0, %v4107
  %v4109 = vpop.f32.mrb[0].mxu0
  %v4110 = vadd.f32 0.0, %v4109
  %4111 = vmatprep.mubr.bf16.mxu0 %v2335
  %4112 = vmatmul.mubr.bf16.gmra.mrb[0].mxu0 %v2334
  %v4113 = vpop.f32.mrb[0].mxu0
  %v4114 = vadd.f32 0.0, %v4113
  %v4115 = vpop.f32.mrb[0].mxu0
  %v4116 = vadd.f32 0.0, %v4115
  %v4117 = vpop.f32.mrb[0].mxu0
  %v4118 = vadd.f32 0.0, %v4117
  %v4119 = vpop.f32.mrb[0].mxu0
  %v4120 = vadd.f32 0.0, %v4119
  %4121 = vmatprep.mubr.bf16.mxu0 %v2341
  %4122 = vmatmul.mubr.bf16.gmra.mrb[0].mxu0 %v2340
  %v4123 = vpop.f32.mrb[0].mxu0
  %v4124 = vadd.f32 0.0, %v4123
  %v4125 = vpop.f32.mrb[0].mxu0
  %v4126 = vadd.f32 0.0, %v4125
  %v4127 = vpop.f32.mrb[0].mxu0
  %v4128 = vadd.f32 0.0, %v4127
  %v4129 = vpop.f32.mrb[0].mxu0
  %v4130 = vadd.f32 0.0, %v4129
  %4131 = vmatprep.mubr.bf16.mxu0 %v2347
  %4132 = vmatmul.mubr.bf16.gmra.mrb[0].mxu0 %v2346
  %v4133 = vpop.f32.mrb[0].mxu0
  %v4134 = vadd.f32 0.0, %v4133
  %v4135 = vpop.f32.mrb[0].mxu0
  %v4136 = vadd.f32 0.0, %v4135
  %v4137 = vpop.f32.mrb[0].mxu0
  %v4138 = vadd.f32 0.0, %v4137
  %v4139 = vpop.f32.mrb[0].mxu0
  %v4140 = vadd.f32 0.0, %v4139
  %4141 = vmatprep.mubr.bf16.mxu0 %v2353
  %4142 = vmatmul.mubr.bf16.gmra.mrb[0].mxu0 %v2352
  %v4143 = vpop.f32.mrb[0].mxu0
  %v4144 = vadd.f32 0.0, %v4143
  %v4145 = vpop.f32.mrb[0].mxu0
  %v4146 = vadd.f32 0.0, %v4145
  %v4147 = vpop.f32.mrb[0].mxu0
  %v4148 = vadd.f32 0.0, %v4147
  %v4149 = vpop.f32.mrb[0].mxu0
  %v4150 = vadd.f32 0.0, %v4149
  %4151 = vmatprep.mubr.bf16.mxu0 %v2359
  %4152 = vmatmul.mubr.bf16.gmra.mrb[0].mxu0 %v2358
  %v4153 = vpop.f32.mrb[0].mxu0
  %v4154 = vadd.f32 0.0, %v4153
  %v4155 = vpop.f32.mrb[0].mxu0
  %v4156 = vadd.f32 0.0, %v4155
  %v4157 = vpop.f32.mrb[0].mxu0
  %v4158 = vadd.f32 0.0, %v4157
  %v4159 = vpop.f32.mrb[0].mxu0
  %v4160 = vadd.f32 0.0, %v4159
  %4161 = vmatprep.mubr.bf16.mxu0 %v2365
  %4162 = vmatmul.mubr.bf16.gmra.mrb[0].mxu0 %v2364
  %v4163 = vpop.f32.mrb[0].mxu0
  %v4164 = vadd.f32 0.0, %v4163
  %v4165 = vpop.f32.mrb[0].mxu0
  %v4166 = vadd.f32 0.0, %v4165
  %v4167 = vpop.f32.mrb[0].mxu0
  %v4168 = vadd.f32 0.0, %v4167
  %v4169 = vpop.f32.mrb[0].mxu0
  %v4170 = vadd.f32 0.0, %v4169
  %4171 = vmatprep.mubr.bf16.mxu0 %v2371
  %4172 = vmatmul.mubr.bf16.gmra.mrb[0].mxu0 %v2370
  %v4173 = vpop.f32.mrb[0].mxu0
  %v4174 = vadd.f32 0.0, %v4173
  %v4175 = vpop.f32.mrb[0].mxu0
  %v4176 = vadd.f32 0.0, %v4175
  %v4177 = vpop.f32.mrb[0].mxu0
  %v4178 = vadd.f32 0.0, %v4177
  %v4179 = vpop.f32.mrb[0].mxu0
  %v4180 = vadd.f32 0.0, %v4179
  %4181 = vmatprep.mubr.bf16.mxu0 %v2377
  %4182 = vmatmul.mubr.bf16.gmra.mrb[0].mxu0 %v2376
  %v4183 = vpop.f32.mrb[0].mxu0
  %v4184 = vadd.f32 0.0, %v4183
  %v4185 = vpop.f32.mrb[0].mxu0
  %v4186 = vadd.f32 0.0, %v4185
  %v4187 = vpop.f32.mrb[0].mxu0
  %v4188 = vadd.f32 0.0, %v4187
  %v4189 = vpop.f32.mrb[0].mxu0
  %v4190 = vadd.f32 0.0, %v4189
  %4191 = vmatprep.mubr.bf16.mxu0 %v2383
  %4192 = vmatmul.mubr.bf16.gmra.mrb[0].mxu0 %v2382
  %v4193 = vpop.f32.mrb[0].mxu0
  %v4194 = vadd.f32 0.0, %v4193
  %v4195 = vpop.f32.mrb[0].mxu0
  %v4196 = vadd.f32 0.0, %v4195
  %v4197 = vpop.f32.mrb[0].mxu0
  %v4198 = vadd.f32 0.0, %v4197
  %v4199 = vpop.f32.mrb[0].mxu0
  %v4200 = vadd.f32 0.0, %v4199
  %4201 = vmatprep.mubr.bf16.mxu0 %v2389
  %4202 = vmatmul.mubr.bf16.gmra.mrb[0].mxu0 %v2388
  %v4203 = vpop.f32.mrb[0].mxu0
  %v4204 = vadd.f32 0.0, %v4203
  %v4205 = vpop.f32.mrb[0].mxu0
  %v4206 = vadd.f32 0.0, %v4205
  %v4207 = vpop.f32.mrb[0].mxu0
  %v4208 = vadd.f32 0.0, %v4207
  %v4209 = vpop.f32.mrb[0].mxu0
  %v4210 = vadd.f32 0.0, %v4209
  %4211 = vmatprep.mubr.bf16.mxu0 %v2395
  %4212 = vmatmul.mubr.bf16.gmra.mrb[0].mxu0 %v2394
  %v4213 = vpop.f32.mrb[0].mxu0
  %v4214 = vadd.f32 0.0, %v4213
  %v4215 = vpop.f32.mrb[0].mxu0
  %v4216 = vadd.f32 0.0, %v4215
  %v4217 = vpop.f32.mrb[0].mxu0
  %v4218 = vadd.f32 0.0, %v4217
  %v4219 = vpop.f32.mrb[0].mxu0
  %v4220 = vadd.f32 0.0, %v4219
  %4221 = vmatprep.mubr.bf16.mxu0 %v2401
  %4222 = vmatmul.mubr.bf16.gmra.mrb[0].mxu0 %v2400
  %v4223 = vpop.f32.mrb[0].mxu0
  %v4224 = vadd.f32 0.0, %v4223
  %v4225 = vpop.f32.mrb[0].mxu0
  %v4226 = vadd.f32 0.0, %v4225
  %v4227 = vpop.f32.mrb[0].mxu0
  %v4228 = vadd.f32 0.0, %v4227
  %v4229 = vpop.f32.mrb[0].mxu0
  %v4230 = vadd.f32 0.0, %v4229
  %4231 = vmatprep.mubr.bf16.mxu0 %v2407
  %4232 = vmatmul.mubr.bf16.gmra.mrb[0].mxu0 %v2406
  %v4233 = vpop.f32.mrb[0].mxu0
  %v4234 = vadd.f32 0.0, %v4233
  %v4235 = vpop.f32.mrb[0].mxu0
  %v4236 = vadd.f32 0.0, %v4235
  %v4237 = vpop.f32.mrb[0].mxu0
  %v4238 = vadd.f32 0.0, %v4237
  %v4239 = vpop.f32.mrb[0].mxu0
  %v4240 = vadd.f32 0.0, %v4239
  %4241 = vmatprep.mubr.bf16.mxu0 %v2413
  %4242 = vmatmul.mubr.bf16.gmra.mrb[0].mxu0 %v2412
  %v4243 = vpop.f32.mrb[0].mxu0
  %v4244 = vadd.f32 0.0, %v4243
  %v4245 = vpop.f32.mrb[0].mxu0
  %v4246 = vadd.f32 0.0, %v4245
  %v4247 = vpop.f32.mrb[0].mxu0
  %v4248 = vadd.f32 0.0, %v4247
  %v4249 = vpop.f32.mrb[0].mxu0
  %v4250 = vadd.f32 0.0, %v4249
  %4251 = vmatprep.mubr.bf16.mxu0 %v2419
  %4252 = vmatmul.mubr.bf16.gmra.mrb[0].mxu0 %v2418
  %v4253 = vpop.f32.mrb[0].mxu0
  %v4254 = vadd.f32 0.0, %v4253
  %v4255 = vpop.f32.mrb[0].mxu0
  %v4256 = vadd.f32 0.0, %v4255
  %v4257 = vpop.f32.mrb[0].mxu0
  %v4258 = vadd.f32 0.0, %v4257
  %v4259 = vpop.f32.mrb[0].mxu0
  %v4260 = vadd.f32 0.0, %v4259
  %4261 = vmatprep.mubr.bf16.mxu0 %v2425
  %4262 = vmatmul.mubr.bf16.gmra.mrb[0].mxu0 %v2424
  %v4263 = vpop.f32.mrb[0].mxu0
  %v4264 = vadd.f32 0.0, %v4263
  %v4265 = vpop.f32.mrb[0].mxu0
  %v4266 = vadd.f32 0.0, %v4265
  %v4267 = vpop.f32.mrb[0].mxu0
  %v4268 = vadd.f32 0.0, %v4267
  %v4269 = vpop.f32.mrb[0].mxu0
  %v4270 = vadd.f32 0.0, %v4269
  %4271 = vmatprep.mubr.bf16.mxu0 %v2431
  %4272 = vmatmul.mubr.bf16.gmra.mrb[0].mxu0 %v2430
  %v4273 = vpop.f32.mrb[0].mxu0
  %v4274 = vadd.f32 0.0, %v4273
  %v4275 = vpop.f32.mrb[0].mxu0
  %v4276 = vadd.f32 0.0, %v4275
  %v4277 = vpop.f32.mrb[0].mxu0
  %v4278 = vadd.f32 0.0, %v4277
  %v4279 = vpop.f32.mrb[0].mxu0
  %v4280 = vadd.f32 0.0, %v4279
  %4281 = vmatprep.mubr.bf16.mxu0 %v2437
  %4282 = vmatmul.mubr.bf16.gmra.mrb[0].mxu0 %v2436
  %v4283 = vpop.f32.mrb[0].mxu0
  %v4284 = vadd.f32 0.0, %v4283
  %v4285 = vpop.f32.mrb[0].mxu0
  %v4286 = vadd.f32 0.0, %v4285
  %v4287 = vpop.f32.mrb[0].mxu0
  %v4288 = vadd.f32 0.0, %v4287
  %v4289 = vpop.f32.mrb[0].mxu0
  %v4290 = vadd.f32 0.0, %v4289
  %4291 = vmatprep.mubr.bf16.mxu0 %v2443
  %4292 = vmatmul.mubr.bf16.gmra.mrb[0].mxu0 %v2442
  %v4293 = vpop.f32.mrb[0].mxu0
  %v4294 = vadd.f32 0.0, %v4293
  %v4295 = vpop.f32.mrb[0].mxu0
  %v4296 = vadd.f32 0.0, %v4295
  %v4297 = vpop.f32.mrb[0].mxu0
  %v4298 = vadd.f32 0.0, %v4297
  %v4299 = vpop.f32.mrb[0].mxu0
  %v4300 = vadd.f32 0.0, %v4299
  %4301 = vmatprep.mubr.bf16.mxu0 %v2449
  %4302 = vmatmul.mubr.bf16.gmra.mrb[0].mxu0 %v2448
  %v4303 = vpop.f32.mrb[0].mxu0
  %v4304 = vadd.f32 0.0, %v4303
  %v4305 = vpop.f32.mrb[0].mxu0
  %v4306 = vadd.f32 0.0, %v4305
  %v4307 = vpop.f32.mrb[0].mxu0
  %v4308 = vadd.f32 0.0, %v4307
  %v4309 = vpop.f32.mrb[0].mxu0
  %v4310 = vadd.f32 0.0, %v4309
  %4311 = vmatprep.mubr.bf16.mxu0 %v2455
  %4312 = vmatmul.mubr.bf16.gmra.mrb[0].mxu0 %v2454
  %v4313 = vpop.f32.mrb[0].mxu0
  %v4314 = vadd.f32 0.0, %v4313
  %v4315 = vpop.f32.mrb[0].mxu0
  %v4316 = vadd.f32 0.0, %v4315
  %v4317 = vpop.f32.mrb[0].mxu0
  %v4318 = vadd.f32 0.0, %v4317
  %v4319 = vpop.f32.mrb[0].mxu0
  %v4320 = vadd.f32 0.0, %v4319
  %4321 = vmatprep.mubr.bf16.mxu0 %v2461
  %4322 = vmatmul.mubr.bf16.gmra.mrb[0].mxu0 %v2460
  %v4323 = vpop.f32.mrb[0].mxu0
  %v4324 = vadd.f32 0.0, %v4323
  %v4325 = vpop.f32.mrb[0].mxu0
  %v4326 = vadd.f32 0.0, %v4325
  %v4327 = vpop.f32.mrb[0].mxu0
  %v4328 = vadd.f32 0.0, %v4327
  %v4329 = vpop.f32.mrb[0].mxu0
  %v4330 = vadd.f32 0.0, %v4329
  %4331 = vmatprep.mubr.bf16.mxu0 %v2467
  %4332 = vmatmul.mubr.bf16.gmra.mrb[0].mxu0 %v2466
  %v4333 = vpop.f32.mrb[0].mxu0
  %v4334 = vadd.f32 0.0, %v4333
  %v4335 = vpop.f32.mrb[0].mxu0
  %v4336 = vadd.f32 0.0, %v4335
  %v4337 = vpop.f32.mrb[0].mxu0
  %v4338 = vadd.f32 0.0, %v4337
  %v4339 = vpop.f32.mrb[0].mxu0
  %v4340 = vadd.f32 0.0, %v4339
  %4341 = vmatprep.mubr.bf16.mxu0 %v2473
  %4342 = vmatmul.mubr.bf16.gmra.mrb[0].mxu0 %v2472
  %v4343 = vpop.f32.mrb[0].mxu0
  %v4344 = vadd.f32 0.0, %v4343
  %v4345 = vpop.f32.mrb[0].mxu0
  %v4346 = vadd.f32 0.0, %v4345
  %v4347 = vpop.f32.mrb[0].mxu0
  %v4348 = vadd.f32 0.0, %v4347
  %v4349 = vpop.f32.mrb[0].mxu0
  %v4350 = vadd.f32 0.0, %v4349
  %4351 = vmatprep.mubr.bf16.mxu0 %v2479
  %4352 = vmatmul.mubr.bf16.gmra.mrb[0].mxu0 %v2478
  %v4353 = vpop.f32.mrb[0].mxu0
  %v4354 = vadd.f32 0.0, %v4353
  %v4355 = vpop.f32.mrb[0].mxu0
  %v4356 = vadd.f32 0.0, %v4355
  %v4357 = vpop.f32.mrb[0].mxu0
  %v4358 = vadd.f32 0.0, %v4357
  %v4359 = vpop.f32.mrb[0].mxu0
  %v4360 = vadd.f32 0.0, %v4359
  %4361 = vmatprep.mubr.bf16.mxu0 %v2485
  %4362 = vmatmul.mubr.bf16.gmra.mrb[0].mxu0 %v2484
  %v4363 = vpop.f32.mrb[0].mxu0
  %v4364 = vadd.f32 0.0, %v4363
  %v4365 = vpop.f32.mrb[0].mxu0
  %v4366 = vadd.f32 0.0, %v4365
  %v4367 = vpop.f32.mrb[0].mxu0
  %v4368 = vadd.f32 0.0, %v4367
  %v4369 = vpop.f32.mrb[0].mxu0
  %v4370 = vadd.f32 0.0, %v4369
  %4371 = vmatprep.mubr.bf16.mxu0 %v2491
  %4372 = vmatmul.mubr.bf16.gmra.mrb[0].mxu0 %v2490
  %v4373 = vpop.f32.mrb[0].mxu0
  %v4374 = vadd.f32 0.0, %v4373
  %v4375 = vpop.f32.mrb[0].mxu0
  %v4376 = vadd.f32 0.0, %v4375
  %v4377 = vpop.f32.mrb[0].mxu0
  %v4378 = vadd.f32 0.0, %v4377
  %v4379 = vpop.f32.mrb[0].mxu0
  %v4380 = vadd.f32 0.0, %v4379
  %4381 = vmatprep.mubr.bf16.mxu0 %v2497
  %4382 = vmatmul.mubr.bf16.gmra.mrb[0].mxu0 %v2496
  %v4383 = vpop.f32.mrb[0].mxu0
  %v4384 = vadd.f32 0.0, %v4383
  %v4385 = vpop.f32.mrb[0].mxu0
  %v4386 = vadd.f32 0.0, %v4385
  %v4387 = vpop.f32.mrb[0].mxu0
  %v4388 = vadd.f32 0.0, %v4387
  %v4389 = vpop.f32.mrb[0].mxu0
  %v4390 = vadd.f32 0.0, %v4389
  %4391 = vmatprep.mubr.bf16.mxu0 %v2503
  %4392 = vmatmul.mubr.bf16.gmra.mrb[0].mxu0 %v2502
  %v4393 = vpop.f32.mrb[0].mxu0
  %v4394 = vadd.f32 0.0, %v4393
  %v4395 = vpop.f32.mrb[0].mxu0
  %v4396 = vadd.f32 0.0, %v4395
  %v4397 = vpop.f32.mrb[0].mxu0
  %v4398 = vadd.f32 0.0, %v4397
  %v4399 = vpop.f32.mrb[0].mxu0
  %v4400 = vadd.f32 0.0, %v4399
  %4401 = vmatprep.mubr.bf16.mxu0 %v2509
  %4402 = vmatmul.mubr.bf16.gmra.mrb[0].mxu0 %v2508
  %v4403 = vpop.f32.mrb[0].mxu0
  %v4404 = vadd.f32 0.0, %v4403
  %v4405 = vpop.f32.mrb[0].mxu0
  %v4406 = vadd.f32 0.0, %v4405
  %v4407 = vpop.f32.mrb[0].mxu0
  %v4408 = vadd.f32 0.0, %v4407
  %v4409 = vpop.f32.mrb[0].mxu0
  %v4410 = vadd.f32 0.0, %v4409
  %4411 = vmatprep.mubr.bf16.mxu0 %v2515
  %4412 = vmatmul.mubr.bf16.gmra.mrb[0].mxu0 %v2514
  %v4413 = vpop.f32.mrb[0].mxu0
  %v4414 = vadd.f32 0.0, %v4413
  %v4415 = vpop.f32.mrb[0].mxu0
  %v4416 = vadd.f32 0.0, %v4415
  %v4417 = vpop.f32.mrb[0].mxu0
  %v4418 = vadd.f32 0.0, %v4417
  %v4419 = vpop.f32.mrb[0].mxu0
  %v4420 = vadd.f32 0.0, %v4419
  %4421 = vmatprep.mubr.bf16.mxu0 %v2521
  %4422 = vmatmul.mubr.bf16.gmra.mrb[0].mxu0 %v2520
  %v4423 = vpop.f32.mrb[0].mxu0
  %v4424 = vadd.f32 0.0, %v4423
  %v4425 = vpop.f32.mrb[0].mxu0
  %v4426 = vadd.f32 0.0, %v4425
  %v4427 = vpop.f32.mrb[0].mxu0
  %v4428 = vadd.f32 0.0, %v4427
  %v4429 = vpop.f32.mrb[0].mxu0
  %v4430 = vadd.f32 0.0, %v4429
  %4431 = vmatprep.mubr.bf16.mxu0 %v2527
  %4432 = vmatmul.mubr.bf16.gmra.mrb[0].mxu0 %v2526
  %v4433 = vpop.f32.mrb[0].mxu0
  %v4434 = vadd.f32 0.0, %v4433
  %v4435 = vpop.f32.mrb[0].mxu0
  %v4436 = vadd.f32 0.0, %v4435
  %v4437 = vpop.f32.mrb[0].mxu0
  %v4438 = vadd.f32 0.0, %v4437
  %v4439 = vpop.f32.mrb[0].mxu0
  %v4440 = vadd.f32 0.0, %v4439
  %4441 = vmatprep.mubr.bf16.mxu0 %v2533
  %4442 = vmatmul.mubr.bf16.gmra.mrb[0].mxu0 %v2532
  %v4443 = vpop.f32.mrb[0].mxu0
  %v4444 = vadd.f32 0.0, %v4443
  %v4445 = vpop.f32.mrb[0].mxu0
  %v4446 = vadd.f32 0.0, %v4445
  %v4447 = vpop.f32.mrb[0].mxu0
  %v4448 = vadd.f32 0.0, %v4447
  %v4449 = vpop.f32.mrb[0].mxu0
  %v4450 = vadd.f32 0.0, %v4449
  %4451 = vmatprep.mubr.bf16.mxu0 %v2539
  %4452 = vmatmul.mubr.bf16.gmra.mrb[0].mxu0 %v2538
  %v4453 = vpop.f32.mrb[0].mxu0
  %v4454 = vadd.f32 0.0, %v4453
  %v4455 = vpop.f32.mrb[0].mxu0
  %v4456 = vadd.f32 0.0, %v4455
  %v4457 = vpop.f32.mrb[0].mxu0
  %v4458 = vadd.f32 0.0, %v4457
  %v4459 = vpop.f32.mrb[0].mxu0
  %v4460 = vadd.f32 0.0, %v4459
  %4461 = vmatprep.mubr.bf16.mxu0 %v2545
  %4462 = vmatmul.mubr.bf16.gmra.mrb[0].mxu0 %v2544
  %v4463 = vpop.f32.mrb[0].mxu0
  %v4464 = vadd.f32 0.0, %v4463
  %v4465 = vpop.f32.mrb[0].mxu0
  %v4466 = vadd.f32 0.0, %v4465
  %v4467 = vpop.f32.mrb[0].mxu0
  %v4468 = vadd.f32 0.0, %v4467
  %v4469 = vpop.f32.mrb[0].mxu0
  %v4470 = vadd.f32 0.0, %v4469
  %4471 = vmatprep.mubr.bf16.mxu0 %v2551
  %4472 = vmatmul.mubr.bf16.gmra.mrb[0].mxu0 %v2550
  %v4473 = vpop.f32.mrb[0].mxu0
  %v4474 = vadd.f32 0.0, %v4473
  %v4475 = vpop.f32.mrb[0].mxu0
  %v4476 = vadd.f32 0.0, %v4475
  %v4477 = vpop.f32.mrb[0].mxu0
  %v4478 = vadd.f32 0.0, %v4477
  %v4479 = vpop.f32.mrb[0].mxu0
  %v4480 = vadd.f32 0.0, %v4479
  %4481 = vmatprep.mubr.bf16.mxu0 %v2557
  %4482 = vmatmul.mubr.bf16.gmra.mrb[0].mxu0 %v2556
  %v4483 = vpop.f32.mrb[0].mxu0
  %v4484 = vadd.f32 0.0, %v4483
  %v4485 = vpop.f32.mrb[0].mxu0
  %v4486 = vadd.f32 0.0, %v4485
  %v4487 = vpop.f32.mrb[0].mxu0
  %v4488 = vadd.f32 0.0, %v4487
  %v4489 = vpop.f32.mrb[0].mxu0
  %v4490 = vadd.f32 0.0, %v4489
  %4491 = vmatprep.mubr.bf16.mxu0 %v2563
  %4492 = vmatmul.mubr.bf16.gmra.mrb[0].mxu0 %v2562
  %v4493 = vpop.f32.mrb[0].mxu0
  %v4494 = vadd.f32 0.0, %v4493
  %v4495 = vpop.f32.mrb[0].mxu0
  %v4496 = vadd.f32 0.0, %v4495
  %v4497 = vpop.f32.mrb[0].mxu0
  %v4498 = vadd.f32 0.0, %v4497
  %v4499 = vpop.f32.mrb[0].mxu0
  %v4500 = vadd.f32 0.0, %v4499
  %4501 = vmatprep.mubr.bf16.mxu0 %v2569
  %4502 = vmatmul.mubr.bf16.gmra.mrb[0].mxu0 %v2568
  %v4503 = vpop.f32.mrb[0].mxu0
  %v4504 = vadd.f32 0.0, %v4503
  %v4505 = vpop.f32.mrb[0].mxu0
  %v4506 = vadd.f32 0.0, %v4505
  %v4507 = vpop.f32.mrb[0].mxu0
  %v4508 = vadd.f32 0.0, %v4507
  %v4509 = vpop.f32.mrb[0].mxu0
  %v4510 = vadd.f32 0.0, %v4509
  %4511 = vmatprep.mubr.bf16.mxu0 %v2575
  %4512 = vmatmul.mubr.bf16.gmra.mrb[0].mxu0 %v2574
  %v4513 = vpop.f32.mrb[0].mxu0
  %v4514 = vadd.f32 0.0, %v4513
  %v4515 = vpop.f32.mrb[0].mxu0
  %v4516 = vadd.f32 0.0, %v4515
  %v4517 = vpop.f32.mrb[0].mxu0
  %v4518 = vadd.f32 0.0, %v4517
  %v4519 = vpop.f32.mrb[0].mxu0
  %v4520 = vadd.f32 0.0, %v4519
  %4521 = vmatprep.mubr.bf16.mxu0 %v2581
  %4522 = vmatmul.mubr.bf16.gmra.mrb[0].mxu0 %v2580
  %v4523 = vpop.f32.mrb[0].mxu0
  %v4524 = vadd.f32 0.0, %v4523
  %v4525 = vpop.f32.mrb[0].mxu0
  %v4526 = vadd.f32 0.0, %v4525
  %v4527 = vpop.f32.mrb[0].mxu0
  %v4528 = vadd.f32 0.0, %v4527
  %v4529 = vpop.f32.mrb[0].mxu0
  %v4530 = vadd.f32 0.0, %v4529
  %4531 = vmatprep.mubr.bf16.mxu0 %v2587
  %4532 = vmatmul.mubr.bf16.gmra.mrb[0].mxu0 %v2586
  %v4533 = vpop.f32.mrb[0].mxu0
  %v4534 = vadd.f32 0.0, %v4533
  %v4535 = vpop.f32.mrb[0].mxu0
  %v4536 = vadd.f32 0.0, %v4535
  %v4537 = vpop.f32.mrb[0].mxu0
  %v4538 = vadd.f32 0.0, %v4537
  %v4539 = vpop.f32.mrb[0].mxu0
  %v4540 = vadd.f32 0.0, %v4539
  %4541 = vmatprep.mubr.bf16.mxu0 %v2593
  %4542 = vmatmul.mubr.bf16.gmra.mrb[0].mxu0 %v2592
  %v4543 = vpop.f32.mrb[0].mxu0
  %v4544 = vadd.f32 0.0, %v4543
  %v4545 = vpop.f32.mrb[0].mxu0
  %v4546 = vadd.f32 0.0, %v4545
  %v4547 = vpop.f32.mrb[0].mxu0
  %v4548 = vadd.f32 0.0, %v4547
  %v4549 = vpop.f32.mrb[0].mxu0
  %v4550 = vadd.f32 0.0, %v4549
  %4551 = vmatprep.mubr.bf16.mxu0 %v2599
  %4552 = vmatmul.mubr.bf16.gmra.mrb[0].mxu0 %v2598
  %v4553 = vpop.f32.mrb[0].mxu0
  %v4554 = vadd.f32 0.0, %v4553
  %v4555 = vpop.f32.mrb[0].mxu0
  %v4556 = vadd.f32 0.0, %v4555
  %v4557 = vpop.f32.mrb[0].mxu0
  %v4558 = vadd.f32 0.0, %v4557
  %v4559 = vpop.f32.mrb[0].mxu0
  %v4560 = vadd.f32 0.0, %v4559
  %4561 = vmatprep.mubr.bf16.mxu0 %v2605
  %4562 = vmatmul.mubr.bf16.gmra.mrb[0].mxu0 %v2604
  %v4563 = vpop.f32.mrb[0].mxu0
  %v4564 = vadd.f32 0.0, %v4563
  %v4565 = vpop.f32.mrb[0].mxu0
  %v4566 = vadd.f32 0.0, %v4565
  %v4567 = vpop.f32.mrb[0].mxu0
  %v4568 = vadd.f32 0.0, %v4567
  %v4569 = vpop.f32.mrb[0].mxu0
  %v4570 = vadd.f32 0.0, %v4569
  %4571 = vmatprep.mubr.bf16.mxu0 %v2611
  %4572 = vmatmul.mubr.bf16.gmra.mrb[0].mxu0 %v2610
  %v4573 = vpop.f32.mrb[0].mxu0
  %v4574 = vadd.f32 0.0, %v4573
  %v4575 = vpop.f32.mrb[0].mxu0
  %v4576 = vadd.f32 0.0, %v4575
  %v4577 = vpop.f32.mrb[0].mxu0
  %v4578 = vadd.f32 0.0, %v4577
  %v4579 = vpop.f32.mrb[0].mxu0
  %v4580 = vadd.f32 0.0, %v4579
  %4581 = vdwg.mxu0
  %4582 = vmatprep.subr.bf16.mxu0 %v3321
  %4583 = vmatpush1.bf16.msra.mxu0 %v3320
  %4584 = vmatprep.subr.bf16.mxu0 %v3323
  %4585 = vmatpush1.bf16.msra.mxu0 %v3322
  %4586 = vmatprep.subr.bf16.mxu0 %v3325
  %4587 = vmatpush1.bf16.msra.mxu0 %v3324
  %4588 = vmatprep.subr.bf16.mxu0 %v3327
  %4589 = vmatpush1.bf16.msra.mxu0 %v3326
  %4590 = vmatprep.subr.bf16.mxu0 %v3329
  %4591 = vmatpush1.bf16.msra.mxu0 %v3328
  %4592 = vmatprep.subr.bf16.mxu0 %v3331
  %4593 = vmatpush1.bf16.msra.mxu0 %v3330
  %4594 = vmatprep.subr.bf16.mxu0 %v3333
  %4595 = vmatpush1.bf16.msra.mxu0 %v3332
  %4596 = vmatprep.subr.bf16.mxu0 %v3335
  %4597 = vmatpush1.bf16.msra.mxu0 %v3334
  %4598 = vmatprep.subr.bf16.mxu0 %v3337
  %4599 = vmatpush1.bf16.msra.mxu0 %v3336
  %4600 = vmatprep.subr.bf16.mxu0 %v3339
  %4601 = vmatpush1.bf16.msra.mxu0 %v3338
  %4602 = vmatprep.subr.bf16.mxu0 %v3341
  %4603 = vmatpush1.bf16.msra.mxu0 %v3340
  %4604 = vmatprep.subr.bf16.mxu0 %v3343
  %4605 = vmatpush1.bf16.msra.mxu0 %v3342
  %4606 = vmatprep.subr.bf16.mxu0 %v3345
  %4607 = vmatpush1.bf16.msra.mxu0 %v3344
  %4608 = vmatprep.subr.bf16.mxu0 %v3347
  %4609 = vmatpush1.bf16.msra.mxu0 %v3346
  %4610 = vmatprep.subr.bf16.mxu0 %v3349
  %4611 = vmatpush1.bf16.msra.mxu0 %v3348
  %4612 = vmatprep.subr.bf16.mxu0 %v3351
  %4613 = vmatpush1.bf16.msra.mxu0 %v3350
  %4614 = vmatprep.mubr.bf16.mxu0 %v2115
  %4615 = vmatmul.mubr.bf16.gmra.mrb[0].mxu0 %v2114
  %v4616 = vpop.f32.mrb[0].mxu0
  %v4617 = vadd.f32 %v3744, %v4616
  %v4618 = vpop.f32.mrb[0].mxu0
  %v4619 = vadd.f32 %v3746, %v4618
  %v4620 = vpop.f32.mrb[0].mxu0
  %v4621 = vadd.f32 %v3748, %v4620
  %v4622 = vpop.f32.mrb[0].mxu0
  %v4623 = vadd.f32 %v3750, %v4622
  %4624 = vmatprep.mubr.bf16.mxu0 %v2121
  %4625 = vmatmul.mubr.bf16.gmra.mrb[0].mxu0 %v2120
  %v4626 = vpop.f32.mrb[0].mxu0
  %v4627 = vadd.f32 %v3754, %v4626
  %v4628 = vpop.f32.mrb[0].mxu0
  %v4629 = vadd.f32 %v3756, %v4628
  %v4630 = vpop.f32.mrb[0].mxu0
  %v4631 = vadd.f32 %v3758, %v4630
  %v4632 = vpop.f32.mrb[0].mxu0
  %v4633 = vadd.f32 %v3760, %v4632
  %4634 = vmatprep.mubr.bf16.mxu0 %v2127
  %4635 = vmatmul.mubr.bf16.gmra.mrb[0].mxu0 %v2126
  %v4636 = vpop.f32.mrb[0].mxu0
  %v4637 = vadd.f32 %v3764, %v4636
  %v4638 = vpop.f32.mrb[0].mxu0
  %v4639 = vadd.f32 %v3766, %v4638
  %v4640 = vpop.f32.mrb[0].mxu0
  %v4641 = vadd.f32 %v3768, %v4640
  %v4642 = vpop.f32.mrb[0].mxu0
  %v4643 = vadd.f32 %v3770, %v4642
  %4644 = vmatprep.mubr.bf16.mxu0 %v2133
  %4645 = vmatmul.mubr.bf16.gmra.mrb[0].mxu0 %v2132
  %v4646 = vpop.f32.mrb[0].mxu0
  %v4647 = vadd.f32 %v3774, %v4646
  %v4648 = vpop.f32.mrb[0].mxu0
  %v4649 = vadd.f32 %v3776, %v4648
  %v4650 = vpop.f32.mrb[0].mxu0
  %v4651 = vadd.f32 %v3778, %v4650
  %v4652 = vpop.f32.mrb[0].mxu0
  %v4653 = vadd.f32 %v3780, %v4652
  %4654 = vmatprep.mubr.bf16.mxu0 %v2139
  %4655 = vmatmul.mubr.bf16.gmra.mrb[0].mxu0 %v2138
  %v4656 = vpop.f32.mrb[0].mxu0
  %v4657 = vadd.f32 %v3784, %v4656
  %v4658 = vpop.f32.mrb[0].mxu0
  %v4659 = vadd.f32 %v3786, %v4658
  %v4660 = vpop.f32.mrb[0].mxu0
  %v4661 = vadd.f32 %v3788, %v4660
  %v4662 = vpop.f32.mrb[0].mxu0
  %v4663 = vadd.f32 %v3790, %v4662
  %4664 = vmatprep.mubr.bf16.mxu0 %v2145
  %4665 = vmatmul.mubr.bf16.gmra.mrb[0].mxu0 %v2144
  %v4666 = vpop.f32.mrb[0].mxu0
  %v4667 = vadd.f32 %v3794, %v4666
  %v4668 = vpop.f32.mrb[0].mxu0
  %v4669 = vadd.f32 %v3796, %v4668
  %v4670 = vpop.f32.mrb[0].mxu0
  %v4671 = vadd.f32 %v3798, %v4670
  %v4672 = vpop.f32.mrb[0].mxu0
  %v4673 = vadd.f32 %v3800, %v4672
  %4674 = vmatprep.mubr.bf16.mxu0 %v2151
  %4675 = vmatmul.mubr.bf16.gmra.mrb[0].mxu0 %v2150
  %v4676 = vpop.f32.mrb[0].mxu0
  %v4677 = vadd.f32 %v3804, %v4676
  %v4678 = vpop.f32.mrb[0].mxu0
  %v4679 = vadd.f32 %v3806, %v4678
  %v4680 = vpop.f32.mrb[0].mxu0
  %v4681 = vadd.f32 %v3808, %v4680
  %v4682 = vpop.f32.mrb[0].mxu0
  %v4683 = vadd.f32 %v3810, %v4682
  %4684 = vmatprep.mubr.bf16.mxu0 %v2157
  %4685 = vmatmul.mubr.bf16.gmra.mrb[0].mxu0 %v2156
  %v4686 = vpop.f32.mrb[0].mxu0
  %v4687 = vadd.f32 %v3814, %v4686
  %v4688 = vpop.f32.mrb[0].mxu0
  %v4689 = vadd.f32 %v3816, %v4688
  %v4690 = vpop.f32.mrb[0].mxu0
  %v4691 = vadd.f32 %v3818, %v4690
  %v4692 = vpop.f32.mrb[0].mxu0
  %v4693 = vadd.f32 %v3820, %v4692
  %4694 = vmatprep.mubr.bf16.mxu0 %v2163
  %4695 = vmatmul.mubr.bf16.gmra.mrb[0].mxu0 %v2162
  %v4696 = vpop.f32.mrb[0].mxu0
  %v4697 = vadd.f32 %v3824, %v4696
  %v4698 = vpop.f32.mrb[0].mxu0
  %v4699 = vadd.f32 %v3826, %v4698
  %v4700 = vpop.f32.mrb[0].mxu0
  %v4701 = vadd.f32 %v3828, %v4700
  %v4702 = vpop.f32.mrb[0].mxu0
  %v4703 = vadd.f32 %v3830, %v4702
  %4704 = vmatprep.mubr.bf16.mxu0 %v2169
  %4705 = vmatmul.mubr.bf16.gmra.mrb[0].mxu0 %v2168
  %v4706 = vpop.f32.mrb[0].mxu0
  %v4707 = vadd.f32 %v3834, %v4706
  %v4708 = vpop.f32.mrb[0].mxu0
  %v4709 = vadd.f32 %v3836, %v4708
  %v4710 = vpop.f32.mrb[0].mxu0
  %v4711 = vadd.f32 %v3838, %v4710
  %v4712 = vpop.f32.mrb[0].mxu0
  %v4713 = vadd.f32 %v3840, %v4712
  %4714 = vmatprep.mubr.bf16.mxu0 %v2175
  %4715 = vmatmul.mubr.bf16.gmra.mrb[0].mxu0 %v2174
  %v4716 = vpop.f32.mrb[0].mxu0
  %v4717 = vadd.f32 %v3844, %v4716
  %v4718 = vpop.f32.mrb[0].mxu0
  %v4719 = vadd.f32 %v3846, %v4718
  %v4720 = vpop.f32.mrb[0].mxu0
  %v4721 = vadd.f32 %v3848, %v4720
  %v4722 = vpop.f32.mrb[0].mxu0
  %v4723 = vadd.f32 %v3850, %v4722
  %4724 = vmatprep.mubr.bf16.mxu0 %v2181
  %4725 = vmatmul.mubr.bf16.gmra.mrb[0].mxu0 %v2180
  %v4726 = vpop.f32.mrb[0].mxu0
  %v4727 = vadd.f32 %v3854, %v4726
  %v4728 = vpop.f32.mrb[0].mxu0
  %v4729 = vadd.f32 %v3856, %v4728
  %v4730 = vpop.f32.mrb[0].mxu0
  %v4731 = vadd.f32 %v3858, %v4730
  %v4732 = vpop.f32.mrb[0].mxu0
  %v4733 = vadd.f32 %v3860, %v4732
  %4734 = vmatprep.mubr.bf16.mxu0 %v2187
  %4735 = vmatmul.mubr.bf16.gmra.mrb[0].mxu0 %v2186
  %v4736 = vpop.f32.mrb[0].mxu0
  %v4737 = vadd.f32 %v3864, %v4736
  %v4738 = vpop.f32.mrb[0].mxu0
  %v4739 = vadd.f32 %v3866, %v4738
  %v4740 = vpop.f32.mrb[0].mxu0
  %v4741 = vadd.f32 %v3868, %v4740
  %v4742 = vpop.f32.mrb[0].mxu0
  %v4743 = vadd.f32 %v3870, %v4742
  %4744 = vmatprep.mubr.bf16.mxu0 %v2193
  %4745 = vmatmul.mubr.bf16.gmra.mrb[0].mxu0 %v2192
  %v4746 = vpop.f32.mrb[0].mxu0
  %v4747 = vadd.f32 %v3874, %v4746
  %v4748 = vpop.f32.mrb[0].mxu0
  %v4749 = vadd.f32 %v3876, %v4748
  %v4750 = vpop.f32.mrb[0].mxu0
  %v4751 = vadd.f32 %v3878, %v4750
  %v4752 = vpop.f32.mrb[0].mxu0
  %v4753 = vadd.f32 %v3880, %v4752
  %4754 = vmatprep.mubr.bf16.mxu0 %v2199
  %4755 = vmatmul.mubr.bf16.gmra.mrb[0].mxu0 %v2198
  %v4756 = vpop.f32.mrb[0].mxu0
  %v4757 = vadd.f32 %v3884, %v4756
  %v4758 = vpop.f32.mrb[0].mxu0
  %v4759 = vadd.f32 %v3886, %v4758
  %v4760 = vpop.f32.mrb[0].mxu0
  %v4761 = vadd.f32 %v3888, %v4760
  %v4762 = vpop.f32.mrb[0].mxu0
  %v4763 = vadd.f32 %v3890, %v4762
  %4764 = vmatprep.mubr.bf16.mxu0 %v2205
  %4765 = vmatmul.mubr.bf16.gmra.mrb[0].mxu0 %v2204
  %v4766 = vpop.f32.mrb[0].mxu0
  %v4767 = vadd.f32 %v3894, %v4766
  %v4768 = vpop.f32.mrb[0].mxu0
  %v4769 = vadd.f32 %v3896, %v4768
  %v4770 = vpop.f32.mrb[0].mxu0
  %v4771 = vadd.f32 %v3898, %v4770
  %v4772 = vpop.f32.mrb[0].mxu0
  %v4773 = vadd.f32 %v3900, %v4772
  %4774 = vmatprep.mubr.bf16.mxu0 %v2211
  %4775 = vmatmul.mubr.bf16.gmra.mrb[0].mxu0 %v2210
  %v4776 = vpop.f32.mrb[0].mxu0
  %v4777 = vadd.f32 %v3904, %v4776
  %v4778 = vpop.f32.mrb[0].mxu0
  %v4779 = vadd.f32 %v3906, %v4778
  %v4780 = vpop.f32.mrb[0].mxu0
  %v4781 = vadd.f32 %v3908, %v4780
  %v4782 = vpop.f32.mrb[0].mxu0
  %v4783 = vadd.f32 %v3910, %v4782
  %4784 = vmatprep.mubr.bf16.mxu0 %v2217
  %4785 = vmatmul.mubr.bf16.gmra.mrb[0].mxu0 %v2216
  %v4786 = vpop.f32.mrb[0].mxu0
  %v4787 = vadd.f32 %v3914, %v4786
  %v4788 = vpop.f32.mrb[0].mxu0
  %v4789 = vadd.f32 %v3916, %v4788
  %v4790 = vpop.f32.mrb[0].mxu0
  %v4791 = vadd.f32 %v3918, %v4790
  %v4792 = vpop.f32.mrb[0].mxu0
  %v4793 = vadd.f32 %v3920, %v4792
  %4794 = vmatprep.mubr.bf16.mxu0 %v2223
  %4795 = vmatmul.mubr.bf16.gmra.mrb[0].mxu0 %v2222
  %v4796 = vpop.f32.mrb[0].mxu0
  %v4797 = vadd.f32 %v3924, %v4796
  %v4798 = vpop.f32.mrb[0].mxu0
  %v4799 = vadd.f32 %v3926, %v4798
  %v4800 = vpop.f32.mrb[0].mxu0
  %v4801 = vadd.f32 %v3928, %v4800
  %v4802 = vpop.f32.mrb[0].mxu0
  %v4803 = vadd.f32 %v3930, %v4802
  %4804 = vmatprep.mubr.bf16.mxu0 %v2229
  %4805 = vmatmul.mubr.bf16.gmra.mrb[0].mxu0 %v2228
  %v4806 = vpop.f32.mrb[0].mxu0
  %v4807 = vadd.f32 %v3934, %v4806
  %v4808 = vpop.f32.mrb[0].mxu0
  %v4809 = vadd.f32 %v3936, %v4808
  %v4810 = vpop.f32.mrb[0].mxu0
  %v4811 = vadd.f32 %v3938, %v4810
  %v4812 = vpop.f32.mrb[0].mxu0
  %v4813 = vadd.f32 %v3940, %v4812
  %4814 = vmatprep.mubr.bf16.mxu0 %v2235
  %4815 = vmatmul.mubr.bf16.gmra.mrb[0].mxu0 %v2234
  %v4816 = vpop.f32.mrb[0].mxu0
  %v4817 = vadd.f32 %v3944, %v4816
  %v4818 = vpop.f32.mrb[0].mxu0
  %v4819 = vadd.f32 %v3946, %v4818
  %v4820 = vpop.f32.mrb[0].mxu0
  %v4821 = vadd.f32 %v3948, %v4820
  %v4822 = vpop.f32.mrb[0].mxu0
  %v4823 = vadd.f32 %v3950, %v4822
  %4824 = vmatprep.mubr.bf16.mxu0 %v2241
  %4825 = vmatmul.mubr.bf16.gmra.mrb[0].mxu0 %v2240
  %v4826 = vpop.f32.mrb[0].mxu0
  %v4827 = vadd.f32 %v3954, %v4826
  %v4828 = vpop.f32.mrb[0].mxu0
  %v4829 = vadd.f32 %v3956, %v4828
  %v4830 = vpop.f32.mrb[0].mxu0
  %v4831 = vadd.f32 %v3958, %v4830
  %v4832 = vpop.f32.mrb[0].mxu0
  %v4833 = vadd.f32 %v3960, %v4832
  %4834 = vmatprep.mubr.bf16.mxu0 %v2247
  %4835 = vmatmul.mubr.bf16.gmra.mrb[0].mxu0 %v2246
  %v4836 = vpop.f32.mrb[0].mxu0
  %v4837 = vadd.f32 %v3964, %v4836
  %v4838 = vpop.f32.mrb[0].mxu0
  %v4839 = vadd.f32 %v3966, %v4838
  %v4840 = vpop.f32.mrb[0].mxu0
  %v4841 = vadd.f32 %v3968, %v4840
  %v4842 = vpop.f32.mrb[0].mxu0
  %v4843 = vadd.f32 %v3970, %v4842
  %4844 = vmatprep.mubr.bf16.mxu0 %v2253
  %4845 = vmatmul.mubr.bf16.gmra.mrb[0].mxu0 %v2252
  %v4846 = vpop.f32.mrb[0].mxu0
  %v4847 = vadd.f32 %v3974, %v4846
  %v4848 = vpop.f32.mrb[0].mxu0
  %v4849 = vadd.f32 %v3976, %v4848
  %v4850 = vpop.f32.mrb[0].mxu0
  %v4851 = vadd.f32 %v3978, %v4850
  %v4852 = vpop.f32.mrb[0].mxu0
  %v4853 = vadd.f32 %v3980, %v4852
  %4854 = vmatprep.mubr.bf16.mxu0 %v2259
  %4855 = vmatmul.mubr.bf16.gmra.mrb[0].mxu0 %v2258
  %v4856 = vpop.f32.mrb[0].mxu0
  %v4857 = vadd.f32 %v3984, %v4856
  %v4858 = vpop.f32.mrb[0].mxu0
  %v4859 = vadd.f32 %v3986, %v4858
  %v4860 = vpop.f32.mrb[0].mxu0
  %v4861 = vadd.f32 %v3988, %v4860
  %v4862 = vpop.f32.mrb[0].mxu0
  %v4863 = vadd.f32 %v3990, %v4862
  %4864 = vmatprep.mubr.bf16.mxu0 %v2265
  %4865 = vmatmul.mubr.bf16.gmra.mrb[0].mxu0 %v2264
  %v4866 = vpop.f32.mrb[0].mxu0
  %v4867 = vadd.f32 %v3994, %v4866
  %v4868 = vpop.f32.mrb[0].mxu0
  %v4869 = vadd.f32 %v3996, %v4868
  %v4870 = vpop.f32.mrb[0].mxu0
  %v4871 = vadd.f32 %v3998, %v4870
  %v4872 = vpop.f32.mrb[0].mxu0
  %v4873 = vadd.f32 %v4000, %v4872
  %4874 = vmatprep.mubr.bf16.mxu0 %v2271
  %4875 = vmatmul.mubr.bf16.gmra.mrb[0].mxu0 %v2270
  %v4876 = vpop.f32.mrb[0].mxu0
  %v4877 = vadd.f32 %v4004, %v4876
  %v4878 = vpop.f32.mrb[0].mxu0
  %v4879 = vadd.f32 %v4006, %v4878
  %v4880 = vpop.f32.mrb[0].mxu0
  %v4881 = vadd.f32 %v4008, %v4880
  %v4882 = vpop.f32.mrb[0].mxu0
  %v4883 = vadd.f32 %v4010, %v4882
  %4884 = vmatprep.mubr.bf16.mxu0 %v2277
  %4885 = vmatmul.mubr.bf16.gmra.mrb[0].mxu0 %v2276
  %v4886 = vpop.f32.mrb[0].mxu0
  %v4887 = vadd.f32 %v4014, %v4886
  %v4888 = vpop.f32.mrb[0].mxu0
  %v4889 = vadd.f32 %v4016, %v4888
  %v4890 = vpop.f32.mrb[0].mxu0
  %v4891 = vadd.f32 %v4018, %v4890
  %v4892 = vpop.f32.mrb[0].mxu0
  %v4893 = vadd.f32 %v4020, %v4892
  %4894 = vmatprep.mubr.bf16.mxu0 %v2283
  %4895 = vmatmul.mubr.bf16.gmra.mrb[0].mxu0 %v2282
  %v4896 = vpop.f32.mrb[0].mxu0
  %v4897 = vadd.f32 %v4024, %v4896
  %v4898 = vpop.f32.mrb[0].mxu0
  %v4899 = vadd.f32 %v4026, %v4898
  %v4900 = vpop.f32.mrb[0].mxu0
  %v4901 = vadd.f32 %v4028, %v4900
  %v4902 = vpop.f32.mrb[0].mxu0
  %v4903 = vadd.f32 %v4030, %v4902
  %4904 = vmatprep.mubr.bf16.mxu0 %v2289
  %4905 = vmatmul.mubr.bf16.gmra.mrb[0].mxu0 %v2288
  %v4906 = vpop.f32.mrb[0].mxu0
  %v4907 = vadd.f32 %v4034, %v4906
  %v4908 = vpop.f32.mrb[0].mxu0
  %v4909 = vadd.f32 %v4036, %v4908
  %v4910 = vpop.f32.mrb[0].mxu0
  %v4911 = vadd.f32 %v4038, %v4910
  %v4912 = vpop.f32.mrb[0].mxu0
  %v4913 = vadd.f32 %v4040, %v4912
  %4914 = vmatprep.mubr.bf16.mxu0 %v2295
  %4915 = vmatmul.mubr.bf16.gmra.mrb[0].mxu0 %v2294
  %v4916 = vpop.f32.mrb[0].mxu0
  %v4917 = vadd.f32 %v4044, %v4916
  %v4918 = vpop.f32.mrb[0].mxu0
  %v4919 = vadd.f32 %v4046, %v4918
  %v4920 = vpop.f32.mrb[0].mxu0
  %v4921 = vadd.f32 %v4048, %v4920
  %v4922 = vpop.f32.mrb[0].mxu0
  %v4923 = vadd.f32 %v4050, %v4922
  %4924 = vmatprep.mubr.bf16.mxu0 %v2301
  %4925 = vmatmul.mubr.bf16.gmra.mrb[0].mxu0 %v2300
  %v4926 = vpop.f32.mrb[0].mxu0
  %v4927 = vadd.f32 %v4054, %v4926
  %v4928 = vpop.f32.mrb[0].mxu0
  %v4929 = vadd.f32 %v4056, %v4928
  %v4930 = vpop.f32.mrb[0].mxu0
  %v4931 = vadd.f32 %v4058, %v4930
  %v4932 = vpop.f32.mrb[0].mxu0
  %v4933 = vadd.f32 %v4060, %v4932
  %4934 = vmatprep.mubr.bf16.mxu0 %v2307
  %4935 = vmatmul.mubr.bf16.gmra.mrb[0].mxu0 %v2306
  %v4936 = vpop.f32.mrb[0].mxu0
  %v4937 = vadd.f32 %v4064, %v4936
  %v4938 = vpop.f32.mrb[0].mxu0
  %v4939 = vadd.f32 %v4066, %v4938
  %v4940 = vpop.f32.mrb[0].mxu0
  %v4941 = vadd.f32 %v4068, %v4940
  %v4942 = vpop.f32.mrb[0].mxu0
  %v4943 = vadd.f32 %v4070, %v4942
  %4944 = vmatprep.mubr.bf16.mxu0 %v2313
  %4945 = vmatmul.mubr.bf16.gmra.mrb[0].mxu0 %v2312
  %v4946 = vpop.f32.mrb[0].mxu0
  %v4947 = vadd.f32 %v4074, %v4946
  %v4948 = vpop.f32.mrb[0].mxu0
  %v4949 = vadd.f32 %v4076, %v4948
  %v4950 = vpop.f32.mrb[0].mxu0
  %v4951 = vadd.f32 %v4078, %v4950
  %v4952 = vpop.f32.mrb[0].mxu0
  %v4953 = vadd.f32 %v4080, %v4952
  %4954 = vmatprep.mubr.bf16.mxu0 %v2319
  %4955 = vmatmul.mubr.bf16.gmra.mrb[0].mxu0 %v2318
  %v4956 = vpop.f32.mrb[0].mxu0
  %v4957 = vadd.f32 %v4084, %v4956
  %v4958 = vpop.f32.mrb[0].mxu0
  %v4959 = vadd.f32 %v4086, %v4958
  %v4960 = vpop.f32.mrb[0].mxu0
  %v4961 = vadd.f32 %v4088, %v4960
  %v4962 = vpop.f32.mrb[0].mxu0
  %v4963 = vadd.f32 %v4090, %v4962
  %4964 = vmatprep.mubr.bf16.mxu0 %v2325
  %4965 = vmatmul.mubr.bf16.gmra.mrb[0].mxu0 %v2324
  %v4966 = vpop.f32.mrb[0].mxu0
  %v4967 = vadd.f32 %v4094, %v4966
  %v4968 = vpop.f32.mrb[0].mxu0
  %v4969 = vadd.f32 %v4096, %v4968
  %v4970 = vpop.f32.mrb[0].mxu0
  %v4971 = vadd.f32 %v4098, %v4970
  %v4972 = vpop.f32.mrb[0].mxu0
  %v4973 = vadd.f32 %v4100, %v4972
  %4974 = vmatprep.mubr.bf16.mxu0 %v2331
  %4975 = vmatmul.mubr.bf16.gmra.mrb[0].mxu0 %v2330
  %v4976 = vpop.f32.mrb[0].mxu0
  %v4977 = vadd.f32 %v4104, %v4976
  %v4978 = vpop.f32.mrb[0].mxu0
  %v4979 = vadd.f32 %v4106, %v4978
  %v4980 = vpop.f32.mrb[0].mxu0
  %v4981 = vadd.f32 %v4108, %v4980
  %v4982 = vpop.f32.mrb[0].mxu0
  %v4983 = vadd.f32 %v4110, %v4982
  %4984 = vmatprep.mubr.bf16.mxu0 %v2337
  %4985 = vmatmul.mubr.bf16.gmra.mrb[0].mxu0 %v2336
  %v4986 = vpop.f32.mrb[0].mxu0
  %v4987 = vadd.f32 %v4114, %v4986
  %v4988 = vpop.f32.mrb[0].mxu0
  %v4989 = vadd.f32 %v4116, %v4988
  %v4990 = vpop.f32.mrb[0].mxu0
  %v4991 = vadd.f32 %v4118, %v4990
  %v4992 = vpop.f32.mrb[0].mxu0
  %v4993 = vadd.f32 %v4120, %v4992
  %4994 = vmatprep.mubr.bf16.mxu0 %v2343
  %4995 = vmatmul.mubr.bf16.gmra.mrb[0].mxu0 %v2342
  %v4996 = vpop.f32.mrb[0].mxu0
  %v4997 = vadd.f32 %v4124, %v4996
  %v4998 = vpop.f32.mrb[0].mxu0
  %v4999 = vadd.f32 %v4126, %v4998
  %v5000 = vpop.f32.mrb[0].mxu0
  %v5001 = vadd.f32 %v4128, %v5000
  %v5002 = vpop.f32.mrb[0].mxu0
  %v5003 = vadd.f32 %v4130, %v5002
  %5004 = vmatprep.mubr.bf16.mxu0 %v2349
  %5005 = vmatmul.mubr.bf16.gmra.mrb[0].mxu0 %v2348
  %v5006 = vpop.f32.mrb[0].mxu0
  %v5007 = vadd.f32 %v4134, %v5006
  %v5008 = vpop.f32.mrb[0].mxu0
  %v5009 = vadd.f32 %v4136, %v5008
  %v5010 = vpop.f32.mrb[0].mxu0
  %v5011 = vadd.f32 %v4138, %v5010
  %v5012 = vpop.f32.mrb[0].mxu0
  %v5013 = vadd.f32 %v4140, %v5012
  %5014 = vmatprep.mubr.bf16.mxu0 %v2355
  %5015 = vmatmul.mubr.bf16.gmra.mrb[0].mxu0 %v2354
  %v5016 = vpop.f32.mrb[0].mxu0
  %v5017 = vadd.f32 %v4144, %v5016
  %v5018 = vpop.f32.mrb[0].mxu0
  %v5019 = vadd.f32 %v4146, %v5018
  %v5020 = vpop.f32.mrb[0].mxu0
  %v5021 = vadd.f32 %v4148, %v5020
  %v5022 = vpop.f32.mrb[0].mxu0
  %v5023 = vadd.f32 %v4150, %v5022
  %5024 = vmatprep.mubr.bf16.mxu0 %v2361
  %5025 = vmatmul.mubr.bf16.gmra.mrb[0].mxu0 %v2360
  %v5026 = vpop.f32.mrb[0].mxu0
  %v5027 = vadd.f32 %v4154, %v5026
  %v5028 = vpop.f32.mrb[0].mxu0
  %v5029 = vadd.f32 %v4156, %v5028
  %v5030 = vpop.f32.mrb[0].mxu0
  %v5031 = vadd.f32 %v4158, %v5030
  %v5032 = vpop.f32.mrb[0].mxu0
  %v5033 = vadd.f32 %v4160, %v5032
  %5034 = vmatprep.mubr.bf16.mxu0 %v2367
  %5035 = vmatmul.mubr.bf16.gmra.mrb[0].mxu0 %v2366
  %v5036 = vpop.f32.mrb[0].mxu0
  %v5037 = vadd.f32 %v4164, %v5036
  %v5038 = vpop.f32.mrb[0].mxu0
  %v5039 = vadd.f32 %v4166, %v5038
  %v5040 = vpop.f32.mrb[0].mxu0
  %v5041 = vadd.f32 %v4168, %v5040
  %v5042 = vpop.f32.mrb[0].mxu0
  %v5043 = vadd.f32 %v4170, %v5042
  %5044 = vmatprep.mubr.bf16.mxu0 %v2373
  %5045 = vmatmul.mubr.bf16.gmra.mrb[0].mxu0 %v2372
  %v5046 = vpop.f32.mrb[0].mxu0
  %v5047 = vadd.f32 %v4174, %v5046
  %v5048 = vpop.f32.mrb[0].mxu0
  %v5049 = vadd.f32 %v4176, %v5048
  %v5050 = vpop.f32.mrb[0].mxu0
  %v5051 = vadd.f32 %v4178, %v5050
  %v5052 = vpop.f32.mrb[0].mxu0
  %v5053 = vadd.f32 %v4180, %v5052
  %5054 = vmatprep.mubr.bf16.mxu0 %v2379
  %5055 = vmatmul.mubr.bf16.gmra.mrb[0].mxu0 %v2378
  %v5056 = vpop.f32.mrb[0].mxu0
  %v5057 = vadd.f32 %v4184, %v5056
  %v5058 = vpop.f32.mrb[0].mxu0
  %v5059 = vadd.f32 %v4186, %v5058
  %v5060 = vpop.f32.mrb[0].mxu0
  %v5061 = vadd.f32 %v4188, %v5060
  %v5062 = vpop.f32.mrb[0].mxu0
  %v5063 = vadd.f32 %v4190, %v5062
  %5064 = vmatprep.mubr.bf16.mxu0 %v2385
  %5065 = vmatmul.mubr.bf16.gmra.mrb[0].mxu0 %v2384
  %v5066 = vpop.f32.mrb[0].mxu0
  %v5067 = vadd.f32 %v4194, %v5066
  %v5068 = vpop.f32.mrb[0].mxu0
  %v5069 = vadd.f32 %v4196, %v5068
  %v5070 = vpop.f32.mrb[0].mxu0
  %v5071 = vadd.f32 %v4198, %v5070
  %v5072 = vpop.f32.mrb[0].mxu0
  %v5073 = vadd.f32 %v4200, %v5072
  %5074 = vmatprep.mubr.bf16.mxu0 %v2391
  %5075 = vmatmul.mubr.bf16.gmra.mrb[0].mxu0 %v2390
  %v5076 = vpop.f32.mrb[0].mxu0
  %v5077 = vadd.f32 %v4204, %v5076
  %v5078 = vpop.f32.mrb[0].mxu0
  %v5079 = vadd.f32 %v4206, %v5078
  %v5080 = vpop.f32.mrb[0].mxu0
  %v5081 = vadd.f32 %v4208, %v5080
  %v5082 = vpop.f32.mrb[0].mxu0
  %v5083 = vadd.f32 %v4210, %v5082
  %5084 = vmatprep.mubr.bf16.mxu0 %v2397
  %5085 = vmatmul.mubr.bf16.gmra.mrb[0].mxu0 %v2396
  %v5086 = vpop.f32.mrb[0].mxu0
  %v5087 = vadd.f32 %v4214, %v5086
  %v5088 = vpop.f32.mrb[0].mxu0
  %v5089 = vadd.f32 %v4216, %v5088
  %v5090 = vpop.f32.mrb[0].mxu0
  %v5091 = vadd.f32 %v4218, %v5090
  %v5092 = vpop.f32.mrb[0].mxu0
  %v5093 = vadd.f32 %v4220, %v5092
  %5094 = vmatprep.mubr.bf16.mxu0 %v2403
  %5095 = vmatmul.mubr.bf16.gmra.mrb[0].mxu0 %v2402
  %v5096 = vpop.f32.mrb[0].mxu0
  %v5097 = vadd.f32 %v4224, %v5096
  %v5098 = vpop.f32.mrb[0].mxu0
  %v5099 = vadd.f32 %v4226, %v5098
  %v5100 = vpop.f32.mrb[0].mxu0
  %v5101 = vadd.f32 %v4228, %v5100
  %v5102 = vpop.f32.mrb[0].mxu0
  %v5103 = vadd.f32 %v4230, %v5102
  %5104 = vmatprep.mubr.bf16.mxu0 %v2409
  %5105 = vmatmul.mubr.bf16.gmra.mrb[0].mxu0 %v2408
  %v5106 = vpop.f32.mrb[0].mxu0
  %v5107 = vadd.f32 %v4234, %v5106
  %v5108 = vpop.f32.mrb[0].mxu0
  %v5109 = vadd.f32 %v4236, %v5108
  %v5110 = vpop.f32.mrb[0].mxu0
  %v5111 = vadd.f32 %v4238, %v5110
  %v5112 = vpop.f32.mrb[0].mxu0
  %v5113 = vadd.f32 %v4240, %v5112
  %5114 = vmatprep.mubr.bf16.mxu0 %v2415
  %5115 = vmatmul.mubr.bf16.gmra.mrb[0].mxu0 %v2414
  %v5116 = vpop.f32.mrb[0].mxu0
  %v5117 = vadd.f32 %v4244, %v5116
  %v5118 = vpop.f32.mrb[0].mxu0
  %v5119 = vadd.f32 %v4246, %v5118
  %v5120 = vpop.f32.mrb[0].mxu0
  %v5121 = vadd.f32 %v4248, %v5120
  %v5122 = vpop.f32.mrb[0].mxu0
  %v5123 = vadd.f32 %v4250, %v5122
  %5124 = vmatprep.mubr.bf16.mxu0 %v2421
  %5125 = vmatmul.mubr.bf16.gmra.mrb[0].mxu0 %v2420
  %v5126 = vpop.f32.mrb[0].mxu0
  %v5127 = vadd.f32 %v4254, %v5126
  %v5128 = vpop.f32.mrb[0].mxu0
  %v5129 = vadd.f32 %v4256, %v5128
  %v5130 = vpop.f32.mrb[0].mxu0
  %v5131 = vadd.f32 %v4258, %v5130
  %v5132 = vpop.f32.mrb[0].mxu0
  %v5133 = vadd.f32 %v4260, %v5132
  %5134 = vmatprep.mubr.bf16.mxu0 %v2427
  %5135 = vmatmul.mubr.bf16.gmra.mrb[0].mxu0 %v2426
  %v5136 = vpop.f32.mrb[0].mxu0
  %v5137 = vadd.f32 %v4264, %v5136
  %v5138 = vpop.f32.mrb[0].mxu0
  %v5139 = vadd.f32 %v4266, %v5138
  %v5140 = vpop.f32.mrb[0].mxu0
  %v5141 = vadd.f32 %v4268, %v5140
  %v5142 = vpop.f32.mrb[0].mxu0
  %v5143 = vadd.f32 %v4270, %v5142
  %5144 = vmatprep.mubr.bf16.mxu0 %v2433
  %5145 = vmatmul.mubr.bf16.gmra.mrb[0].mxu0 %v2432
  %v5146 = vpop.f32.mrb[0].mxu0
  %v5147 = vadd.f32 %v4274, %v5146
  %v5148 = vpop.f32.mrb[0].mxu0
  %v5149 = vadd.f32 %v4276, %v5148
  %v5150 = vpop.f32.mrb[0].mxu0
  %v5151 = vadd.f32 %v4278, %v5150
  %v5152 = vpop.f32.mrb[0].mxu0
  %v5153 = vadd.f32 %v4280, %v5152
  %5154 = vmatprep.mubr.bf16.mxu0 %v2439
  %5155 = vmatmul.mubr.bf16.gmra.mrb[0].mxu0 %v2438
  %v5156 = vpop.f32.mrb[0].mxu0
  %v5157 = vadd.f32 %v4284, %v5156
  %v5158 = vpop.f32.mrb[0].mxu0
  %v5159 = vadd.f32 %v4286, %v5158
  %v5160 = vpop.f32.mrb[0].mxu0
  %v5161 = vadd.f32 %v4288, %v5160
  %v5162 = vpop.f32.mrb[0].mxu0
  %v5163 = vadd.f32 %v4290, %v5162
  %5164 = vmatprep.mubr.bf16.mxu0 %v2445
  %5165 = vmatmul.mubr.bf16.gmra.mrb[0].mxu0 %v2444
  %v5166 = vpop.f32.mrb[0].mxu0
  %v5167 = vadd.f32 %v4294, %v5166
  %v5168 = vpop.f32.mrb[0].mxu0
  %v5169 = vadd.f32 %v4296, %v5168
  %v5170 = vpop.f32.mrb[0].mxu0
  %v5171 = vadd.f32 %v4298, %v5170
  %v5172 = vpop.f32.mrb[0].mxu0
  %v5173 = vadd.f32 %v4300, %v5172
  %5174 = vmatprep.mubr.bf16.mxu0 %v2451
  %5175 = vmatmul.mubr.bf16.gmra.mrb[0].mxu0 %v2450
  %v5176 = vpop.f32.mrb[0].mxu0
  %v5177 = vadd.f32 %v4304, %v5176
  %v5178 = vpop.f32.mrb[0].mxu0
  %v5179 = vadd.f32 %v4306, %v5178
  %v5180 = vpop.f32.mrb[0].mxu0
  %v5181 = vadd.f32 %v4308, %v5180
  %v5182 = vpop.f32.mrb[0].mxu0
  %v5183 = vadd.f32 %v4310, %v5182
  %5184 = vmatprep.mubr.bf16.mxu0 %v2457
  %5185 = vmatmul.mubr.bf16.gmra.mrb[0].mxu0 %v2456
  %v5186 = vpop.f32.mrb[0].mxu0
  %v5187 = vadd.f32 %v4314, %v5186
  %v5188 = vpop.f32.mrb[0].mxu0
  %v5189 = vadd.f32 %v4316, %v5188
  %v5190 = vpop.f32.mrb[0].mxu0
  %v5191 = vadd.f32 %v4318, %v5190
  %v5192 = vpop.f32.mrb[0].mxu0
  %v5193 = vadd.f32 %v4320, %v5192
  %5194 = vmatprep.mubr.bf16.mxu0 %v2463
  %5195 = vmatmul.mubr.bf16.gmra.mrb[0].mxu0 %v2462
  %v5196 = vpop.f32.mrb[0].mxu0
  %v5197 = vadd.f32 %v4324, %v5196
  %v5198 = vpop.f32.mrb[0].mxu0
  %v5199 = vadd.f32 %v4326, %v5198
  %v5200 = vpop.f32.mrb[0].mxu0
  %v5201 = vadd.f32 %v4328, %v5200
  %v5202 = vpop.f32.mrb[0].mxu0
  %v5203 = vadd.f32 %v4330, %v5202
  %5204 = vmatprep.mubr.bf16.mxu0 %v2469
  %5205 = vmatmul.mubr.bf16.gmra.mrb[0].mxu0 %v2468
  %v5206 = vpop.f32.mrb[0].mxu0
  %v5207 = vadd.f32 %v4334, %v5206
  %v5208 = vpop.f32.mrb[0].mxu0
  %v5209 = vadd.f32 %v4336, %v5208
  %v5210 = vpop.f32.mrb[0].mxu0
  %v5211 = vadd.f32 %v4338, %v5210
  %v5212 = vpop.f32.mrb[0].mxu0
  %v5213 = vadd.f32 %v4340, %v5212
  %5214 = vmatprep.mubr.bf16.mxu0 %v2475
  %5215 = vmatmul.mubr.bf16.gmra.mrb[0].mxu0 %v2474
  %v5216 = vpop.f32.mrb[0].mxu0
  %v5217 = vadd.f32 %v4344, %v5216
  %v5218 = vpop.f32.mrb[0].mxu0
  %v5219 = vadd.f32 %v4346, %v5218
  %v5220 = vpop.f32.mrb[0].mxu0
  %v5221 = vadd.f32 %v4348, %v5220
  %v5222 = vpop.f32.mrb[0].mxu0
  %v5223 = vadd.f32 %v4350, %v5222
  %5224 = vmatprep.mubr.bf16.mxu0 %v2481
  %5225 = vmatmul.mubr.bf16.gmra.mrb[0].mxu0 %v2480
  %v5226 = vpop.f32.mrb[0].mxu0
  %v5227 = vadd.f32 %v4354, %v5226
  %v5228 = vpop.f32.mrb[0].mxu0
  %v5229 = vadd.f32 %v4356, %v5228
  %v5230 = vpop.f32.mrb[0].mxu0
  %v5231 = vadd.f32 %v4358, %v5230
  %v5232 = vpop.f32.mrb[0].mxu0
  %v5233 = vadd.f32 %v4360, %v5232
  %5234 = vmatprep.mubr.bf16.mxu0 %v2487
  %5235 = vmatmul.mubr.bf16.gmra.mrb[0].mxu0 %v2486
  %v5236 = vpop.f32.mrb[0].mxu0
  %v5237 = vadd.f32 %v4364, %v5236
  %v5238 = vpop.f32.mrb[0].mxu0
  %v5239 = vadd.f32 %v4366, %v5238
  %v5240 = vpop.f32.mrb[0].mxu0
  %v5241 = vadd.f32 %v4368, %v5240
  %v5242 = vpop.f32.mrb[0].mxu0
  %v5243 = vadd.f32 %v4370, %v5242
  %5244 = vmatprep.mubr.bf16.mxu0 %v2493
  %5245 = vmatmul.mubr.bf16.gmra.mrb[0].mxu0 %v2492
  %v5246 = vpop.f32.mrb[0].mxu0
  %v5247 = vadd.f32 %v4374, %v5246
  %v5248 = vpop.f32.mrb[0].mxu0
  %v5249 = vadd.f32 %v4376, %v5248
  %v5250 = vpop.f32.mrb[0].mxu0
  %v5251 = vadd.f32 %v4378, %v5250
  %v5252 = vpop.f32.mrb[0].mxu0
  %v5253 = vadd.f32 %v4380, %v5252
  %5254 = vmatprep.mubr.bf16.mxu0 %v2499
  %5255 = vmatmul.mubr.bf16.gmra.mrb[0].mxu0 %v2498
  %v5256 = vpop.f32.mrb[0].mxu0
  %v5257 = vadd.f32 %v4384, %v5256
  %v5258 = vpop.f32.mrb[0].mxu0
  %v5259 = vadd.f32 %v4386, %v5258
  %v5260 = vpop.f32.mrb[0].mxu0
  %v5261 = vadd.f32 %v4388, %v5260
  %v5262 = vpop.f32.mrb[0].mxu0
  %v5263 = vadd.f32 %v4390, %v5262
  %5264 = vmatprep.mubr.bf16.mxu0 %v2505
  %5265 = vmatmul.mubr.bf16.gmra.mrb[0].mxu0 %v2504
  %v5266 = vpop.f32.mrb[0].mxu0
  %v5267 = vadd.f32 %v4394, %v5266
  %v5268 = vpop.f32.mrb[0].mxu0
  %v5269 = vadd.f32 %v4396, %v5268
  %v5270 = vpop.f32.mrb[0].mxu0
  %v5271 = vadd.f32 %v4398, %v5270
  %v5272 = vpop.f32.mrb[0].mxu0
  %v5273 = vadd.f32 %v4400, %v5272
  %5274 = vmatprep.mubr.bf16.mxu0 %v2511
  %5275 = vmatmul.mubr.bf16.gmra.mrb[0].mxu0 %v2510
  %v5276 = vpop.f32.mrb[0].mxu0
  %v5277 = vadd.f32 %v4404, %v5276
  %v5278 = vpop.f32.mrb[0].mxu0
  %v5279 = vadd.f32 %v4406, %v5278
  %v5280 = vpop.f32.mrb[0].mxu0
  %v5281 = vadd.f32 %v4408, %v5280
  %v5282 = vpop.f32.mrb[0].mxu0
  %v5283 = vadd.f32 %v4410, %v5282
  %5284 = vmatprep.mubr.bf16.mxu0 %v2517
  %5285 = vmatmul.mubr.bf16.gmra.mrb[0].mxu0 %v2516
  %v5286 = vpop.f32.mrb[0].mxu0
  %v5287 = vadd.f32 %v4414, %v5286
  %v5288 = vpop.f32.mrb[0].mxu0
  %v5289 = vadd.f32 %v4416, %v5288
  %v5290 = vpop.f32.mrb[0].mxu0
  %v5291 = vadd.f32 %v4418, %v5290
  %v5292 = vpop.f32.mrb[0].mxu0
  %v5293 = vadd.f32 %v4420, %v5292
  %5294 = vmatprep.mubr.bf16.mxu0 %v2523
  %5295 = vmatmul.mubr.bf16.gmra.mrb[0].mxu0 %v2522
  %v5296 = vpop.f32.mrb[0].mxu0
  %v5297 = vadd.f32 %v4424, %v5296
  %v5298 = vpop.f32.mrb[0].mxu0
  %v5299 = vadd.f32 %v4426, %v5298
  %v5300 = vpop.f32.mrb[0].mxu0
  %v5301 = vadd.f32 %v4428, %v5300
  %v5302 = vpop.f32.mrb[0].mxu0
  %v5303 = vadd.f32 %v4430, %v5302
  %5304 = vmatprep.mubr.bf16.mxu0 %v2529
  %5305 = vmatmul.mubr.bf16.gmra.mrb[0].mxu0 %v2528
  %v5306 = vpop.f32.mrb[0].mxu0
  %v5307 = vadd.f32 %v4434, %v5306
  %v5308 = vpop.f32.mrb[0].mxu0
  %v5309 = vadd.f32 %v4436, %v5308
  %v5310 = vpop.f32.mrb[0].mxu0
  %v5311 = vadd.f32 %v4438, %v5310
  %v5312 = vpop.f32.mrb[0].mxu0
  %v5313 = vadd.f32 %v4440, %v5312
  %5314 = vmatprep.mubr.bf16.mxu0 %v2535
  %5315 = vmatmul.mubr.bf16.gmra.mrb[0].mxu0 %v2534
  %v5316 = vpop.f32.mrb[0].mxu0
  %v5317 = vadd.f32 %v4444, %v5316
  %v5318 = vpop.f32.mrb[0].mxu0
  %v5319 = vadd.f32 %v4446, %v5318
  %v5320 = vpop.f32.mrb[0].mxu0
  %v5321 = vadd.f32 %v4448, %v5320
  %v5322 = vpop.f32.mrb[0].mxu0
  %v5323 = vadd.f32 %v4450, %v5322
  %5324 = vmatprep.mubr.bf16.mxu0 %v2541
  %5325 = vmatmul.mubr.bf16.gmra.mrb[0].mxu0 %v2540
  %v5326 = vpop.f32.mrb[0].mxu0
  %v5327 = vadd.f32 %v4454, %v5326
  %v5328 = vpop.f32.mrb[0].mxu0
  %v5329 = vadd.f32 %v4456, %v5328
  %v5330 = vpop.f32.mrb[0].mxu0
  %v5331 = vadd.f32 %v4458, %v5330
  %v5332 = vpop.f32.mrb[0].mxu0
  %v5333 = vadd.f32 %v4460, %v5332
  %5334 = vmatprep.mubr.bf16.mxu0 %v2547
  %5335 = vmatmul.mubr.bf16.gmra.mrb[0].mxu0 %v2546
  %v5336 = vpop.f32.mrb[0].mxu0
  %v5337 = vadd.f32 %v4464, %v5336
  %v5338 = vpop.f32.mrb[0].mxu0
  %v5339 = vadd.f32 %v4466, %v5338
  %v5340 = vpop.f32.mrb[0].mxu0
  %v5341 = vadd.f32 %v4468, %v5340
  %v5342 = vpop.f32.mrb[0].mxu0
  %v5343 = vadd.f32 %v4470, %v5342
  %5344 = vmatprep.mubr.bf16.mxu0 %v2553
  %5345 = vmatmul.mubr.bf16.gmra.mrb[0].mxu0 %v2552
  %v5346 = vpop.f32.mrb[0].mxu0
  %v5347 = vadd.f32 %v4474, %v5346
  %v5348 = vpop.f32.mrb[0].mxu0
  %v5349 = vadd.f32 %v4476, %v5348
  %v5350 = vpop.f32.mrb[0].mxu0
  %v5351 = vadd.f32 %v4478, %v5350
  %v5352 = vpop.f32.mrb[0].mxu0
  %v5353 = vadd.f32 %v4480, %v5352
  %5354 = vmatprep.mubr.bf16.mxu0 %v2559
  %5355 = vmatmul.mubr.bf16.gmra.mrb[0].mxu0 %v2558
  %v5356 = vpop.f32.mrb[0].mxu0
  %v5357 = vadd.f32 %v4484, %v5356
  %v5358 = vpop.f32.mrb[0].mxu0
  %v5359 = vadd.f32 %v4486, %v5358
  %v5360 = vpop.f32.mrb[0].mxu0
  %v5361 = vadd.f32 %v4488, %v5360
  %v5362 = vpop.f32.mrb[0].mxu0
  %v5363 = vadd.f32 %v4490, %v5362
  %5364 = vmatprep.mubr.bf16.mxu0 %v2565
  %5365 = vmatmul.mubr.bf16.gmra.mrb[0].mxu0 %v2564
  %v5366 = vpop.f32.mrb[0].mxu0
  %v5367 = vadd.f32 %v4494, %v5366
  %v5368 = vpop.f32.mrb[0].mxu0
  %v5369 = vadd.f32 %v4496, %v5368
  %v5370 = vpop.f32.mrb[0].mxu0
  %v5371 = vadd.f32 %v4498, %v5370
  %v5372 = vpop.f32.mrb[0].mxu0
  %v5373 = vadd.f32 %v4500, %v5372
  %5374 = vmatprep.mubr.bf16.mxu0 %v2571
  %5375 = vmatmul.mubr.bf16.gmra.mrb[0].mxu0 %v2570
  %v5376 = vpop.f32.mrb[0].mxu0
  %v5377 = vadd.f32 %v4504, %v5376
  %v5378 = vpop.f32.mrb[0].mxu0
  %v5379 = vadd.f32 %v4506, %v5378
  %v5380 = vpop.f32.mrb[0].mxu0
  %v5381 = vadd.f32 %v4508, %v5380
  %v5382 = vpop.f32.mrb[0].mxu0
  %v5383 = vadd.f32 %v4510, %v5382
  %5384 = vmatprep.mubr.bf16.mxu0 %v2577
  %5385 = vmatmul.mubr.bf16.gmra.mrb[0].mxu0 %v2576
  %v5386 = vpop.f32.mrb[0].mxu0
  %v5387 = vadd.f32 %v4514, %v5386
  %v5388 = vpop.f32.mrb[0].mxu0
  %v5389 = vadd.f32 %v4516, %v5388
  %v5390 = vpop.f32.mrb[0].mxu0
  %v5391 = vadd.f32 %v4518, %v5390
  %v5392 = vpop.f32.mrb[0].mxu0
  %v5393 = vadd.f32 %v4520, %v5392
  %5394 = vmatprep.mubr.bf16.mxu0 %v2583
  %5395 = vmatmul.mubr.bf16.gmra.mrb[0].mxu0 %v2582
  %v5396 = vpop.f32.mrb[0].mxu0
  %v5397 = vadd.f32 %v4524, %v5396
  %v5398 = vpop.f32.mrb[0].mxu0
  %v5399 = vadd.f32 %v4526, %v5398
  %v5400 = vpop.f32.mrb[0].mxu0
  %v5401 = vadd.f32 %v4528, %v5400
  %v5402 = vpop.f32.mrb[0].mxu0
  %v5403 = vadd.f32 %v4530, %v5402
  %5404 = vmatprep.mubr.bf16.mxu0 %v2589
  %5405 = vmatmul.mubr.bf16.gmra.mrb[0].mxu0 %v2588
  %v5406 = vpop.f32.mrb[0].mxu0
  %v5407 = vadd.f32 %v4534, %v5406
  %v5408 = vpop.f32.mrb[0].mxu0
  %v5409 = vadd.f32 %v4536, %v5408
  %v5410 = vpop.f32.mrb[0].mxu0
  %v5411 = vadd.f32 %v4538, %v5410
  %v5412 = vpop.f32.mrb[0].mxu0
  %v5413 = vadd.f32 %v4540, %v5412
  %5414 = vmatprep.mubr.bf16.mxu0 %v2595
  %5415 = vmatmul.mubr.bf16.gmra.mrb[0].mxu0 %v2594
  %v5416 = vpop.f32.mrb[0].mxu0
  %v5417 = vadd.f32 %v4544, %v5416
  %v5418 = vpop.f32.mrb[0].mxu0
  %v5419 = vadd.f32 %v4546, %v5418
  %v5420 = vpop.f32.mrb[0].mxu0
  %v5421 = vadd.f32 %v4548, %v5420
  %v5422 = vpop.f32.mrb[0].mxu0
  %v5423 = vadd.f32 %v4550, %v5422
  %5424 = vmatprep.mubr.bf16.mxu0 %v2601
  %5425 = vmatmul.mubr.bf16.gmra.mrb[0].mxu0 %v2600
  %v5426 = vpop.f32.mrb[0].mxu0
  %v5427 = vadd.f32 %v4554, %v5426
  %v5428 = vpop.f32.mrb[0].mxu0
  %v5429 = vadd.f32 %v4556, %v5428
  %v5430 = vpop.f32.mrb[0].mxu0
  %v5431 = vadd.f32 %v4558, %v5430
  %v5432 = vpop.f32.mrb[0].mxu0
  %v5433 = vadd.f32 %v4560, %v5432
  %5434 = vmatprep.mubr.bf16.mxu0 %v2607
  %5435 = vmatmul.mubr.bf16.gmra.mrb[0].mxu0 %v2606
  %v5436 = vpop.f32.mrb[0].mxu0
  %v5437 = vadd.f32 %v4564, %v5436
  %v5438 = vpop.f32.mrb[0].mxu0
  %v5439 = vadd.f32 %v4566, %v5438
  %v5440 = vpop.f32.mrb[0].mxu0
  %v5441 = vadd.f32 %v4568, %v5440
  %v5442 = vpop.f32.mrb[0].mxu0
  %v5443 = vadd.f32 %v4570, %v5442
  %5444 = vmatprep.mubr.bf16.mxu0 %v2613
  %5445 = vmatmul.mubr.bf16.gmra.mrb[0].mxu0 %v2612
  %v5446 = vpop.f32.mrb[0].mxu0
  %v5447 = vadd.f32 %v4574, %v5446
  %v5448 = vpop.f32.mrb[0].mxu0
  %v5449 = vadd.f32 %v4576, %v5448
  %v5450 = vpop.f32.mrb[0].mxu0
  %v5451 = vadd.f32 %v4578, %v5450
  %v5452 = vpop.f32.mrb[0].mxu0
  %v5453 = vadd.f32 %v4580, %v5452
  %5454 = vdwg.mxu0
  %5455 = vmatprep.subr.bf16.mxu0 %v3353
  %5456 = vmatpush1.bf16.msra.mxu0 %v3352
  %5457 = vmatprep.subr.bf16.mxu0 %v3355
  %5458 = vmatpush1.bf16.msra.mxu0 %v3354
  %5459 = vmatprep.subr.bf16.mxu0 %v3357
  %5460 = vmatpush1.bf16.msra.mxu0 %v3356
  %5461 = vmatprep.subr.bf16.mxu0 %v3359
  %5462 = vmatpush1.bf16.msra.mxu0 %v3358
  %5463 = vmatprep.subr.bf16.mxu0 %v3361
  %5464 = vmatpush1.bf16.msra.mxu0 %v3360
  %5465 = vmatprep.subr.bf16.mxu0 %v3363
  %5466 = vmatpush1.bf16.msra.mxu0 %v3362
  %5467 = vmatprep.subr.bf16.mxu0 %v3365
  %5468 = vmatpush1.bf16.msra.mxu0 %v3364
  %5469 = vmatprep.subr.bf16.mxu0 %v3367
  %5470 = vmatpush1.bf16.msra.mxu0 %v3366
  %5471 = vmatprep.subr.bf16.mxu0 %v3369
  %5472 = vmatpush1.bf16.msra.mxu0 %v3368
  %5473 = vmatprep.subr.bf16.mxu0 %v3371
  %5474 = vmatpush1.bf16.msra.mxu0 %v3370
  %5475 = vmatprep.subr.bf16.mxu0 0
  %5476 = vmatpush1.bf16.msra.mxu0 0
  %5477 = vmatprep.subr.bf16.mxu0 0
  %5478 = vmatpush1.bf16.msra.mxu0 0
  %5479 = vmatprep.subr.bf16.mxu0 0
  %5480 = vmatpush1.bf16.msra.mxu0 0
  %5481 = vmatprep.subr.bf16.mxu0 0
  %5482 = vmatpush1.bf16.msra.mxu0 0
  %5483 = vmatprep.subr.bf16.mxu0 0
  %5484 = vmatpush1.bf16.msra.mxu0 0
  %5485 = vmatprep.subr.bf16.mxu0 0
  %5486 = vmatpush1.bf16.msra.mxu0 0
  %5487 = vmatprep.mubr.bf16.mxu0 %v3458
  %5488 = vmatmul.mubr.bf16.gmra.mrb[0].mxu0 %v2116
  %v5489 = vpop.f32.mrb[0].mxu0
  %v5490 = vadd.f32 %v4617, %v5489
  %v5491 = vpop.f32.mrb[0].mxu0
  %v5492 = vadd.f32 %v4619, %v5491
  %v5493 = vpop.f32.mrb[0].mxu0
  %v5494 = vadd.f32 %v4621, %v5493
  %v5495 = vpop.f32.mrb[0].mxu0
  %v5496 = vadd.f32 %v4623, %v5495
  %5497 = vmatprep.mubr.bf16.mxu0 %v3461
  %5498 = vmatmul.mubr.bf16.gmra.mrb[0].mxu0 %v2122
  %v5499 = vpop.f32.mrb[0].mxu0
  %v5500 = vadd.f32 %v4627, %v5499
  %v5501 = vpop.f32.mrb[0].mxu0
  %v5502 = vadd.f32 %v4629, %v5501
  %v5503 = vpop.f32.mrb[0].mxu0
  %v5504 = vadd.f32 %v4631, %v5503
  %v5505 = vpop.f32.mrb[0].mxu0
  %v5506 = vadd.f32 %v4633, %v5505
  %5507 = vmatprep.mubr.bf16.mxu0 %v3464
  %5508 = vmatmul.mubr.bf16.gmra.mrb[0].mxu0 %v2128
  %v5509 = vpop.f32.mrb[0].mxu0
  %v5510 = vadd.f32 %v4637, %v5509
  %v5511 = vpop.f32.mrb[0].mxu0
  %v5512 = vadd.f32 %v4639, %v5511
  %v5513 = vpop.f32.mrb[0].mxu0
  %v5514 = vadd.f32 %v4641, %v5513
  %v5515 = vpop.f32.mrb[0].mxu0
  %v5516 = vadd.f32 %v4643, %v5515
  %5517 = vmatprep.mubr.bf16.mxu0 %v3467
  %5518 = vmatmul.mubr.bf16.gmra.mrb[0].mxu0 %v2134
  %v5519 = vpop.f32.mrb[0].mxu0
  %v5520 = vadd.f32 %v4647, %v5519
  %v5521 = vpop.f32.mrb[0].mxu0
  %v5522 = vadd.f32 %v4649, %v5521
  %v5523 = vpop.f32.mrb[0].mxu0
  %v5524 = vadd.f32 %v4651, %v5523
  %v5525 = vpop.f32.mrb[0].mxu0
  %v5526 = vadd.f32 %v4653, %v5525
  %5527 = vmatprep.mubr.bf16.mxu0 %v3470
  %5528 = vmatmul.mubr.bf16.gmra.mrb[0].mxu0 %v2140
  %v5529 = vpop.f32.mrb[0].mxu0
  %v5530 = vadd.f32 %v4657, %v5529
  %v5531 = vpop.f32.mrb[0].mxu0
  %v5532 = vadd.f32 %v4659, %v5531
  %v5533 = vpop.f32.mrb[0].mxu0
  %v5534 = vadd.f32 %v4661, %v5533
  %v5535 = vpop.f32.mrb[0].mxu0
  %v5536 = vadd.f32 %v4663, %v5535
  %5537 = vmatprep.mubr.bf16.mxu0 %v3473
  %5538 = vmatmul.mubr.bf16.gmra.mrb[0].mxu0 %v2146
  %v5539 = vpop.f32.mrb[0].mxu0
  %v5540 = vadd.f32 %v4667, %v5539
  %v5541 = vpop.f32.mrb[0].mxu0
  %v5542 = vadd.f32 %v4669, %v5541
  %v5543 = vpop.f32.mrb[0].mxu0
  %v5544 = vadd.f32 %v4671, %v5543
  %v5545 = vpop.f32.mrb[0].mxu0
  %v5546 = vadd.f32 %v4673, %v5545
  %5547 = vmatprep.mubr.bf16.mxu0 %v3476
  %5548 = vmatmul.mubr.bf16.gmra.mrb[0].mxu0 %v2152
  %v5549 = vpop.f32.mrb[0].mxu0
  %v5550 = vadd.f32 %v4677, %v5549
  %v5551 = vpop.f32.mrb[0].mxu0
  %v5552 = vadd.f32 %v4679, %v5551
  %v5553 = vpop.f32.mrb[0].mxu0
  %v5554 = vadd.f32 %v4681, %v5553
  %v5555 = vpop.f32.mrb[0].mxu0
  %v5556 = vadd.f32 %v4683, %v5555
  %5557 = vmatprep.mubr.bf16.mxu0 %v3479
  %5558 = vmatmul.mubr.bf16.gmra.mrb[0].mxu0 %v2158
  %v5559 = vpop.f32.mrb[0].mxu0
  %v5560 = vadd.f32 %v4687, %v5559
  %v5561 = vpop.f32.mrb[0].mxu0
  %v5562 = vadd.f32 %v4689, %v5561
  %v5563 = vpop.f32.mrb[0].mxu0
  %v5564 = vadd.f32 %v4691, %v5563
  %v5565 = vpop.f32.mrb[0].mxu0
  %v5566 = vadd.f32 %v4693, %v5565
  %5567 = vmatprep.mubr.bf16.mxu0 %v3482
  %5568 = vmatmul.mubr.bf16.gmra.mrb[0].mxu0 %v2164
  %v5569 = vpop.f32.mrb[0].mxu0
  %v5570 = vadd.f32 %v4697, %v5569
  %v5571 = vpop.f32.mrb[0].mxu0
  %v5572 = vadd.f32 %v4699, %v5571
  %v5573 = vpop.f32.mrb[0].mxu0
  %v5574 = vadd.f32 %v4701, %v5573
  %v5575 = vpop.f32.mrb[0].mxu0
  %v5576 = vadd.f32 %v4703, %v5575
  %5577 = vmatprep.mubr.bf16.mxu0 %v3485
  %5578 = vmatmul.mubr.bf16.gmra.mrb[0].mxu0 %v2170
  %v5579 = vpop.f32.mrb[0].mxu0
  %v5580 = vadd.f32 %v4707, %v5579
  %v5581 = vpop.f32.mrb[0].mxu0
  %v5582 = vadd.f32 %v4709, %v5581
  %v5583 = vpop.f32.mrb[0].mxu0
  %v5584 = vadd.f32 %v4711, %v5583
  %v5585 = vpop.f32.mrb[0].mxu0
  %v5586 = vadd.f32 %v4713, %v5585
  %5587 = vmatprep.mubr.bf16.mxu0 %v3488
  %5588 = vmatmul.mubr.bf16.gmra.mrb[0].mxu0 %v2176
  %v5589 = vpop.f32.mrb[0].mxu0
  %v5590 = vadd.f32 %v4717, %v5589
  %v5591 = vpop.f32.mrb[0].mxu0
  %v5592 = vadd.f32 %v4719, %v5591
  %v5593 = vpop.f32.mrb[0].mxu0
  %v5594 = vadd.f32 %v4721, %v5593
  %v5595 = vpop.f32.mrb[0].mxu0
  %v5596 = vadd.f32 %v4723, %v5595
  %5597 = vmatprep.mubr.bf16.mxu0 %v3491
  %5598 = vmatmul.mubr.bf16.gmra.mrb[0].mxu0 %v2182
  %v5599 = vpop.f32.mrb[0].mxu0
  %v5600 = vadd.f32 %v4727, %v5599
  %v5601 = vpop.f32.mrb[0].mxu0
  %v5602 = vadd.f32 %v4729, %v5601
  %v5603 = vpop.f32.mrb[0].mxu0
  %v5604 = vadd.f32 %v4731, %v5603
  %v5605 = vpop.f32.mrb[0].mxu0
  %v5606 = vadd.f32 %v4733, %v5605
  %5607 = vmatprep.mubr.bf16.mxu0 %v3494
  %5608 = vmatmul.mubr.bf16.gmra.mrb[0].mxu0 %v2188
  %v5609 = vpop.f32.mrb[0].mxu0
  %v5610 = vadd.f32 %v4737, %v5609
  %v5611 = vpop.f32.mrb[0].mxu0
  %v5612 = vadd.f32 %v4739, %v5611
  %v5613 = vpop.f32.mrb[0].mxu0
  %v5614 = vadd.f32 %v4741, %v5613
  %v5615 = vpop.f32.mrb[0].mxu0
  %v5616 = vadd.f32 %v4743, %v5615
  %5617 = vmatprep.mubr.bf16.mxu0 %v3497
  %5618 = vmatmul.mubr.bf16.gmra.mrb[0].mxu0 %v2194
  %v5619 = vpop.f32.mrb[0].mxu0
  %v5620 = vadd.f32 %v4747, %v5619
  %v5621 = vpop.f32.mrb[0].mxu0
  %v5622 = vadd.f32 %v4749, %v5621
  %v5623 = vpop.f32.mrb[0].mxu0
  %v5624 = vadd.f32 %v4751, %v5623
  %v5625 = vpop.f32.mrb[0].mxu0
  %v5626 = vadd.f32 %v4753, %v5625
  %5627 = vmatprep.mubr.bf16.mxu0 %v3500
  %5628 = vmatmul.mubr.bf16.gmra.mrb[0].mxu0 %v2200
  %v5629 = vpop.f32.mrb[0].mxu0
  %v5630 = vadd.f32 %v4757, %v5629
  %v5631 = vpop.f32.mrb[0].mxu0
  %v5632 = vadd.f32 %v4759, %v5631
  %v5633 = vpop.f32.mrb[0].mxu0
  %v5634 = vadd.f32 %v4761, %v5633
  %v5635 = vpop.f32.mrb[0].mxu0
  %v5636 = vadd.f32 %v4763, %v5635
  %5637 = vmatprep.mubr.bf16.mxu0 %v3503
  %5638 = vmatmul.mubr.bf16.gmra.mrb[0].mxu0 %v2206
  %v5639 = vpop.f32.mrb[0].mxu0
  %v5640 = vadd.f32 %v4767, %v5639
  %v5641 = vpop.f32.mrb[0].mxu0
  %v5642 = vadd.f32 %v4769, %v5641
  %v5643 = vpop.f32.mrb[0].mxu0
  %v5644 = vadd.f32 %v4771, %v5643
  %v5645 = vpop.f32.mrb[0].mxu0
  %v5646 = vadd.f32 %v4773, %v5645
  %5647 = vmatprep.mubr.bf16.mxu0 %v3506
  %5648 = vmatmul.mubr.bf16.gmra.mrb[0].mxu0 %v2212
  %v5649 = vpop.f32.mrb[0].mxu0
  %v5650 = vadd.f32 %v4777, %v5649
  %v5651 = vpop.f32.mrb[0].mxu0
  %v5652 = vadd.f32 %v4779, %v5651
  %v5653 = vpop.f32.mrb[0].mxu0
  %v5654 = vadd.f32 %v4781, %v5653
  %v5655 = vpop.f32.mrb[0].mxu0
  %v5656 = vadd.f32 %v4783, %v5655
  %5657 = vmatprep.mubr.bf16.mxu0 %v3509
  %5658 = vmatmul.mubr.bf16.gmra.mrb[0].mxu0 %v2218
  %v5659 = vpop.f32.mrb[0].mxu0
  %v5660 = vadd.f32 %v4787, %v5659
  %v5661 = vpop.f32.mrb[0].mxu0
  %v5662 = vadd.f32 %v4789, %v5661
  %v5663 = vpop.f32.mrb[0].mxu0
  %v5664 = vadd.f32 %v4791, %v5663
  %v5665 = vpop.f32.mrb[0].mxu0
  %v5666 = vadd.f32 %v4793, %v5665
  %5667 = vmatprep.mubr.bf16.mxu0 %v3512
  %5668 = vmatmul.mubr.bf16.gmra.mrb[0].mxu0 %v2224
  %v5669 = vpop.f32.mrb[0].mxu0
  %v5670 = vadd.f32 %v4797, %v5669
  %v5671 = vpop.f32.mrb[0].mxu0
  %v5672 = vadd.f32 %v4799, %v5671
  %v5673 = vpop.f32.mrb[0].mxu0
  %v5674 = vadd.f32 %v4801, %v5673
  %v5675 = vpop.f32.mrb[0].mxu0
  %v5676 = vadd.f32 %v4803, %v5675
  %5677 = vmatprep.mubr.bf16.mxu0 %v3515
  %5678 = vmatmul.mubr.bf16.gmra.mrb[0].mxu0 %v2230
  %v5679 = vpop.f32.mrb[0].mxu0
  %v5680 = vadd.f32 %v4807, %v5679
  %v5681 = vpop.f32.mrb[0].mxu0
  %v5682 = vadd.f32 %v4809, %v5681
  %v5683 = vpop.f32.mrb[0].mxu0
  %v5684 = vadd.f32 %v4811, %v5683
  %v5685 = vpop.f32.mrb[0].mxu0
  %v5686 = vadd.f32 %v4813, %v5685
  %5687 = vmatprep.mubr.bf16.mxu0 %v3518
  %5688 = vmatmul.mubr.bf16.gmra.mrb[0].mxu0 %v2236
  %v5689 = vpop.f32.mrb[0].mxu0
  %v5690 = vadd.f32 %v4817, %v5689
  %v5691 = vpop.f32.mrb[0].mxu0
  %v5692 = vadd.f32 %v4819, %v5691
  %v5693 = vpop.f32.mrb[0].mxu0
  %v5694 = vadd.f32 %v4821, %v5693
  %v5695 = vpop.f32.mrb[0].mxu0
  %v5696 = vadd.f32 %v4823, %v5695
  %5697 = vmatprep.mubr.bf16.mxu0 %v3521
  %5698 = vmatmul.mubr.bf16.gmra.mrb[0].mxu0 %v2242
  %v5699 = vpop.f32.mrb[0].mxu0
  %v5700 = vadd.f32 %v4827, %v5699
  %v5701 = vpop.f32.mrb[0].mxu0
  %v5702 = vadd.f32 %v4829, %v5701
  %v5703 = vpop.f32.mrb[0].mxu0
  %v5704 = vadd.f32 %v4831, %v5703
  %v5705 = vpop.f32.mrb[0].mxu0
  %v5706 = vadd.f32 %v4833, %v5705
  %5707 = vmatprep.mubr.bf16.mxu0 %v3524
  %5708 = vmatmul.mubr.bf16.gmra.mrb[0].mxu0 %v2248
  %v5709 = vpop.f32.mrb[0].mxu0
  %v5710 = vadd.f32 %v4837, %v5709
  %v5711 = vpop.f32.mrb[0].mxu0
  %v5712 = vadd.f32 %v4839, %v5711
  %v5713 = vpop.f32.mrb[0].mxu0
  %v5714 = vadd.f32 %v4841, %v5713
  %v5715 = vpop.f32.mrb[0].mxu0
  %v5716 = vadd.f32 %v4843, %v5715
  %5717 = vmatprep.mubr.bf16.mxu0 %v3527
  %5718 = vmatmul.mubr.bf16.gmra.mrb[0].mxu0 %v2254
  %v5719 = vpop.f32.mrb[0].mxu0
  %v5720 = vadd.f32 %v4847, %v5719
  %v5721 = vpop.f32.mrb[0].mxu0
  %v5722 = vadd.f32 %v4849, %v5721
  %v5723 = vpop.f32.mrb[0].mxu0
  %v5724 = vadd.f32 %v4851, %v5723
  %v5725 = vpop.f32.mrb[0].mxu0
  %v5726 = vadd.f32 %v4853, %v5725
  %5727 = vmatprep.mubr.bf16.mxu0 %v3530
  %5728 = vmatmul.mubr.bf16.gmra.mrb[0].mxu0 %v2260
  %v5729 = vpop.f32.mrb[0].mxu0
  %v5730 = vadd.f32 %v4857, %v5729
  %v5731 = vpop.f32.mrb[0].mxu0
  %v5732 = vadd.f32 %v4859, %v5731
  %v5733 = vpop.f32.mrb[0].mxu0
  %v5734 = vadd.f32 %v4861, %v5733
  %v5735 = vpop.f32.mrb[0].mxu0
  %v5736 = vadd.f32 %v4863, %v5735
  %5737 = vmatprep.mubr.bf16.mxu0 %v3533
  %5738 = vmatmul.mubr.bf16.gmra.mrb[0].mxu0 %v2266
  %v5739 = vpop.f32.mrb[0].mxu0
  %v5740 = vadd.f32 %v4867, %v5739
  %v5741 = vpop.f32.mrb[0].mxu0
  %v5742 = vadd.f32 %v4869, %v5741
  %v5743 = vpop.f32.mrb[0].mxu0
  %v5744 = vadd.f32 %v4871, %v5743
  %v5745 = vpop.f32.mrb[0].mxu0
  %v5746 = vadd.f32 %v4873, %v5745
  %5747 = vmatprep.mubr.bf16.mxu0 %v3536
  %5748 = vmatmul.mubr.bf16.gmra.mrb[0].mxu0 %v2272
  %v5749 = vpop.f32.mrb[0].mxu0
  %v5750 = vadd.f32 %v4877, %v5749
  %v5751 = vpop.f32.mrb[0].mxu0
  %v5752 = vadd.f32 %v4879, %v5751
  %v5753 = vpop.f32.mrb[0].mxu0
  %v5754 = vadd.f32 %v4881, %v5753
  %v5755 = vpop.f32.mrb[0].mxu0
  %v5756 = vadd.f32 %v4883, %v5755
  %5757 = vmatprep.mubr.bf16.mxu0 %v3539
  %5758 = vmatmul.mubr.bf16.gmra.mrb[0].mxu0 %v2278
  %v5759 = vpop.f32.mrb[0].mxu0
  %v5760 = vadd.f32 %v4887, %v5759
  %v5761 = vpop.f32.mrb[0].mxu0
  %v5762 = vadd.f32 %v4889, %v5761
  %v5763 = vpop.f32.mrb[0].mxu0
  %v5764 = vadd.f32 %v4891, %v5763
  %v5765 = vpop.f32.mrb[0].mxu0
  %v5766 = vadd.f32 %v4893, %v5765
  %5767 = vmatprep.mubr.bf16.mxu0 %v3542
  %5768 = vmatmul.mubr.bf16.gmra.mrb[0].mxu0 %v2284
  %v5769 = vpop.f32.mrb[0].mxu0
  %v5770 = vadd.f32 %v4897, %v5769
  %v5771 = vpop.f32.mrb[0].mxu0
  %v5772 = vadd.f32 %v4899, %v5771
  %v5773 = vpop.f32.mrb[0].mxu0
  %v5774 = vadd.f32 %v4901, %v5773
  %v5775 = vpop.f32.mrb[0].mxu0
  %v5776 = vadd.f32 %v4903, %v5775
  %5777 = vmatprep.mubr.bf16.mxu0 %v3545
  %5778 = vmatmul.mubr.bf16.gmra.mrb[0].mxu0 %v2290
  %v5779 = vpop.f32.mrb[0].mxu0
  %v5780 = vadd.f32 %v4907, %v5779
  %v5781 = vpop.f32.mrb[0].mxu0
  %v5782 = vadd.f32 %v4909, %v5781
  %v5783 = vpop.f32.mrb[0].mxu0
  %v5784 = vadd.f32 %v4911, %v5783
  %v5785 = vpop.f32.mrb[0].mxu0
  %v5786 = vadd.f32 %v4913, %v5785
  %5787 = vmatprep.mubr.bf16.mxu0 %v3548
  %5788 = vmatmul.mubr.bf16.gmra.mrb[0].mxu0 %v2296
  %v5789 = vpop.f32.mrb[0].mxu0
  %v5790 = vadd.f32 %v4917, %v5789
  %v5791 = vpop.f32.mrb[0].mxu0
  %v5792 = vadd.f32 %v4919, %v5791
  %v5793 = vpop.f32.mrb[0].mxu0
  %v5794 = vadd.f32 %v4921, %v5793
  %v5795 = vpop.f32.mrb[0].mxu0
  %v5796 = vadd.f32 %v4923, %v5795
  %5797 = vmatprep.mubr.bf16.mxu0 %v3551
  %5798 = vmatmul.mubr.bf16.gmra.mrb[0].mxu0 %v2302
  %v5799 = vpop.f32.mrb[0].mxu0
  %v5800 = vadd.f32 %v4927, %v5799
  %v5801 = vpop.f32.mrb[0].mxu0
  %v5802 = vadd.f32 %v4929, %v5801
  %v5803 = vpop.f32.mrb[0].mxu0
  %v5804 = vadd.f32 %v4931, %v5803
  %v5805 = vpop.f32.mrb[0].mxu0
  %v5806 = vadd.f32 %v4933, %v5805
  %5807 = vmatprep.mubr.bf16.mxu0 %v3554
  %5808 = vmatmul.mubr.bf16.gmra.mrb[0].mxu0 %v2308
  %v5809 = vpop.f32.mrb[0].mxu0
  %v5810 = vadd.f32 %v4937, %v5809
  %v5811 = vpop.f32.mrb[0].mxu0
  %v5812 = vadd.f32 %v4939, %v5811
  %v5813 = vpop.f32.mrb[0].mxu0
  %v5814 = vadd.f32 %v4941, %v5813
  %v5815 = vpop.f32.mrb[0].mxu0
  %v5816 = vadd.f32 %v4943, %v5815
  %5817 = vmatprep.mubr.bf16.mxu0 %v3557
  %5818 = vmatmul.mubr.bf16.gmra.mrb[0].mxu0 %v2314
  %v5819 = vpop.f32.mrb[0].mxu0
  %v5820 = vadd.f32 %v4947, %v5819
  %v5821 = vpop.f32.mrb[0].mxu0
  %v5822 = vadd.f32 %v4949, %v5821
  %v5823 = vpop.f32.mrb[0].mxu0
  %v5824 = vadd.f32 %v4951, %v5823
  %v5825 = vpop.f32.mrb[0].mxu0
  %v5826 = vadd.f32 %v4953, %v5825
  %5827 = vmatprep.mubr.bf16.mxu0 %v3560
  %5828 = vmatmul.mubr.bf16.gmra.mrb[0].mxu0 %v2320
  %v5829 = vpop.f32.mrb[0].mxu0
  %v5830 = vadd.f32 %v4957, %v5829
  %v5831 = vpop.f32.mrb[0].mxu0
  %v5832 = vadd.f32 %v4959, %v5831
  %v5833 = vpop.f32.mrb[0].mxu0
  %v5834 = vadd.f32 %v4961, %v5833
  %v5835 = vpop.f32.mrb[0].mxu0
  %v5836 = vadd.f32 %v4963, %v5835
  %5837 = vmatprep.mubr.bf16.mxu0 %v3563
  %5838 = vmatmul.mubr.bf16.gmra.mrb[0].mxu0 %v2326
  %v5839 = vpop.f32.mrb[0].mxu0
  %v5840 = vadd.f32 %v4967, %v5839
  %v5841 = vpop.f32.mrb[0].mxu0
  %v5842 = vadd.f32 %v4969, %v5841
  %v5843 = vpop.f32.mrb[0].mxu0
  %v5844 = vadd.f32 %v4971, %v5843
  %v5845 = vpop.f32.mrb[0].mxu0
  %v5846 = vadd.f32 %v4973, %v5845
  %5847 = vmatprep.mubr.bf16.mxu0 %v3566
  %5848 = vmatmul.mubr.bf16.gmra.mrb[0].mxu0 %v2332
  %v5849 = vpop.f32.mrb[0].mxu0
  %v5850 = vadd.f32 %v4977, %v5849
  %v5851 = vpop.f32.mrb[0].mxu0
  %v5852 = vadd.f32 %v4979, %v5851
  %v5853 = vpop.f32.mrb[0].mxu0
  %v5854 = vadd.f32 %v4981, %v5853
  %v5855 = vpop.f32.mrb[0].mxu0
  %v5856 = vadd.f32 %v4983, %v5855
  %5857 = vmatprep.mubr.bf16.mxu0 %v3569
  %5858 = vmatmul.mubr.bf16.gmra.mrb[0].mxu0 %v2338
  %v5859 = vpop.f32.mrb[0].mxu0
  %v5860 = vadd.f32 %v4987, %v5859
  %v5861 = vpop.f32.mrb[0].mxu0
  %v5862 = vadd.f32 %v4989, %v5861
  %v5863 = vpop.f32.mrb[0].mxu0
  %v5864 = vadd.f32 %v4991, %v5863
  %v5865 = vpop.f32.mrb[0].mxu0
  %v5866 = vadd.f32 %v4993, %v5865
  %5867 = vmatprep.mubr.bf16.mxu0 %v3572
  %5868 = vmatmul.mubr.bf16.gmra.mrb[0].mxu0 %v2344
  %v5869 = vpop.f32.mrb[0].mxu0
  %v5870 = vadd.f32 %v4997, %v5869
  %v5871 = vpop.f32.mrb[0].mxu0
  %v5872 = vadd.f32 %v4999, %v5871
  %v5873 = vpop.f32.mrb[0].mxu0
  %v5874 = vadd.f32 %v5001, %v5873
  %v5875 = vpop.f32.mrb[0].mxu0
  %v5876 = vadd.f32 %v5003, %v5875
  %5877 = vmatprep.mubr.bf16.mxu0 %v3575
  %5878 = vmatmul.mubr.bf16.gmra.mrb[0].mxu0 %v2350
  %v5879 = vpop.f32.mrb[0].mxu0
  %v5880 = vadd.f32 %v5007, %v5879
  %v5881 = vpop.f32.mrb[0].mxu0
  %v5882 = vadd.f32 %v5009, %v5881
  %v5883 = vpop.f32.mrb[0].mxu0
  %v5884 = vadd.f32 %v5011, %v5883
  %v5885 = vpop.f32.mrb[0].mxu0
  %v5886 = vadd.f32 %v5013, %v5885
  %5887 = vmatprep.mubr.bf16.mxu0 %v3578
  %5888 = vmatmul.mubr.bf16.gmra.mrb[0].mxu0 %v2356
  %v5889 = vpop.f32.mrb[0].mxu0
  %v5890 = vadd.f32 %v5017, %v5889
  %v5891 = vpop.f32.mrb[0].mxu0
  %v5892 = vadd.f32 %v5019, %v5891
  %v5893 = vpop.f32.mrb[0].mxu0
  %v5894 = vadd.f32 %v5021, %v5893
  %v5895 = vpop.f32.mrb[0].mxu0
  %v5896 = vadd.f32 %v5023, %v5895
  %5897 = vmatprep.mubr.bf16.mxu0 %v3581
  %5898 = vmatmul.mubr.bf16.gmra.mrb[0].mxu0 %v2362
  %v5899 = vpop.f32.mrb[0].mxu0
  %v5900 = vadd.f32 %v5027, %v5899
  %v5901 = vpop.f32.mrb[0].mxu0
  %v5902 = vadd.f32 %v5029, %v5901
  %v5903 = vpop.f32.mrb[0].mxu0
  %v5904 = vadd.f32 %v5031, %v5903
  %v5905 = vpop.f32.mrb[0].mxu0
  %v5906 = vadd.f32 %v5033, %v5905
  %5907 = vmatprep.mubr.bf16.mxu0 %v3584
  %5908 = vmatmul.mubr.bf16.gmra.mrb[0].mxu0 %v2368
  %v5909 = vpop.f32.mrb[0].mxu0
  %v5910 = vadd.f32 %v5037, %v5909
  %v5911 = vpop.f32.mrb[0].mxu0
  %v5912 = vadd.f32 %v5039, %v5911
  %v5913 = vpop.f32.mrb[0].mxu0
  %v5914 = vadd.f32 %v5041, %v5913
  %v5915 = vpop.f32.mrb[0].mxu0
  %v5916 = vadd.f32 %v5043, %v5915
  %5917 = vmatprep.mubr.bf16.mxu0 %v3587
  %5918 = vmatmul.mubr.bf16.gmra.mrb[0].mxu0 %v2374
  %v5919 = vpop.f32.mrb[0].mxu0
  %v5920 = vadd.f32 %v5047, %v5919
  %v5921 = vpop.f32.mrb[0].mxu0
  %v5922 = vadd.f32 %v5049, %v5921
  %v5923 = vpop.f32.mrb[0].mxu0
  %v5924 = vadd.f32 %v5051, %v5923
  %v5925 = vpop.f32.mrb[0].mxu0
  %v5926 = vadd.f32 %v5053, %v5925
  %5927 = vmatprep.mubr.bf16.mxu0 %v3590
  %5928 = vmatmul.mubr.bf16.gmra.mrb[0].mxu0 %v2380
  %v5929 = vpop.f32.mrb[0].mxu0
  %v5930 = vadd.f32 %v5057, %v5929
  %v5931 = vpop.f32.mrb[0].mxu0
  %v5932 = vadd.f32 %v5059, %v5931
  %v5933 = vpop.f32.mrb[0].mxu0
  %v5934 = vadd.f32 %v5061, %v5933
  %v5935 = vpop.f32.mrb[0].mxu0
  %v5936 = vadd.f32 %v5063, %v5935
  %5937 = vmatprep.mubr.bf16.mxu0 %v3593
  %5938 = vmatmul.mubr.bf16.gmra.mrb[0].mxu0 %v2386
  %v5939 = vpop.f32.mrb[0].mxu0
  %v5940 = vadd.f32 %v5067, %v5939
  %v5941 = vpop.f32.mrb[0].mxu0
  %v5942 = vadd.f32 %v5069, %v5941
  %v5943 = vpop.f32.mrb[0].mxu0
  %v5944 = vadd.f32 %v5071, %v5943
  %v5945 = vpop.f32.mrb[0].mxu0
  %v5946 = vadd.f32 %v5073, %v5945
  %5947 = vmatprep.mubr.bf16.mxu0 %v3596
  %5948 = vmatmul.mubr.bf16.gmra.mrb[0].mxu0 %v2392
  %v5949 = vpop.f32.mrb[0].mxu0
  %v5950 = vadd.f32 %v5077, %v5949
  %v5951 = vpop.f32.mrb[0].mxu0
  %v5952 = vadd.f32 %v5079, %v5951
  %v5953 = vpop.f32.mrb[0].mxu0
  %v5954 = vadd.f32 %v5081, %v5953
  %v5955 = vpop.f32.mrb[0].mxu0
  %v5956 = vadd.f32 %v5083, %v5955
  %5957 = vmatprep.mubr.bf16.mxu0 %v3599
  %5958 = vmatmul.mubr.bf16.gmra.mrb[0].mxu0 %v2398
  %v5959 = vpop.f32.mrb[0].mxu0
  %v5960 = vadd.f32 %v5087, %v5959
  %v5961 = vpop.f32.mrb[0].mxu0
  %v5962 = vadd.f32 %v5089, %v5961
  %v5963 = vpop.f32.mrb[0].mxu0
  %v5964 = vadd.f32 %v5091, %v5963
  %v5965 = vpop.f32.mrb[0].mxu0
  %v5966 = vadd.f32 %v5093, %v5965
  %5967 = vmatprep.mubr.bf16.mxu0 %v3602
  %5968 = vmatmul.mubr.bf16.gmra.mrb[0].mxu0 %v2404
  %v5969 = vpop.f32.mrb[0].mxu0
  %v5970 = vadd.f32 %v5097, %v5969
  %v5971 = vpop.f32.mrb[0].mxu0
  %v5972 = vadd.f32 %v5099, %v5971
  %v5973 = vpop.f32.mrb[0].mxu0
  %v5974 = vadd.f32 %v5101, %v5973
  %v5975 = vpop.f32.mrb[0].mxu0
  %v5976 = vadd.f32 %v5103, %v5975
  %5977 = vmatprep.mubr.bf16.mxu0 %v3605
  %5978 = vmatmul.mubr.bf16.gmra.mrb[0].mxu0 %v2410
  %v5979 = vpop.f32.mrb[0].mxu0
  %v5980 = vadd.f32 %v5107, %v5979
  %v5981 = vpop.f32.mrb[0].mxu0
  %v5982 = vadd.f32 %v5109, %v5981
  %v5983 = vpop.f32.mrb[0].mxu0
  %v5984 = vadd.f32 %v5111, %v5983
  %v5985 = vpop.f32.mrb[0].mxu0
  %v5986 = vadd.f32 %v5113, %v5985
  %5987 = vmatprep.mubr.bf16.mxu0 %v3608
  %5988 = vmatmul.mubr.bf16.gmra.mrb[0].mxu0 %v2416
  %v5989 = vpop.f32.mrb[0].mxu0
  %v5990 = vadd.f32 %v5117, %v5989
  %v5991 = vpop.f32.mrb[0].mxu0
  %v5992 = vadd.f32 %v5119, %v5991
  %v5993 = vpop.f32.mrb[0].mxu0
  %v5994 = vadd.f32 %v5121, %v5993
  %v5995 = vpop.f32.mrb[0].mxu0
  %v5996 = vadd.f32 %v5123, %v5995
  %5997 = vmatprep.mubr.bf16.mxu0 %v3611
  %5998 = vmatmul.mubr.bf16.gmra.mrb[0].mxu0 %v2422
  %v5999 = vpop.f32.mrb[0].mxu0
  %v6000 = vadd.f32 %v5127, %v5999
  %v6001 = vpop.f32.mrb[0].mxu0
  %v6002 = vadd.f32 %v5129, %v6001
  %v6003 = vpop.f32.mrb[0].mxu0
  %v6004 = vadd.f32 %v5131, %v6003
  %v6005 = vpop.f32.mrb[0].mxu0
  %v6006 = vadd.f32 %v5133, %v6005
  %6007 = vmatprep.mubr.bf16.mxu0 %v3614
  %6008 = vmatmul.mubr.bf16.gmra.mrb[0].mxu0 %v2428
  %v6009 = vpop.f32.mrb[0].mxu0
  %v6010 = vadd.f32 %v5137, %v6009
  %v6011 = vpop.f32.mrb[0].mxu0
  %v6012 = vadd.f32 %v5139, %v6011
  %v6013 = vpop.f32.mrb[0].mxu0
  %v6014 = vadd.f32 %v5141, %v6013
  %v6015 = vpop.f32.mrb[0].mxu0
  %v6016 = vadd.f32 %v5143, %v6015
  %6017 = vmatprep.mubr.bf16.mxu0 %v3617
  %6018 = vmatmul.mubr.bf16.gmra.mrb[0].mxu0 %v2434
  %v6019 = vpop.f32.mrb[0].mxu0
  %v6020 = vadd.f32 %v5147, %v6019
  %v6021 = vpop.f32.mrb[0].mxu0
  %v6022 = vadd.f32 %v5149, %v6021
  %v6023 = vpop.f32.mrb[0].mxu0
  %v6024 = vadd.f32 %v5151, %v6023
  %v6025 = vpop.f32.mrb[0].mxu0
  %v6026 = vadd.f32 %v5153, %v6025
  %6027 = vmatprep.mubr.bf16.mxu0 %v3620
  %6028 = vmatmul.mubr.bf16.gmra.mrb[0].mxu0 %v2440
  %v6029 = vpop.f32.mrb[0].mxu0
  %v6030 = vadd.f32 %v5157, %v6029
  %v6031 = vpop.f32.mrb[0].mxu0
  %v6032 = vadd.f32 %v5159, %v6031
  %v6033 = vpop.f32.mrb[0].mxu0
  %v6034 = vadd.f32 %v5161, %v6033
  %v6035 = vpop.f32.mrb[0].mxu0
  %v6036 = vadd.f32 %v5163, %v6035
  %6037 = vmatprep.mubr.bf16.mxu0 %v3623
  %6038 = vmatmul.mubr.bf16.gmra.mrb[0].mxu0 %v2446
  %v6039 = vpop.f32.mrb[0].mxu0
  %v6040 = vadd.f32 %v5167, %v6039
  %v6041 = vpop.f32.mrb[0].mxu0
  %v6042 = vadd.f32 %v5169, %v6041
  %v6043 = vpop.f32.mrb[0].mxu0
  %v6044 = vadd.f32 %v5171, %v6043
  %v6045 = vpop.f32.mrb[0].mxu0
  %v6046 = vadd.f32 %v5173, %v6045
  %6047 = vmatprep.mubr.bf16.mxu0 %v3626
  %6048 = vmatmul.mubr.bf16.gmra.mrb[0].mxu0 %v2452
  %v6049 = vpop.f32.mrb[0].mxu0
  %v6050 = vadd.f32 %v5177, %v6049
  %v6051 = vpop.f32.mrb[0].mxu0
  %v6052 = vadd.f32 %v5179, %v6051
  %v6053 = vpop.f32.mrb[0].mxu0
  %v6054 = vadd.f32 %v5181, %v6053
  %v6055 = vpop.f32.mrb[0].mxu0
  %v6056 = vadd.f32 %v5183, %v6055
  %6057 = vmatprep.mubr.bf16.mxu0 %v3629
  %6058 = vmatmul.mubr.bf16.gmra.mrb[0].mxu0 %v2458
  %v6059 = vpop.f32.mrb[0].mxu0
  %v6060 = vadd.f32 %v5187, %v6059
  %v6061 = vpop.f32.mrb[0].mxu0
  %v6062 = vadd.f32 %v5189, %v6061
  %v6063 = vpop.f32.mrb[0].mxu0
  %v6064 = vadd.f32 %v5191, %v6063
  %v6065 = vpop.f32.mrb[0].mxu0
  %v6066 = vadd.f32 %v5193, %v6065
  %6067 = vmatprep.mubr.bf16.mxu0 %v3632
  %6068 = vmatmul.mubr.bf16.gmra.mrb[0].mxu0 %v2464
  %v6069 = vpop.f32.mrb[0].mxu0
  %v6070 = vadd.f32 %v5197, %v6069
  %v6071 = vpop.f32.mrb[0].mxu0
  %v6072 = vadd.f32 %v5199, %v6071
  %v6073 = vpop.f32.mrb[0].mxu0
  %v6074 = vadd.f32 %v5201, %v6073
  %v6075 = vpop.f32.mrb[0].mxu0
  %v6076 = vadd.f32 %v5203, %v6075
  %6077 = vmatprep.mubr.bf16.mxu0 %v3635
  %6078 = vmatmul.mubr.bf16.gmra.mrb[0].mxu0 %v2470
  %v6079 = vpop.f32.mrb[0].mxu0
  %v6080 = vadd.f32 %v5207, %v6079
  %v6081 = vpop.f32.mrb[0].mxu0
  %v6082 = vadd.f32 %v5209, %v6081
  %v6083 = vpop.f32.mrb[0].mxu0
  %v6084 = vadd.f32 %v5211, %v6083
  %v6085 = vpop.f32.mrb[0].mxu0
  %v6086 = vadd.f32 %v5213, %v6085
  %6087 = vmatprep.mubr.bf16.mxu0 %v3638
  %6088 = vmatmul.mubr.bf16.gmra.mrb[0].mxu0 %v2476
  %v6089 = vpop.f32.mrb[0].mxu0
  %v6090 = vadd.f32 %v5217, %v6089
  %v6091 = vpop.f32.mrb[0].mxu0
  %v6092 = vadd.f32 %v5219, %v6091
  %v6093 = vpop.f32.mrb[0].mxu0
  %v6094 = vadd.f32 %v5221, %v6093
  %v6095 = vpop.f32.mrb[0].mxu0
  %v6096 = vadd.f32 %v5223, %v6095
  %6097 = vmatprep.mubr.bf16.mxu0 %v3641
  %6098 = vmatmul.mubr.bf16.gmra.mrb[0].mxu0 %v2482
  %v6099 = vpop.f32.mrb[0].mxu0
  %v6100 = vadd.f32 %v5227, %v6099
  %v6101 = vpop.f32.mrb[0].mxu0
  %v6102 = vadd.f32 %v5229, %v6101
  %v6103 = vpop.f32.mrb[0].mxu0
  %v6104 = vadd.f32 %v5231, %v6103
  %v6105 = vpop.f32.mrb[0].mxu0
  %v6106 = vadd.f32 %v5233, %v6105
  %6107 = vmatprep.mubr.bf16.mxu0 %v3644
  %6108 = vmatmul.mubr.bf16.gmra.mrb[0].mxu0 %v2488
  %v6109 = vpop.f32.mrb[0].mxu0
  %v6110 = vadd.f32 %v5237, %v6109
  %v6111 = vpop.f32.mrb[0].mxu0
  %v6112 = vadd.f32 %v5239, %v6111
  %v6113 = vpop.f32.mrb[0].mxu0
  %v6114 = vadd.f32 %v5241, %v6113
  %v6115 = vpop.f32.mrb[0].mxu0
  %v6116 = vadd.f32 %v5243, %v6115
  %6117 = vmatprep.mubr.bf16.mxu0 %v3647
  %6118 = vmatmul.mubr.bf16.gmra.mrb[0].mxu0 %v2494
  %v6119 = vpop.f32.mrb[0].mxu0
  %v6120 = vadd.f32 %v5247, %v6119
  %v6121 = vpop.f32.mrb[0].mxu0
  %v6122 = vadd.f32 %v5249, %v6121
  %v6123 = vpop.f32.mrb[0].mxu0
  %v6124 = vadd.f32 %v5251, %v6123
  %v6125 = vpop.f32.mrb[0].mxu0
  %v6126 = vadd.f32 %v5253, %v6125
  %6127 = vmatprep.mubr.bf16.mxu0 %v3650
  %6128 = vmatmul.mubr.bf16.gmra.mrb[0].mxu0 %v2500
  %v6129 = vpop.f32.mrb[0].mxu0
  %v6130 = vadd.f32 %v5257, %v6129
  %v6131 = vpop.f32.mrb[0].mxu0
  %v6132 = vadd.f32 %v5259, %v6131
  %v6133 = vpop.f32.mrb[0].mxu0
  %v6134 = vadd.f32 %v5261, %v6133
  %v6135 = vpop.f32.mrb[0].mxu0
  %v6136 = vadd.f32 %v5263, %v6135
  %6137 = vmatprep.mubr.bf16.mxu0 %v3653
  %6138 = vmatmul.mubr.bf16.gmra.mrb[0].mxu0 %v2506
  %v6139 = vpop.f32.mrb[0].mxu0
  %v6140 = vadd.f32 %v5267, %v6139
  %v6141 = vpop.f32.mrb[0].mxu0
  %v6142 = vadd.f32 %v5269, %v6141
  %v6143 = vpop.f32.mrb[0].mxu0
  %v6144 = vadd.f32 %v5271, %v6143
  %v6145 = vpop.f32.mrb[0].mxu0
  %v6146 = vadd.f32 %v5273, %v6145
  %6147 = vmatprep.mubr.bf16.mxu0 %v3656
  %6148 = vmatmul.mubr.bf16.gmra.mrb[0].mxu0 %v2512
  %v6149 = vpop.f32.mrb[0].mxu0
  %v6150 = vadd.f32 %v5277, %v6149
  %v6151 = vpop.f32.mrb[0].mxu0
  %v6152 = vadd.f32 %v5279, %v6151
  %v6153 = vpop.f32.mrb[0].mxu0
  %v6154 = vadd.f32 %v5281, %v6153
  %v6155 = vpop.f32.mrb[0].mxu0
  %v6156 = vadd.f32 %v5283, %v6155
  %6157 = vmatprep.mubr.bf16.mxu0 %v3659
  %6158 = vmatmul.mubr.bf16.gmra.mrb[0].mxu0 %v2518
  %v6159 = vpop.f32.mrb[0].mxu0
  %v6160 = vadd.f32 %v5287, %v6159
  %v6161 = vpop.f32.mrb[0].mxu0
  %v6162 = vadd.f32 %v5289, %v6161
  %v6163 = vpop.f32.mrb[0].mxu0
  %v6164 = vadd.f32 %v5291, %v6163
  %v6165 = vpop.f32.mrb[0].mxu0
  %v6166 = vadd.f32 %v5293, %v6165
  %6167 = vmatprep.mubr.bf16.mxu0 %v3662
  %6168 = vmatmul.mubr.bf16.gmra.mrb[0].mxu0 %v2524
  %v6169 = vpop.f32.mrb[0].mxu0
  %v6170 = vadd.f32 %v5297, %v6169
  %v6171 = vpop.f32.mrb[0].mxu0
  %v6172 = vadd.f32 %v5299, %v6171
  %v6173 = vpop.f32.mrb[0].mxu0
  %v6174 = vadd.f32 %v5301, %v6173
  %v6175 = vpop.f32.mrb[0].mxu0
  %v6176 = vadd.f32 %v5303, %v6175
  %6177 = vmatprep.mubr.bf16.mxu0 %v3665
  %6178 = vmatmul.mubr.bf16.gmra.mrb[0].mxu0 %v2530
  %v6179 = vpop.f32.mrb[0].mxu0
  %v6180 = vadd.f32 %v5307, %v6179
  %v6181 = vpop.f32.mrb[0].mxu0
  %v6182 = vadd.f32 %v5309, %v6181
  %v6183 = vpop.f32.mrb[0].mxu0
  %v6184 = vadd.f32 %v5311, %v6183
  %v6185 = vpop.f32.mrb[0].mxu0
  %v6186 = vadd.f32 %v5313, %v6185
  %6187 = vmatprep.mubr.bf16.mxu0 %v3668
  %6188 = vmatmul.mubr.bf16.gmra.mrb[0].mxu0 %v2536
  %v6189 = vpop.f32.mrb[0].mxu0
  %v6190 = vadd.f32 %v5317, %v6189
  %v6191 = vpop.f32.mrb[0].mxu0
  %v6192 = vadd.f32 %v5319, %v6191
  %v6193 = vpop.f32.mrb[0].mxu0
  %v6194 = vadd.f32 %v5321, %v6193
  %v6195 = vpop.f32.mrb[0].mxu0
  %v6196 = vadd.f32 %v5323, %v6195
  %6197 = vmatprep.mubr.bf16.mxu0 %v3671
  %6198 = vmatmul.mubr.bf16.gmra.mrb[0].mxu0 %v2542
  %v6199 = vpop.f32.mrb[0].mxu0
  %v6200 = vadd.f32 %v5327, %v6199
  %v6201 = vpop.f32.mrb[0].mxu0
  %v6202 = vadd.f32 %v5329, %v6201
  %v6203 = vpop.f32.mrb[0].mxu0
  %v6204 = vadd.f32 %v5331, %v6203
  %v6205 = vpop.f32.mrb[0].mxu0
  %v6206 = vadd.f32 %v5333, %v6205
  %6207 = vmatprep.mubr.bf16.mxu0 %v3674
  %6208 = vmatmul.mubr.bf16.gmra.mrb[0].mxu0 %v2548
  %v6209 = vpop.f32.mrb[0].mxu0
  %v6210 = vadd.f32 %v5337, %v6209
  %v6211 = vpop.f32.mrb[0].mxu0
  %v6212 = vadd.f32 %v5339, %v6211
  %v6213 = vpop.f32.mrb[0].mxu0
  %v6214 = vadd.f32 %v5341, %v6213
  %v6215 = vpop.f32.mrb[0].mxu0
  %v6216 = vadd.f32 %v5343, %v6215
  %6217 = vmatprep.mubr.bf16.mxu0 %v3677
  %6218 = vmatmul.mubr.bf16.gmra.mrb[0].mxu0 %v2554
  %v6219 = vpop.f32.mrb[0].mxu0
  %v6220 = vadd.f32 %v5347, %v6219
  %v6221 = vpop.f32.mrb[0].mxu0
  %v6222 = vadd.f32 %v5349, %v6221
  %v6223 = vpop.f32.mrb[0].mxu0
  %v6224 = vadd.f32 %v5351, %v6223
  %v6225 = vpop.f32.mrb[0].mxu0
  %v6226 = vadd.f32 %v5353, %v6225
  %6227 = vmatprep.mubr.bf16.mxu0 %v3680
  %6228 = vmatmul.mubr.bf16.gmra.mrb[0].mxu0 %v2560
  %v6229 = vpop.f32.mrb[0].mxu0
  %v6230 = vadd.f32 %v5357, %v6229
  %v6231 = vpop.f32.mrb[0].mxu0
  %v6232 = vadd.f32 %v5359, %v6231
  %v6233 = vpop.f32.mrb[0].mxu0
  %v6234 = vadd.f32 %v5361, %v6233
  %v6235 = vpop.f32.mrb[0].mxu0
  %v6236 = vadd.f32 %v5363, %v6235
  %6237 = vmatprep.mubr.bf16.mxu0 %v3683
  %6238 = vmatmul.mubr.bf16.gmra.mrb[0].mxu0 %v2566
  %v6239 = vpop.f32.mrb[0].mxu0
  %v6240 = vadd.f32 %v5367, %v6239
  %v6241 = vpop.f32.mrb[0].mxu0
  %v6242 = vadd.f32 %v5369, %v6241
  %v6243 = vpop.f32.mrb[0].mxu0
  %v6244 = vadd.f32 %v5371, %v6243
  %v6245 = vpop.f32.mrb[0].mxu0
  %v6246 = vadd.f32 %v5373, %v6245
  %6247 = vmatprep.mubr.bf16.mxu0 %v3686
  %6248 = vmatmul.mubr.bf16.gmra.mrb[0].mxu0 %v2572
  %v6249 = vpop.f32.mrb[0].mxu0
  %v6250 = vadd.f32 %v5377, %v6249
  %v6251 = vpop.f32.mrb[0].mxu0
  %v6252 = vadd.f32 %v5379, %v6251
  %v6253 = vpop.f32.mrb[0].mxu0
  %v6254 = vadd.f32 %v5381, %v6253
  %v6255 = vpop.f32.mrb[0].mxu0
  %v6256 = vadd.f32 %v5383, %v6255
  %6257 = vmatprep.mubr.bf16.mxu0 %v3689
  %6258 = vmatmul.mubr.bf16.gmra.mrb[0].mxu0 %v2578
  %v6259 = vpop.f32.mrb[0].mxu0
  %v6260 = vadd.f32 %v5387, %v6259
  %v6261 = vpop.f32.mrb[0].mxu0
  %v6262 = vadd.f32 %v5389, %v6261
  %v6263 = vpop.f32.mrb[0].mxu0
  %v6264 = vadd.f32 %v5391, %v6263
  %v6265 = vpop.f32.mrb[0].mxu0
  %v6266 = vadd.f32 %v5393, %v6265
  %6267 = vmatprep.mubr.bf16.mxu0 %v3692
  %6268 = vmatmul.mubr.bf16.gmra.mrb[0].mxu0 %v2584
  %v6269 = vpop.f32.mrb[0].mxu0
  %v6270 = vadd.f32 %v5397, %v6269
  %v6271 = vpop.f32.mrb[0].mxu0
  %v6272 = vadd.f32 %v5399, %v6271
  %v6273 = vpop.f32.mrb[0].mxu0
  %v6274 = vadd.f32 %v5401, %v6273
  %v6275 = vpop.f32.mrb[0].mxu0
  %v6276 = vadd.f32 %v5403, %v6275
  %6277 = vmatprep.mubr.bf16.mxu0 %v3695
  %6278 = vmatmul.mubr.bf16.gmra.mrb[0].mxu0 %v2590
  %v6279 = vpop.f32.mrb[0].mxu0
  %v6280 = vadd.f32 %v5407, %v6279
  %v6281 = vpop.f32.mrb[0].mxu0
  %v6282 = vadd.f32 %v5409, %v6281
  %v6283 = vpop.f32.mrb[0].mxu0
  %v6284 = vadd.f32 %v5411, %v6283
  %v6285 = vpop.f32.mrb[0].mxu0
  %v6286 = vadd.f32 %v5413, %v6285
  %6287 = vmatprep.mubr.bf16.mxu0 %v3698
  %6288 = vmatmul.mubr.bf16.gmra.mrb[0].mxu0 %v2596
  %v6289 = vpop.f32.mrb[0].mxu0
  %v6290 = vadd.f32 %v5417, %v6289
  %v6291 = vpop.f32.mrb[0].mxu0
  %v6292 = vadd.f32 %v5419, %v6291
  %v6293 = vpop.f32.mrb[0].mxu0
  %v6294 = vadd.f32 %v5421, %v6293
  %v6295 = vpop.f32.mrb[0].mxu0
  %v6296 = vadd.f32 %v5423, %v6295
  %6297 = vmatprep.mubr.bf16.mxu0 %v3701
  %6298 = vmatmul.mubr.bf16.gmra.mrb[0].mxu0 %v2602
  %v6299 = vpop.f32.mrb[0].mxu0
  %v6300 = vadd.f32 %v5427, %v6299
  %v6301 = vpop.f32.mrb[0].mxu0
  %v6302 = vadd.f32 %v5429, %v6301
  %v6303 = vpop.f32.mrb[0].mxu0
  %v6304 = vadd.f32 %v5431, %v6303
  %v6305 = vpop.f32.mrb[0].mxu0
  %v6306 = vadd.f32 %v5433, %v6305
  %6307 = vmatprep.mubr.bf16.mxu0 %v3704
  %6308 = vmatmul.mubr.bf16.gmra.mrb[0].mxu0 %v2608
  %v6309 = vpop.f32.mrb[0].mxu0
  %v6310 = vadd.f32 %v5437, %v6309
  %v6311 = vpop.f32.mrb[0].mxu0
  %v6312 = vadd.f32 %v5439, %v6311
  %v6313 = vpop.f32.mrb[0].mxu0
  %v6314 = vadd.f32 %v5441, %v6313
  %v6315 = vpop.f32.mrb[0].mxu0
  %v6316 = vadd.f32 %v5443, %v6315
  %6317 = vmatprep.mubr.bf16.mxu0 %v3707
  %6318 = vmatmul.mubr.bf16.gmra.mrb[0].mxu0 %v2614
  %v6319 = vpop.f32.mrb[0].mxu0
  %v6320 = vadd.f32 %v5447, %v6319
  %v6321 = vpop.f32.mrb[0].mxu0
  %v6322 = vadd.f32 %v5449, %v6321
  %v6323 = vpop.f32.mrb[0].mxu0
  %v6324 = vadd.f32 %v5451, %v6323
  %v6325 = vpop.f32.mrb[0].mxu0
  %v6326 = vadd.f32 %v5453, %v6325
  %6327 = vdwg.mxu0
  %6328 = vst [vmem:[%s2] sm:$0xff] %v5490
  %vm6329 = vcmask 556032
  %6330 = vst.msk [vmem:[%s2 + $0x8] sm:$0xff] %vm6329, %v5492
  %6331 = vst [vmem:[%s2 + $0x10] sm:$0xff] %v5494
  %6332 = vst.msk [vmem:[%s2 + $0x18] sm:$0xff] %vm6329, %v5496
  %6333 = vst [vmem:[%s2 + $0x20] sm:$0xff] %v5500
  %6334 = vst.msk [vmem:[%s2 + $0x28] sm:$0xff] %vm6329, %v5502
  %6335 = vst [vmem:[%s2 + $0x30] sm:$0xff] %v5504
  %6336 = vst.msk [vmem:[%s2 + $0x38] sm:$0xff] %vm6329, %v5506
  %6337 = vst [vmem:[%s2 + $0x40] sm:$0xff] %v5510
  %6338 = vst.msk [vmem:[%s2 + $0x48] sm:$0xff] %vm6329, %v5512
  %6339 = vst [vmem:[%s2 + $0x50] sm:$0xff] %v5514
  %6340 = vst.msk [vmem:[%s2 + $0x58] sm:$0xff] %vm6329, %v5516
  %6341 = vst [vmem:[%s2 + $0x60] sm:$0xff] %v5520
  %6342 = vst.msk [vmem:[%s2 + $0x68] sm:$0xff] %vm6329, %v5522
  %6343 = vst [vmem:[%s2 + $0x70] sm:$0xff] %v5524
  %6344 = vst.msk [vmem:[%s2 + $0x78] sm:$0xff] %vm6329, %v5526
  %6345 = vst [vmem:[%s2 + $0x80] sm:$0xff] %v5530
  %6346 = vst.msk [vmem:[%s2 + $0x88] sm:$0xff] %vm6329, %v5532
  %6347 = vst [vmem:[%s2 + $0x90] sm:$0xff] %v5534
  %6348 = vst.msk [vmem:[%s2 + $0x98] sm:$0xff] %vm6329, %v5536
  %6349 = vst [vmem:[%s2 + $0xa0] sm:$0xff] %v5540
  %6350 = vst.msk [vmem:[%s2 + $0xa8] sm:$0xff] %vm6329, %v5542
  %6351 = vst [vmem:[%s2 + $0xb0] sm:$0xff] %v5544
  %6352 = vst.msk [vmem:[%s2 + $0xb8] sm:$0xff] %vm6329, %v5546
  %6353 = vst [vmem:[%s2 + $0xc0] sm:$0xff] %v5550
  %6354 = vst.msk [vmem:[%s2 + $0xc8] sm:$0xff] %vm6329, %v5552
  %6355 = vst [vmem:[%s2 + $0xd0] sm:$0xff] %v5554
  %6356 = vst.msk [vmem:[%s2 + $0xd8] sm:$0xff] %vm6329, %v5556
  %6357 = vst [vmem:[%s2 + $0xe0] sm:$0xff] %v5560
  %6358 = vst.msk [vmem:[%s2 + $0xe8] sm:$0xff] %vm6329, %v5562
  %6359 = vst [vmem:[%s2 + $0xf0] sm:$0xff] %v5564
  %6360 = vst.msk [vmem:[%s2 + $0xf8] sm:$0xff] %vm6329, %v5566
  %6361 = vst [vmem:[%s2 + $0x100] sm:$0xff] %v5570
  %6362 = vst.msk [vmem:[%s2 + $0x108] sm:$0xff] %vm6329, %v5572
  %6363 = vst [vmem:[%s2 + $0x110] sm:$0xff] %v5574
  %6364 = vst.msk [vmem:[%s2 + $0x118] sm:$0xff] %vm6329, %v5576
  %6365 = vst [vmem:[%s2 + $0x120] sm:$0xff] %v5580
  %6366 = vst.msk [vmem:[%s2 + $0x128] sm:$0xff] %vm6329, %v5582
  %6367 = vst [vmem:[%s2 + $0x130] sm:$0xff] %v5584
  %6368 = vst.msk [vmem:[%s2 + $0x138] sm:$0xff] %vm6329, %v5586
  %6369 = vst [vmem:[%s2 + $0x140] sm:$0xff] %v5590
  %6370 = vst.msk [vmem:[%s2 + $0x148] sm:$0xff] %vm6329, %v5592
  %6371 = vst [vmem:[%s2 + $0x150] sm:$0xff] %v5594
  %6372 = vst.msk [vmem:[%s2 + $0x158] sm:$0xff] %vm6329, %v5596
  %6373 = vst [vmem:[%s2 + $0x160] sm:$0xff] %v5600
  %6374 = vst.msk [vmem:[%s2 + $0x168] sm:$0xff] %vm6329, %v5602
  %6375 = vst [vmem:[%s2 + $0x170] sm:$0xff] %v5604
  %6376 = vst.msk [vmem:[%s2 + $0x178] sm:$0xff] %vm6329, %v5606
  %6377 = vst [vmem:[%s2 + $0x180] sm:$0xff] %v5610
  %6378 = vst.msk [vmem:[%s2 + $0x188] sm:$0xff] %vm6329, %v5612
  %6379 = vst [vmem:[%s2 + $0x190] sm:$0xff] %v5614
  %6380 = vst.msk [vmem:[%s2 + $0x198] sm:$0xff] %vm6329, %v5616
  %6381 = vst [vmem:[%s2 + $0x1a0] sm:$0xff] %v5620
  %6382 = vst.msk [vmem:[%s2 + $0x1a8] sm:$0xff] %vm6329, %v5622
  %6383 = vst [vmem:[%s2 + $0x1b0] sm:$0xff] %v5624
  %6384 = vst.msk [vmem:[%s2 + $0x1b8] sm:$0xff] %vm6329, %v5626
  %6385 = vst [vmem:[%s2 + $0x1c0] sm:$0xff] %v5630
  %6386 = vst.msk [vmem:[%s2 + $0x1c8] sm:$0xff] %vm6329, %v5632
  %6387 = vst [vmem:[%s2 + $0x1d0] sm:$0xff] %v5634
  %6388 = vst.msk [vmem:[%s2 + $0x1d8] sm:$0xff] %vm6329, %v5636
  %6389 = vst [vmem:[%s2 + $0x1e0] sm:$0xff] %v5640
  %6390 = vst.msk [vmem:[%s2 + $0x1e8] sm:$0xff] %vm6329, %v5642
  %6391 = vst [vmem:[%s2 + $0x1f0] sm:$0xff] %v5644
  %6392 = vst.msk [vmem:[%s2 + $0x1f8] sm:$0xff] %vm6329, %v5646
  %6393 = vst [vmem:[%s2 + $0x200] sm:$0xff] %v5650
  %6394 = vst.msk [vmem:[%s2 + $0x208] sm:$0xff] %vm6329, %v5652
  %6395 = vst [vmem:[%s2 + $0x210] sm:$0xff] %v5654
  %6396 = vst.msk [vmem:[%s2 + $0x218] sm:$0xff] %vm6329, %v5656
  %6397 = vst [vmem:[%s2 + $0x220] sm:$0xff] %v5660
  %6398 = vst.msk [vmem:[%s2 + $0x228] sm:$0xff] %vm6329, %v5662
  %6399 = vst [vmem:[%s2 + $0x230] sm:$0xff] %v5664
  %6400 = vst.msk [vmem:[%s2 + $0x238] sm:$0xff] %vm6329, %v5666
  %6401 = vst [vmem:[%s2 + $0x240] sm:$0xff] %v5670
  %6402 = vst.msk [vmem:[%s2 + $0x248] sm:$0xff] %vm6329, %v5672
  %6403 = vst [vmem:[%s2 + $0x250] sm:$0xff] %v5674
  %6404 = vst.msk [vmem:[%s2 + $0x258] sm:$0xff] %vm6329, %v5676
  %6405 = vst [vmem:[%s2 + $0x260] sm:$0xff] %v5680
  %6406 = vst.msk [vmem:[%s2 + $0x268] sm:$0xff] %vm6329, %v5682
  %6407 = vst [vmem:[%s2 + $0x270] sm:$0xff] %v5684
  %6408 = vst.msk [vmem:[%s2 + $0x278] sm:$0xff] %vm6329, %v5686
  %6409 = vst [vmem:[%s2 + $0x280] sm:$0xff] %v5690
  %6410 = vst.msk [vmem:[%s2 + $0x288] sm:$0xff] %vm6329, %v5692
  %6411 = vst [vmem:[%s2 + $0x290] sm:$0xff] %v5694
  %6412 = vst.msk [vmem:[%s2 + $0x298] sm:$0xff] %vm6329, %v5696
  %6413 = vst [vmem:[%s2 + $0x2a0] sm:$0xff] %v5700
  %6414 = vst.msk [vmem:[%s2 + $0x2a8] sm:$0xff] %vm6329, %v5702
  %6415 = vst [vmem:[%s2 + $0x2b0] sm:$0xff] %v5704
  %6416 = vst.msk [vmem:[%s2 + $0x2b8] sm:$0xff] %vm6329, %v5706
  %6417 = vst [vmem:[%s2 + $0x2c0] sm:$0xff] %v5710
  %6418 = vst.msk [vmem:[%s2 + $0x2c8] sm:$0xff] %vm6329, %v5712
  %6419 = vst [vmem:[%s2 + $0x2d0] sm:$0xff] %v5714
  %6420 = vst.msk [vmem:[%s2 + $0x2d8] sm:$0xff] %vm6329, %v5716
  %6421 = vst [vmem:[%s2 + $0x2e0] sm:$0xff] %v5720
  %6422 = vst.msk [vmem:[%s2 + $0x2e8] sm:$0xff] %vm6329, %v5722
  %6423 = vst [vmem:[%s2 + $0x2f0] sm:$0xff] %v5724
  %6424 = vst.msk [vmem:[%s2 + $0x2f8] sm:$0xff] %vm6329, %v5726
  %6425 = vst [vmem:[%s2 + $0x300] sm:$0xff] %v5730
  %6426 = vst.msk [vmem:[%s2 + $0x308] sm:$0xff] %vm6329, %v5732
  %6427 = vst [vmem:[%s2 + $0x310] sm:$0xff] %v5734
  %6428 = vst.msk [vmem:[%s2 + $0x318] sm:$0xff] %vm6329, %v5736
  %6429 = vst [vmem:[%s2 + $0x320] sm:$0xff] %v5740
  %6430 = vst.msk [vmem:[%s2 + $0x328] sm:$0xff] %vm6329, %v5742
  %6431 = vst [vmem:[%s2 + $0x330] sm:$0xff] %v5744
  %6432 = vst.msk [vmem:[%s2 + $0x338] sm:$0xff] %vm6329, %v5746
  %6433 = vst [vmem:[%s2 + $0x340] sm:$0xff] %v5750
  %6434 = vst.msk [vmem:[%s2 + $0x348] sm:$0xff] %vm6329, %v5752
  %6435 = vst [vmem:[%s2 + $0x350] sm:$0xff] %v5754
  %6436 = vst.msk [vmem:[%s2 + $0x358] sm:$0xff] %vm6329, %v5756
  %6437 = vst [vmem:[%s2 + $0x360] sm:$0xff] %v5760
  %6438 = vst.msk [vmem:[%s2 + $0x368] sm:$0xff] %vm6329, %v5762
  %6439 = vst [vmem:[%s2 + $0x370] sm:$0xff] %v5764
  %6440 = vst.msk [vmem:[%s2 + $0x378] sm:$0xff] %vm6329, %v5766
  %6441 = vst [vmem:[%s2 + $0x380] sm:$0xff] %v5770
  %6442 = vst.msk [vmem:[%s2 + $0x388] sm:$0xff] %vm6329, %v5772
  %6443 = vst [vmem:[%s2 + $0x390] sm:$0xff] %v5774
  %6444 = vst.msk [vmem:[%s2 + $0x398] sm:$0xff] %vm6329, %v5776
  %6445 = vst [vmem:[%s2 + $0x3a0] sm:$0xff] %v5780
  %6446 = vst.msk [vmem:[%s2 + $0x3a8] sm:$0xff] %vm6329, %v5782
  %6447 = vst [vmem:[%s2 + $0x3b0] sm:$0xff] %v5784
  %6448 = vst.msk [vmem:[%s2 + $0x3b8] sm:$0xff] %vm6329, %v5786
  %6449 = vst [vmem:[%s2 + $0x3c0] sm:$0xff] %v5790
  %6450 = vst.msk [vmem:[%s2 + $0x3c8] sm:$0xff] %vm6329, %v5792
  %6451 = vst [vmem:[%s2 + $0x3d0] sm:$0xff] %v5794
  %6452 = vst.msk [vmem:[%s2 + $0x3d8] sm:$0xff] %vm6329, %v5796
  %6453 = vst [vmem:[%s2 + $0x3e0] sm:$0xff] %v5800
  %6454 = vst.msk [vmem:[%s2 + $0x3e8] sm:$0xff] %vm6329, %v5802
  %6455 = vst [vmem:[%s2 + $0x3f0] sm:$0xff] %v5804
  %6456 = vst.msk [vmem:[%s2 + $0x3f8] sm:$0xff] %vm6329, %v5806
  %6457 = vst [vmem:[%s2 + $0x400] sm:$0xff] %v5810
  %6458 = vst.msk [vmem:[%s2 + $0x408] sm:$0xff] %vm6329, %v5812
  %6459 = vst [vmem:[%s2 + $0x410] sm:$0xff] %v5814
  %6460 = vst.msk [vmem:[%s2 + $0x418] sm:$0xff] %vm6329, %v5816
  %6461 = vst [vmem:[%s2 + $0x420] sm:$0xff] %v5820
  %6462 = vst.msk [vmem:[%s2 + $0x428] sm:$0xff] %vm6329, %v5822
  %6463 = vst [vmem:[%s2 + $0x430] sm:$0xff] %v5824
  %6464 = vst.msk [vmem:[%s2 + $0x438] sm:$0xff] %vm6329, %v5826
  %6465 = vst [vmem:[%s2 + $0x440] sm:$0xff] %v5830
  %6466 = vst.msk [vmem:[%s2 + $0x448] sm:$0xff] %vm6329, %v5832
  %6467 = vst [vmem:[%s2 + $0x450] sm:$0xff] %v5834
  %6468 = vst.msk [vmem:[%s2 + $0x458] sm:$0xff] %vm6329, %v5836
  %6469 = vst [vmem:[%s2 + $0x460] sm:$0xff] %v5840
  %6470 = vst.msk [vmem:[%s2 + $0x468] sm:$0xff] %vm6329, %v5842
  %6471 = vst [vmem:[%s2 + $0x470] sm:$0xff] %v5844
  %6472 = vst.msk [vmem:[%s2 + $0x478] sm:$0xff] %vm6329, %v5846
  %6473 = vst [vmem:[%s2 + $0x480] sm:$0xff] %v5850
  %6474 = vst.msk [vmem:[%s2 + $0x488] sm:$0xff] %vm6329, %v5852
  %6475 = vst [vmem:[%s2 + $0x490] sm:$0xff] %v5854
  %6476 = vst.msk [vmem:[%s2 + $0x498] sm:$0xff] %vm6329, %v5856
  %6477 = vst [vmem:[%s2 + $0x4a0] sm:$0xff] %v5860
  %6478 = vst.msk [vmem:[%s2 + $0x4a8] sm:$0xff] %vm6329, %v5862
  %6479 = vst [vmem:[%s2 + $0x4b0] sm:$0xff] %v5864
  %6480 = vst.msk [vmem:[%s2 + $0x4b8] sm:$0xff] %vm6329, %v5866
  %6481 = vst [vmem:[%s2 + $0x4c0] sm:$0xff] %v5870
  %6482 = vst.msk [vmem:[%s2 + $0x4c8] sm:$0xff] %vm6329, %v5872
  %6483 = vst [vmem:[%s2 + $0x4d0] sm:$0xff] %v5874
  %6484 = vst.msk [vmem:[%s2 + $0x4d8] sm:$0xff] %vm6329, %v5876
  %6485 = vst [vmem:[%s2 + $0x4e0] sm:$0xff] %v5880
  %6486 = vst.msk [vmem:[%s2 + $0x4e8] sm:$0xff] %vm6329, %v5882
  %6487 = vst [vmem:[%s2 + $0x4f0] sm:$0xff] %v5884
  %6488 = vst.msk [vmem:[%s2 + $0x4f8] sm:$0xff] %vm6329, %v5886
  %6489 = vst [vmem:[%s2 + $0x500] sm:$0xff] %v5890
  %6490 = vst.msk [vmem:[%s2 + $0x508] sm:$0xff] %vm6329, %v5892
  %6491 = vst [vmem:[%s2 + $0x510] sm:$0xff] %v5894
  %6492 = vst.msk [vmem:[%s2 + $0x518] sm:$0xff] %vm6329, %v5896
  %6493 = vst [vmem:[%s2 + $0x520] sm:$0xff] %v5900
  %6494 = vst.msk [vmem:[%s2 + $0x528] sm:$0xff] %vm6329, %v5902
  %6495 = vst [vmem:[%s2 + $0x530] sm:$0xff] %v5904
  %6496 = vst.msk [vmem:[%s2 + $0x538] sm:$0xff] %vm6329, %v5906
  %6497 = vst [vmem:[%s2 + $0x540] sm:$0xff] %v5910
  %6498 = vst.msk [vmem:[%s2 + $0x548] sm:$0xff] %vm6329, %v5912
  %6499 = vst [vmem:[%s2 + $0x550] sm:$0xff] %v5914
  %6500 = vst.msk [vmem:[%s2 + $0x558] sm:$0xff] %vm6329, %v5916
  %6501 = vst [vmem:[%s2 + $0x560] sm:$0xff] %v5920
  %6502 = vst.msk [vmem:[%s2 + $0x568] sm:$0xff] %vm6329, %v5922
  %6503 = vst [vmem:[%s2 + $0x570] sm:$0xff] %v5924
  %6504 = vst.msk [vmem:[%s2 + $0x578] sm:$0xff] %vm6329, %v5926
  %6505 = vst [vmem:[%s2 + $0x580] sm:$0xff] %v5930
  %6506 = vst.msk [vmem:[%s2 + $0x588] sm:$0xff] %vm6329, %v5932
  %6507 = vst [vmem:[%s2 + $0x590] sm:$0xff] %v5934
  %6508 = vst.msk [vmem:[%s2 + $0x598] sm:$0xff] %vm6329, %v5936
  %6509 = vst [vmem:[%s2 + $0x5a0] sm:$0xff] %v5940
  %6510 = vst.msk [vmem:[%s2 + $0x5a8] sm:$0xff] %vm6329, %v5942
  %6511 = vst [vmem:[%s2 + $0x5b0] sm:$0xff] %v5944
  %6512 = vst.msk [vmem:[%s2 + $0x5b8] sm:$0xff] %vm6329, %v5946
  %6513 = vst [vmem:[%s2 + $0x5c0] sm:$0xff] %v5950
  %6514 = vst.msk [vmem:[%s2 + $0x5c8] sm:$0xff] %vm6329, %v5952
  %6515 = vst [vmem:[%s2 + $0x5d0] sm:$0xff] %v5954
  %6516 = vst.msk [vmem:[%s2 + $0x5d8] sm:$0xff] %vm6329, %v5956
  %6517 = vst [vmem:[%s2 + $0x5e0] sm:$0xff] %v5960
  %6518 = vst.msk [vmem:[%s2 + $0x5e8] sm:$0xff] %vm6329, %v5962
  %6519 = vst [vmem:[%s2 + $0x5f0] sm:$0xff] %v5964
  %6520 = vst.msk [vmem:[%s2 + $0x5f8] sm:$0xff] %vm6329, %v5966
  %6521 = vst [vmem:[%s2 + $0x600] sm:$0xff] %v5970
  %6522 = vst.msk [vmem:[%s2 + $0x608] sm:$0xff] %vm6329, %v5972
  %6523 = vst [vmem:[%s2 + $0x610] sm:$0xff] %v5974
  %6524 = vst.msk [vmem:[%s2 + $0x618] sm:$0xff] %vm6329, %v5976
  %6525 = vst [vmem:[%s2 + $0x620] sm:$0xff] %v5980
  %6526 = vst.msk [vmem:[%s2 + $0x628] sm:$0xff] %vm6329, %v5982
  %6527 = vst [vmem:[%s2 + $0x630] sm:$0xff] %v5984
  %6528 = vst.msk [vmem:[%s2 + $0x638] sm:$0xff] %vm6329, %v5986
  %6529 = vst [vmem:[%s2 + $0x640] sm:$0xff] %v5990
  %6530 = vst.msk [vmem:[%s2 + $0x648] sm:$0xff] %vm6329, %v5992
  %6531 = vst [vmem:[%s2 + $0x650] sm:$0xff] %v5994
  %6532 = vst.msk [vmem:[%s2 + $0x658] sm:$0xff] %vm6329, %v5996
  %6533 = vst [vmem:[%s2 + $0x660] sm:$0xff] %v6000
  %6534 = vst.msk [vmem:[%s2 + $0x668] sm:$0xff] %vm6329, %v6002
  %6535 = vst [vmem:[%s2 + $0x670] sm:$0xff] %v6004
  %6536 = vst.msk [vmem:[%s2 + $0x678] sm:$0xff] %vm6329, %v6006
  %6537 = vst [vmem:[%s2 + $0x680] sm:$0xff] %v6010
  %6538 = vst.msk [vmem:[%s2 + $0x688] sm:$0xff] %vm6329, %v6012
  %6539 = vst [vmem:[%s2 + $0x690] sm:$0xff] %v6014
  %6540 = vst.msk [vmem:[%s2 + $0x698] sm:$0xff] %vm6329, %v6016
  %6541 = vst [vmem:[%s2 + $0x6a0] sm:$0xff] %v6020
  %6542 = vst.msk [vmem:[%s2 + $0x6a8] sm:$0xff] %vm6329, %v6022
  %6543 = vst [vmem:[%s2 + $0x6b0] sm:$0xff] %v6024
  %6544 = vst.msk [vmem:[%s2 + $0x6b8] sm:$0xff] %vm6329, %v6026
  %6545 = vst [vmem:[%s2 + $0x6c0] sm:$0xff] %v6030
  %6546 = vst.msk [vmem:[%s2 + $0x6c8] sm:$0xff] %vm6329, %v6032
  %6547 = vst [vmem:[%s2 + $0x6d0] sm:$0xff] %v6034
  %6548 = vst.msk [vmem:[%s2 + $0x6d8] sm:$0xff] %vm6329, %v6036
  %6549 = vst [vmem:[%s2 + $0x6e0] sm:$0xff] %v6040
  %6550 = vst.msk [vmem:[%s2 + $0x6e8] sm:$0xff] %vm6329, %v6042
  %6551 = vst [vmem:[%s2 + $0x6f0] sm:$0xff] %v6044
  %6552 = vst.msk [vmem:[%s2 + $0x6f8] sm:$0xff] %vm6329, %v6046
  %6553 = vst [vmem:[%s2 + $0x700] sm:$0xff] %v6050
  %6554 = vst.msk [vmem:[%s2 + $0x708] sm:$0xff] %vm6329, %v6052
  %6555 = vst [vmem:[%s2 + $0x710] sm:$0xff] %v6054
  %6556 = vst.msk [vmem:[%s2 + $0x718] sm:$0xff] %vm6329, %v6056
  %6557 = vst [vmem:[%s2 + $0x720] sm:$0xff] %v6060
  %6558 = vst.msk [vmem:[%s2 + $0x728] sm:$0xff] %vm6329, %v6062
  %6559 = vst [vmem:[%s2 + $0x730] sm:$0xff] %v6064
  %6560 = vst.msk [vmem:[%s2 + $0x738] sm:$0xff] %vm6329, %v6066
  %6561 = vst [vmem:[%s2 + $0x740] sm:$0xff] %v6070
  %6562 = vst.msk [vmem:[%s2 + $0x748] sm:$0xff] %vm6329, %v6072
  %6563 = vst [vmem:[%s2 + $0x750] sm:$0xff] %v6074
  %6564 = vst.msk [vmem:[%s2 + $0x758] sm:$0xff] %vm6329, %v6076
  %6565 = vst [vmem:[%s2 + $0x760] sm:$0xff] %v6080
  %6566 = vst.msk [vmem:[%s2 + $0x768] sm:$0xff] %vm6329, %v6082
  %6567 = vst [vmem:[%s2 + $0x770] sm:$0xff] %v6084
  %6568 = vst.msk [vmem:[%s2 + $0x778] sm:$0xff] %vm6329, %v6086
  %6569 = vst [vmem:[%s2 + $0x780] sm:$0xff] %v6090
  %6570 = vst.msk [vmem:[%s2 + $0x788] sm:$0xff] %vm6329, %v6092
  %6571 = vst [vmem:[%s2 + $0x790] sm:$0xff] %v6094
  %6572 = vst.msk [vmem:[%s2 + $0x798] sm:$0xff] %vm6329, %v6096
  %6573 = vst [vmem:[%s2 + $0x7a0] sm:$0xff] %v6100
  %6574 = vst.msk [vmem:[%s2 + $0x7a8] sm:$0xff] %vm6329, %v6102
  %6575 = vst [vmem:[%s2 + $0x7b0] sm:$0xff] %v6104
  %6576 = vst.msk [vmem:[%s2 + $0x7b8] sm:$0xff] %vm6329, %v6106
  %6577 = vst [vmem:[%s2 + $0x7c0] sm:$0xff] %v6110
  %6578 = vst.msk [vmem:[%s2 + $0x7c8] sm:$0xff] %vm6329, %v6112
  %6579 = vst [vmem:[%s2 + $0x7d0] sm:$0xff] %v6114
  %6580 = vst.msk [vmem:[%s2 + $0x7d8] sm:$0xff] %vm6329, %v6116
  %6581 = vst [vmem:[%s2 + $0x7e0] sm:$0xff] %v6120
  %6582 = vst.msk [vmem:[%s2 + $0x7e8] sm:$0xff] %vm6329, %v6122
  %6583 = vst [vmem:[%s2 + $0x7f0] sm:$0xff] %v6124
  %6584 = vst.msk [vmem:[%s2 + $0x7f8] sm:$0xff] %vm6329, %v6126
  %6585 = vst [vmem:[%s2 + $0x800] sm:$0xff] %v6130
  %6586 = vst.msk [vmem:[%s2 + $0x808] sm:$0xff] %vm6329, %v6132
  %6587 = vst [vmem:[%s2 + $0x810] sm:$0xff] %v6134
  %6588 = vst.msk [vmem:[%s2 + $0x818] sm:$0xff] %vm6329, %v6136
  %6589 = vst [vmem:[%s2 + $0x820] sm:$0xff] %v6140
  %6590 = vst.msk [vmem:[%s2 + $0x828] sm:$0xff] %vm6329, %v6142
  %6591 = vst [vmem:[%s2 + $0x830] sm:$0xff] %v6144
  %6592 = vst.msk [vmem:[%s2 + $0x838] sm:$0xff] %vm6329, %v6146
  %6593 = vst [vmem:[%s2 + $0x840] sm:$0xff] %v6150
  %6594 = vst.msk [vmem:[%s2 + $0x848] sm:$0xff] %vm6329, %v6152
  %6595 = vst [vmem:[%s2 + $0x850] sm:$0xff] %v6154
  %6596 = vst.msk [vmem:[%s2 + $0x858] sm:$0xff] %vm6329, %v6156
  %6597 = vst [vmem:[%s2 + $0x860] sm:$0xff] %v6160
  %6598 = vst.msk [vmem:[%s2 + $0x868] sm:$0xff] %vm6329, %v6162
  %6599 = vst [vmem:[%s2 + $0x870] sm:$0xff] %v6164
  %6600 = vst.msk [vmem:[%s2 + $0x878] sm:$0xff] %vm6329, %v6166
  %6601 = vst [vmem:[%s2 + $0x880] sm:$0xff] %v6170
  %6602 = vst.msk [vmem:[%s2 + $0x888] sm:$0xff] %vm6329, %v6172
  %6603 = vst [vmem:[%s2 + $0x890] sm:$0xff] %v6174
  %6604 = vst.msk [vmem:[%s2 + $0x898] sm:$0xff] %vm6329, %v6176
  %6605 = vst [vmem:[%s2 + $0x8a0] sm:$0xff] %v6180
  %6606 = vst.msk [vmem:[%s2 + $0x8a8] sm:$0xff] %vm6329, %v6182
  %6607 = vst [vmem:[%s2 + $0x8b0] sm:$0xff] %v6184
  %6608 = vst.msk [vmem:[%s2 + $0x8b8] sm:$0xff] %vm6329, %v6186
  %6609 = vst [vmem:[%s2 + $0x8c0] sm:$0xff] %v6190
  %6610 = vst.msk [vmem:[%s2 + $0x8c8] sm:$0xff] %vm6329, %v6192
  %6611 = vst [vmem:[%s2 + $0x8d0] sm:$0xff] %v6194
  %6612 = vst.msk [vmem:[%s2 + $0x8d8] sm:$0xff] %vm6329, %v6196
  %6613 = vst [vmem:[%s2 + $0x8e0] sm:$0xff] %v6200
  %6614 = vst.msk [vmem:[%s2 + $0x8e8] sm:$0xff] %vm6329, %v6202
  %6615 = vst [vmem:[%s2 + $0x8f0] sm:$0xff] %v6204
  %6616 = vst.msk [vmem:[%s2 + $0x8f8] sm:$0xff] %vm6329, %v6206
  %6617 = vst [vmem:[%s2 + $0x900] sm:$0xff] %v6210
  %6618 = vst.msk [vmem:[%s2 + $0x908] sm:$0xff] %vm6329, %v6212
  %6619 = vst [vmem:[%s2 + $0x910] sm:$0xff] %v6214
  %6620 = vst.msk [vmem:[%s2 + $0x918] sm:$0xff] %vm6329, %v6216
  %6621 = vst [vmem:[%s2 + $0x920] sm:$0xff] %v6220
  %6622 = vst.msk [vmem:[%s2 + $0x928] sm:$0xff] %vm6329, %v6222
  %6623 = vst [vmem:[%s2 + $0x930] sm:$0xff] %v6224
  %6624 = vst.msk [vmem:[%s2 + $0x938] sm:$0xff] %vm6329, %v6226
  %6625 = vst [vmem:[%s2 + $0x940] sm:$0xff] %v6230
  %6626 = vst.msk [vmem:[%s2 + $0x948] sm:$0xff] %vm6329, %v6232
  %6627 = vst [vmem:[%s2 + $0x950] sm:$0xff] %v6234
  %6628 = vst.msk [vmem:[%s2 + $0x958] sm:$0xff] %vm6329, %v6236
  %6629 = vst [vmem:[%s2 + $0x960] sm:$0xff] %v6240
  %6630 = vst.msk [vmem:[%s2 + $0x968] sm:$0xff] %vm6329, %v6242
  %6631 = vst [vmem:[%s2 + $0x970] sm:$0xff] %v6244
  %6632 = vst.msk [vmem:[%s2 + $0x978] sm:$0xff] %vm6329, %v6246
  %6633 = vst [vmem:[%s2 + $0x980] sm:$0xff] %v6250
  %6634 = vst.msk [vmem:[%s2 + $0x988] sm:$0xff] %vm6329, %v6252
  %6635 = vst [vmem:[%s2 + $0x990] sm:$0xff] %v6254
  %6636 = vst.msk [vmem:[%s2 + $0x998] sm:$0xff] %vm6329, %v6256
  %6637 = vst [vmem:[%s2 + $0x9a0] sm:$0xff] %v6260
  %6638 = vst.msk [vmem:[%s2 + $0x9a8] sm:$0xff] %vm6329, %v6262
  %6639 = vst [vmem:[%s2 + $0x9b0] sm:$0xff] %v6264
  %6640 = vst.msk [vmem:[%s2 + $0x9b8] sm:$0xff] %vm6329, %v6266
  %6641 = vst [vmem:[%s2 + $0x9c0] sm:$0xff] %v6270
  %6642 = vst.msk [vmem:[%s2 + $0x9c8] sm:$0xff] %vm6329, %v6272
  %6643 = vst [vmem:[%s2 + $0x9d0] sm:$0xff] %v6274
  %6644 = vst.msk [vmem:[%s2 + $0x9d8] sm:$0xff] %vm6329, %v6276
  %6645 = vst [vmem:[%s2 + $0x9e0] sm:$0xff] %v6280
  %6646 = vst.msk [vmem:[%s2 + $0x9e8] sm:$0xff] %vm6329, %v6282
  %6647 = vst [vmem:[%s2 + $0x9f0] sm:$0xff] %v6284
  %6648 = vst.msk [vmem:[%s2 + $0x9f8] sm:$0xff] %vm6329, %v6286
  %6649 = vst [vmem:[%s2 + $0xa00] sm:$0xff] %v6290
  %6650 = vst.msk [vmem:[%s2 + $0xa08] sm:$0xff] %vm6329, %v6292
  %6651 = vst [vmem:[%s2 + $0xa10] sm:$0xff] %v6294
  %6652 = vst.msk [vmem:[%s2 + $0xa18] sm:$0xff] %vm6329, %v6296
  %6653 = vst [vmem:[%s2 + $0xa20] sm:$0xff] %v6300
  %6654 = vst.msk [vmem:[%s2 + $0xa28] sm:$0xff] %vm6329, %v6302
  %6655 = vst [vmem:[%s2 + $0xa30] sm:$0xff] %v6304
  %6656 = vst.msk [vmem:[%s2 + $0xa38] sm:$0xff] %vm6329, %v6306
  %6657 = vst [vmem:[%s2 + $0xa40] sm:$0xff] %v6310
  %6658 = vst.msk [vmem:[%s2 + $0xa48] sm:$0xff] %vm6329, %v6312
  %6659 = vst [vmem:[%s2 + $0xa50] sm:$0xff] %v6314
  %6660 = vst.msk [vmem:[%s2 + $0xa58] sm:$0xff] %vm6329, %v6316
  %6661 = vst [vmem:[%s2 + $0xa60] sm:$0xff] %v6320
  %6662 = vst.msk [vmem:[%s2 + $0xa68] sm:$0xff] %vm6329, %v6322
  %6663 = vst [vmem:[%s2 + $0xa70] sm:$0xff] %v6324
  %6664 = vst.msk [vmem:[%s2 + $0xa78] sm:$0xff] %vm6329, %v6326
  // Predicated region
  $region10: #{relu_conv2d_1x1_s2.1} parent=0 // pred_check
    _
  $region11: #{relu_conv2d_1x1_s2.1} parent=0 // pred_check_branch
    %6666 = sbr.rel (0) target = $region13
  $region12: #{relu_conv2d_1x1_s2.1} parent=0 // pred_region
    _
  $region13: #{relu_conv2d_1x1_s2.1} parent=0 // pred_fallthru
    _
  // Predicated region
  $region14: #{relu_conv2d_1x1_s2.1} parent=0 // pred_check
    _
  $region15: #{relu_conv2d_1x1_s2.1} parent=0 // pred_check_branch
    %6668 = sbr.rel (0) target = $region17
  $region16: #{relu_conv2d_1x1_s2.1} parent=0 // pred_region
    _
  $region17: #{relu_conv2d_1x1_s2.1} parent=0 // pred_fallthru
    _

</llo_original>
